<compile_context>
chip_gen: v7x
topology: tpu7x:2x2x1
jax: 0.10.0
libtpu: 0.0.40
codegen_flags: <defaults>
</compile_context>

<pallas_src>
import numpy as np
import jax
import jax.numpy as jnp
from jax import lax
from jax.experimental import pallas as pl
from jax.experimental.pallas import tpu as pltpu

LEAKY_SLOPE = 0.01  # nn.LeakyReLU() default negative_slope

# Fixed 3x3 filters as compile-time constants (only non-zero taps get emitted).
_SOBEL_X = ((1.0, 0.0, -1.0), (2.0, 0.0, -2.0), (1.0, 0.0, -1.0))
_SOBEL_Y = ((1.0, 2.0, 1.0), (0.0, 0.0, 0.0), (-1.0, -2.0, -1.0))
_LAPLACE = ((0.0, 1.0, 0.0), (1.0, -4.0, 1.0), (0.0, 1.0, 0.0))


def _axpy(acc, coef, v):
    """acc + coef*v with 0 / +-1 coefficients folded at trace time."""
    if coef == 0.0:
        return acc
    if coef == 1.0:
        return acc + v
    if coef == -1.0:
        return acc - v
    return acc + coef * v


def _fmrb_kernel(x_ref, w7_ref, bsum_ref, out_ref, pad_ref):
    # x_ref    : (1, dc, H, W)     VMEM   one channel-group block of the input
    # w7_ref   : (dc, 49)          SMEM   combined Conv1..Conv6 7x7 kernels (flattened)
    # bsum_ref : (dc,)             SMEM   summed Conv1..Conv6 biases
    # out_ref  : (1, dc, H, W)     VMEM
    # pad_ref  : (dc, H+6, W+6)    VMEM scratch (zero-padded copy of the x1 block)
    g = pl.program_id(1)            # channel group: 0 -> conv path, >0 -> untouched path
    _, dc, H, W = x_ref.shape

    @pl.when(g == 0)
    def _conv_path():
        x1 = x_ref[0]                                           # (dc, H, W)

        # Build the zero-padded planes once in VMEM (replaces the jnp.pad HBM round trip).
        pad_ref[...] = jnp.zeros_like(pad_ref)
        pad_ref[:, pl.ds(3, H), pl.ds(3, W)] = x1
        xpad = pad_ref[...]                                     # (dc, H+6, W+6), loaded once

        accs = [jnp.zeros((H, W), jnp.float32) for _ in range(dc)]
        sx = jnp.zeros((dc, H, W), jnp.float32)
        sy = jnp.zeros((dc, H, W), jnp.float32)
        lp = jnp.zeros((dc, H, W), jnp.float32)

        # kx (lane-direction) shift hoisted to the outer loop: each of the 7 shifted copies
        # is reused for all 7 ky taps of the 7x7 kernel and, when 2<=kx<=4, for the fixed
        # 3x3 filters as well (their windows are the central 3x3 of the 7x7 window set).
        for kx in range(7):
            col = xpad[:, :, kx:kx + W]                         # (dc, H+6, W)
            for ky in range(7):
                win = col[:, ky:ky + H, :]                      # (dc, H, W)
                for c in range(dc):
                    accs[c] = accs[c] + w7_ref[c, ky * 7 + kx] * win[c]
                if 2 <= kx <= 4 and 2 <= ky <= 4:
                    fy, fx = ky - 2, kx - 2
                    sx = _axpy(sx, _SOBEL_X[fy][fx], win)
                    sy = _axpy(sy, _SOBEL_Y[fy][fx], win)
                    lp = _axpy(lp, _LAPLACE[fy][fx], win)

        # Laplacian is symmetric (lap.T == lap): compute once, add |.| twice.
        fixed = jnp.abs(sx) + jnp.abs(sy) + 2.0 * jnp.abs(lp)   # (dc, H, W)

        for c in range(dc):
            t = accs[c] + bsum_ref[c] + fixed[c]
            act = jnp.where(t >= 0, t, LEAKY_SLOPE * t)
            out_ref[0, c] = act + x1[c]

    @pl.when(g != 0)
    def _untouched_path():
        # end2 = LeakyReLU(8 * x2) + x2  (the eight concatenated copies of x2 summed).
        v = x_ref[0]
        s = 8.0 * v
        out_ref[0] = jnp.where(s >= 0, s, LEAKY_SLOPE * s) + v


def fmrb_forward(x, params):
    N, C, H, W = x.shape
    dc = C // 4
    assert dc >= 1 and C % dc == 0, "in_feature must be >= 4 and divisible by its quarter"
    n_groups = C // dc   # group 0 = x1 (conv path), groups 1.. = x2 (untouched path)

    return pl.pallas_call(
        _fmrb_kernel,
        out_shape=jax.ShapeDtypeStruct((N, C, H, W), jnp.float32),
        grid=(N, n_groups),
        in_specs=[
            pl.BlockSpec((1, dc, H, W), lambda n, g: (n, g, 0, 0)),
            pl.BlockSpec(memory_space=pltpu.MemorySpace.SMEM),   # w7   (dc, 49)
            pl.BlockSpec(memory_space=pltpu.MemorySpace.SMEM),   # bsum (dc,)
        ],
        out_specs=pl.BlockSpec((1, dc, H, W), lambda n, g: (n, g, 0, 0)),
        scratch_shapes=[pltpu.VMEM((dc, H + 6, W + 6), jnp.float32)],
        compiler_params=pltpu.CompilerParams(
            # Both grid axes write disjoint output blocks -> shardable across v7x's 2 TCs.
            dimension_semantics=("parallel", "parallel"),
            # Explicit scoped-VMEM budget: above v5e's 16 MiB default, comfortably under
            # v7x's 64 MiB physical VMEM (blocks here are small; headroom for larger H/W/dc).
            vmem_limit_bytes=48 * 1024 * 1024,
        ),
    )(x, params["w7"], params["bsum"])


def init_params(key, in_feature):
    """Deterministic init matching the module's parameter shapes.

    Conv1..Conv6 are depthwise (groups=dc), weight shape (dc, 1, kh, kw), bias (dc,).
    By linearity they are folded exactly into one centered 7x7 kernel per channel plus a
    summed bias (all six convs are 'same' convs, so the fold is exact).
    """
    dc = in_feature // 4
    kernel_sizes = [(1, 1), (3, 3), (5, 5), (7, 7), (1, 3), (3, 1)]
    keys = jax.random.split(key, 2 * len(kernel_sizes))

    w7 = jnp.zeros((dc, 7, 7), jnp.float32)
    bsum = jnp.zeros((dc,), jnp.float32)
    for i, (kh, kw) in enumerate(kernel_sizes):
        fan_in = 1 * kh * kw  # in_channels / groups == 1
        bound = 1.0 / np.sqrt(fan_in)
        w = jax.random.uniform(keys[2 * i], (dc, kh, kw), jnp.float32, -bound, bound)
        b = jax.random.uniform(keys[2 * i + 1], (dc,), jnp.float32, -bound, bound)
        oy = 3 - (kh - 1) // 2
        ox = 3 - (kw - 1) // 2
        w7 = w7.at[:, oy:oy + kh, ox:ox + kw].add(w)
        bsum = bsum + b

    return {"w7": w7.reshape(dc, 49), "bsum": bsum}


def fmrb_reference(x, params):
    """Independent pure-JAX reference (XLA convolutions) for correctness checking."""
    N, C, H, W = x.shape
    dc = C // 4
    x1, x2 = x[:, :dc], x[:, dc:]
    w7 = params["w7"].reshape(dc, 7, 7)

    def dconv(inp, w, pad):
        return lax.conv_general_dilated(
            inp, w[:, None], (1, 1), [(pad, pad), (pad, pad)],
            feature_group_count=dc,
            dimension_numbers=("NCHW", "OIHW", "NCHW"),
            precision=lax.Precision.HIGHEST)

    sobel = jnp.array(_SOBEL_X, jnp.float32)
    lap = jnp.array(_LAPLACE, jnp.float32)
    acc = dconv(x1, w7, 3) + params["bsum"].reshape(1, dc, 1, 1)
    acc = acc + jnp.abs(dconv(x1, jnp.broadcast_to(sobel, (dc, 3, 3)), 1))
    acc = acc + jnp.abs(dconv(x1, jnp.broadcast_to(sobel.T, (dc, 3, 3)), 1))
    acc = acc + jnp.abs(dconv(x1, jnp.broadcast_to(lap, (dc, 3, 3)), 1))
    acc = acc + jnp.abs(dconv(x1, jnp.broadcast_to(lap.T, (dc, 3, 3)), 1))
    out1 = jnp.where(acc >= 0, acc, LEAKY_SLOPE * acc) + x1
    s = 8.0 * x2
    out2 = jnp.where(s >= 0, s, LEAKY_SLOPE * s) + x2
    return jnp.concatenate([out1, out2], axis=1)


if __name__ == "__main__":
    key = jax.random.PRNGKey(0)
    key_x, key_p = jax.random.split(key)

    in_feature = 8          # dim_conv3 = 2, dim_untouched = 6
    N, H, W = 2, 16, 16
    x = jax.random.normal(key_x, (N, in_feature, H, W), jnp.float32)
    params = init_params(key_p, in_feature)

    out = jax.block_until_ready(fmrb_forward(x, params))
    assert out.shape == x.shape and out.dtype == jnp.float32

    ref = jax.block_until_ready(fmrb_reference(x, params))
    err = float(jnp.max(jnp.abs(out - ref)))
    assert err < 1e-3, f"mismatch vs reference: max abs err = {err}"

    print("KERNEL_OK")
</pallas_src>

<mosaic_0001>
module attributes {stable_mosaic.version = 11 : i64} {
  func.func @_fmrb_kernel(%arg0: i32, %arg1: i32, %arg2: memref<1x2x16x16xf32, #tpu.memory_space<vmem>>, %arg3: memref<2x49xf32, #tpu.memory_space<smem>>, %arg4: memref<2xf32, #tpu.memory_space<smem>>, %arg5: memref<1x2x16x16xf32, #tpu.memory_space<vmem>>, %arg6: memref<2x22x22xf32, #tpu.memory_space<vmem>>) attributes {dimension_semantics = [#tpu.dimension_semantics<parallel>, #tpu.dimension_semantics<parallel>], iteration_bounds = array<i64: 2, 4>, scalar_prefetch = 0 : i64, scratch_operands = 1 : i64, tpu.core_type = #tpu.core_type<tc>, window_params = [{transform_indices = @transform_0, window_bounds = array<i64: 1, 2, 16, 16>}, {transform_indices = @transform_1, window_bounds = array<i64: 2, 49>}, {transform_indices = @transform_2, window_bounds = array<i64: 2>}, {transform_indices = @transform_3, window_bounds = array<i64: 1, 2, 16, 16>}]} {
    %c0_i32 = arith.constant 0 : i32
    %0 = arith.cmpi eq, %arg1, %c0_i32 : i32
    %1 = arith.extui %0 : i1 to i32
    %c0_i32_0 = arith.constant 0 : i32
    %2 = arith.cmpi ne, %1, %c0_i32_0 : i32
    scf.if %2 {
      %c0 = arith.constant 0 : index
      %c0_3 = arith.constant 0 : index
      %c0_4 = arith.constant 0 : index
      %c0_5 = arith.constant 0 : index
      %6 = vector.load %arg2[%c0, %c0_3, %c0_4, %c0_5] : memref<1x2x16x16xf32, #tpu.memory_space<vmem>>, vector<1x2x16x16xf32>
      %7 = vector.shape_cast %6 : vector<1x2x16x16xf32> to vector<2x16x16xf32>
      %cst = arith.constant 0.000000e+00 : f32
      %8 = vector.broadcast %cst : f32 to vector<2x22x22xf32>
      %c0_6 = arith.constant 0 : index
      %c0_7 = arith.constant 0 : index
      %c0_8 = arith.constant 0 : index
      %9 = vector.load %arg6[%c0_6, %c0_7, %c0_8] : memref<2x22x22xf32, #tpu.memory_space<vmem>>, vector<2x22x22xf32>
      tpu.vector_store %arg6[%c0_6, %c0_7, %c0_8], %8 {strides = array<i32>} : memref<2x22x22xf32, #tpu.memory_space<vmem>>, vector<2x22x22xf32>,
      %c0_9 = arith.constant 0 : index
      %c3 = arith.constant 3 : index
      %c3_10 = arith.constant 3 : index
      %10 = vector.load %arg6[%c0_9, %c3, %c3_10] : memref<2x22x22xf32, #tpu.memory_space<vmem>>, vector<2x16x16xf32>
      tpu.vector_store %arg6[%c0_9, %c3, %c3_10], %7 {strides = array<i32>} : memref<2x22x22xf32, #tpu.memory_space<vmem>>, vector<2x16x16xf32>,
      %c0_11 = arith.constant 0 : index
      %c0_12 = arith.constant 0 : index
      %c0_13 = arith.constant 0 : index
      %11 = vector.load %arg6[%c0_11, %c0_12, %c0_13] : memref<2x22x22xf32, #tpu.memory_space<vmem>>, vector<2x22x22xf32>
      %cst_14 = arith.constant 0.000000e+00 : f32
      %12 = vector.broadcast %cst_14 : f32 to vector<16x16xf32>
      %cst_15 = arith.constant 0.000000e+00 : f32
      %13 = vector.broadcast %cst_15 : f32 to vector<16x16xf32>
      %cst_16 = arith.constant 0.000000e+00 : f32
      %14 = vector.broadcast %cst_16 : f32 to vector<2x16x16xf32>
      %cst_17 = arith.constant 0.000000e+00 : f32
      %15 = vector.broadcast %cst_17 : f32 to vector<2x16x16xf32>
      %cst_18 = arith.constant 0.000000e+00 : f32
      %16 = vector.broadcast %cst_18 : f32 to vector<2x16x16xf32>
      %17 = vector.extract_strided_slice %11 {offsets = [0, 0, 0], sizes = [2, 22, 16], strides = [1, 1, 1]} : vector<2x22x22xf32> to vector<2x22x16xf32>
      %18 = vector.extract_strided_slice %17 {offsets = [0, 0, 0], sizes = [2, 16, 16], strides = [1, 1, 1]} : vector<2x22x16xf32> to vector<2x16x16xf32>
      %c0_19 = arith.constant 0 : index
      %c0_20 = arith.constant 0 : index
      %19 = memref.load %arg3[%c0_19, %c0_20] : memref<2x49xf32, #tpu.memory_space<smem>>
      %20 = vector.extract_strided_slice %18 {offsets = [0, 0, 0], sizes = [1, 16, 16], strides = [1, 1, 1]} : vector<2x16x16xf32> to vector<1x16x16xf32>
      %21 = vector.shape_cast %20 : vector<1x16x16xf32> to vector<16x16xf32>
      %22 = vector.broadcast %19 : f32 to vector<16x16xf32>
      %23 = arith.mulf %22, %21 : vector<16x16xf32>
      %24 = arith.addf %12, %23 : vector<16x16xf32>
      %c1 = arith.constant 1 : index
      %c0_21 = arith.constant 0 : index
      %25 = memref.load %arg3[%c1, %c0_21] : memref<2x49xf32, #tpu.memory_space<smem>>
      %26 = vector.extract_strided_slice %18 {offsets = [1, 0, 0], sizes = [1, 16, 16], strides = [1, 1, 1]} : vector<2x16x16xf32> to vector<1x16x16xf32>
      %27 = vector.shape_cast %26 : vector<1x16x16xf32> to vector<16x16xf32>
      %28 = vector.broadcast %25 : f32 to vector<16x16xf32>
      %29 = arith.mulf %28, %27 : vector<16x16xf32>
      %30 = arith.addf %13, %29 : vector<16x16xf32>
      %31 = vector.extract_strided_slice %17 {offsets = [0, 1, 0], sizes = [2, 16, 16], strides = [1, 1, 1]} : vector<2x22x16xf32> to vector<2x16x16xf32>
      %c0_22 = arith.constant 0 : index
      %c7 = arith.constant 7 : index
      %32 = memref.load %arg3[%c0_22, %c7] : memref<2x49xf32, #tpu.memory_space<smem>>
      %33 = vector.extract_strided_slice %31 {offsets = [0, 0, 0], sizes = [1, 16, 16], strides = [1, 1, 1]} : vector<2x16x16xf32> to vector<1x16x16xf32>
      %34 = vector.shape_cast %33 : vector<1x16x16xf32> to vector<16x16xf32>
      %35 = vector.broadcast %32 : f32 to vector<16x16xf32>
      %36 = arith.mulf %35, %34 : vector<16x16xf32>
      %37 = arith.addf %24, %36 : vector<16x16xf32>
      %c1_23 = arith.constant 1 : index
      %c7_24 = arith.constant 7 : index
      %38 = memref.load %arg3[%c1_23, %c7_24] : memref<2x49xf32, #tpu.memory_space<smem>>
      %39 = vector.extract_strided_slice %31 {offsets = [1, 0, 0], sizes = [1, 16, 16], strides = [1, 1, 1]} : vector<2x16x16xf32> to vector<1x16x16xf32>
      %40 = vector.shape_cast %39 : vector<1x16x16xf32> to vector<16x16xf32>
      %41 = vector.broadcast %38 : f32 to vector<16x16xf32>
      %42 = arith.mulf %41, %40 : vector<16x16xf32>
      %43 = arith.addf %30, %42 : vector<16x16xf32>
      %44 = vector.extract_strided_slice %17 {offsets = [0, 2, 0], sizes = [2, 16, 16], strides = [1, 1, 1]} : vector<2x22x16xf32> to vector<2x16x16xf32>
      %c0_25 = arith.constant 0 : index
      %c14 = arith.constant 14 : index
      %45 = memref.load %arg3[%c0_25, %c14] : memref<2x49xf32, #tpu.memory_space<smem>>
      %46 = vector.extract_strided_slice %44 {offsets = [0, 0, 0], sizes = [1, 16, 16], strides = [1, 1, 1]} : vector<2x16x16xf32> to vector<1x16x16xf32>
      %47 = vector.shape_cast %46 : vector<1x16x16xf32> to vector<16x16xf32>
      %48 = vector.broadcast %45 : f32 to vector<16x16xf32>
      %49 = arith.mulf %48, %47 : vector<16x16xf32>
      %50 = arith.addf %37, %49 : vector<16x16xf32>
      %c1_26 = arith.constant 1 : index
      %c14_27 = arith.constant 14 : index
      %51 = memref.load %arg3[%c1_26, %c14_27] : memref<2x49xf32, #tpu.memory_space<smem>>
      %52 = vector.extract_strided_slice %44 {offsets = [1, 0, 0], sizes = [1, 16, 16], strides = [1, 1, 1]} : vector<2x16x16xf32> to vector<1x16x16xf32>
      %53 = vector.shape_cast %52 : vector<1x16x16xf32> to vector<16x16xf32>
      %54 = vector.broadcast %51 : f32 to vector<16x16xf32>
      %55 = arith.mulf %54, %53 : vector<16x16xf32>
      %56 = arith.addf %43, %55 : vector<16x16xf32>
      %57 = vector.extract_strided_slice %17 {offsets = [0, 3, 0], sizes = [2, 16, 16], strides = [1, 1, 1]} : vector<2x22x16xf32> to vector<2x16x16xf32>
      %c0_28 = arith.constant 0 : index
      %c21 = arith.constant 21 : index
      %58 = memref.load %arg3[%c0_28, %c21] : memref<2x49xf32, #tpu.memory_space<smem>>
      %59 = vector.extract_strided_slice %57 {offsets = [0, 0, 0], sizes = [1, 16, 16], strides = [1, 1, 1]} : vector<2x16x16xf32> to vector<1x16x16xf32>
      %60 = vector.shape_cast %59 : vector<1x16x16xf32> to vector<16x16xf32>
      %61 = vector.broadcast %58 : f32 to vector<16x16xf32>
      %62 = arith.mulf %61, %60 : vector<16x16xf32>
      %63 = arith.addf %50, %62 : vector<16x16xf32>
      %c1_29 = arith.constant 1 : index
      %c21_30 = arith.constant 21 : index
      %64 = memref.load %arg3[%c1_29, %c21_30] : memref<2x49xf32, #tpu.memory_space<smem>>
      %65 = vector.extract_strided_slice %57 {offsets = [1, 0, 0], sizes = [1, 16, 16], strides = [1, 1, 1]} : vector<2x16x16xf32> to vector<1x16x16xf32>
      %66 = vector.shape_cast %65 : vector<1x16x16xf32> to vector<16x16xf32>
      %67 = vector.broadcast %64 : f32 to vector<16x16xf32>
      %68 = arith.mulf %67, %66 : vector<16x16xf32>
      %69 = arith.addf %56, %68 : vector<16x16xf32>
      %70 = vector.extract_strided_slice %17 {offsets = [0, 4, 0], sizes = [2, 16, 16], strides = [1, 1, 1]} : vector<2x22x16xf32> to vector<2x16x16xf32>
      %c0_31 = arith.constant 0 : index
      %c28 = arith.constant 28 : index
      %71 = memref.load %arg3[%c0_31, %c28] : memref<2x49xf32, #tpu.memory_space<smem>>
      %72 = vector.extract_strided_slice %70 {offsets = [0, 0, 0], sizes = [1, 16, 16], strides = [1, 1, 1]} : vector<2x16x16xf32> to vector<1x16x16xf32>
      %73 = vector.shape_cast %72 : vector<1x16x16xf32> to vector<16x16xf32>
      %74 = vector.broadcast %71 : f32 to vector<16x16xf32>
      %75 = arith.mulf %74, %73 : vector<16x16xf32>
      %76 = arith.addf %63, %75 : vector<16x16xf32>
      %c1_32 = arith.constant 1 : index
      %c28_33 = arith.constant 28 : index
      %77 = memref.load %arg3[%c1_32, %c28_33] : memref<2x49xf32, #tpu.memory_space<smem>>
      %78 = vector.extract_strided_slice %70 {offsets = [1, 0, 0], sizes = [1, 16, 16], strides = [1, 1, 1]} : vector<2x16x16xf32> to vector<1x16x16xf32>
      %79 = vector.shape_cast %78 : vector<1x16x16xf32> to vector<16x16xf32>
      %80 = vector.broadcast %77 : f32 to vector<16x16xf32>
      %81 = arith.mulf %80, %79 : vector<16x16xf32>
      %82 = arith.addf %69, %81 : vector<16x16xf32>
      %83 = vector.extract_strided_slice %17 {offsets = [0, 5, 0], sizes = [2, 16, 16], strides = [1, 1, 1]} : vector<2x22x16xf32> to vector<2x16x16xf32>
      %c0_34 = arith.constant 0 : index
      %c35 = arith.constant 35 : index
      %84 = memref.load %arg3[%c0_34, %c35] : memref<2x49xf32, #tpu.memory_space<smem>>
      %85 = vector.extract_strided_slice %83 {offsets = [0, 0, 0], sizes = [1, 16, 16], strides = [1, 1, 1]} : vector<2x16x16xf32> to vector<1x16x16xf32>
      %86 = vector.shape_cast %85 : vector<1x16x16xf32> to vector<16x16xf32>
      %87 = vector.broadcast %84 : f32 to vector<16x16xf32>
      %88 = arith.mulf %87, %86 : vector<16x16xf32>
      %89 = arith.addf %76, %88 : vector<16x16xf32>
      %c1_35 = arith.constant 1 : index
      %c35_36 = arith.constant 35 : index
      %90 = memref.load %arg3[%c1_35, %c35_36] : memref<2x49xf32, #tpu.memory_space<smem>>
      %91 = vector.extract_strided_slice %83 {offsets = [1, 0, 0], sizes = [1, 16, 16], strides = [1, 1, 1]} : vector<2x16x16xf32> to vector<1x16x16xf32>
      %92 = vector.shape_cast %91 : vector<1x16x16xf32> to vector<16x16xf32>
      %93 = vector.broadcast %90 : f32 to vector<16x16xf32>
      %94 = arith.mulf %93, %92 : vector<16x16xf32>
      %95 = arith.addf %82, %94 : vector<16x16xf32>
      %96 = vector.extract_strided_slice %17 {offsets = [0, 6, 0], sizes = [2, 16, 16], strides = [1, 1, 1]} : vector<2x22x16xf32> to vector<2x16x16xf32>
      %c0_37 = arith.constant 0 : index
      %c42 = arith.constant 42 : index
      %97 = memref.load %arg3[%c0_37, %c42] : memref<2x49xf32, #tpu.memory_space<smem>>
      %98 = vector.extract_strided_slice %96 {offsets = [0, 0, 0], sizes = [1, 16, 16], strides = [1, 1, 1]} : vector<2x16x16xf32> to vector<1x16x16xf32>
      %99 = vector.shape_cast %98 : vector<1x16x16xf32> to vector<16x16xf32>
      %100 = vector.broadcast %97 : f32 to vector<16x16xf32>
      %101 = arith.mulf %100, %99 : vector<16x16xf32>
      %102 = arith.addf %89, %101 : vector<16x16xf32>
      %c1_38 = arith.constant 1 : index
      %c42_39 = arith.constant 42 : index
      %103 = memref.load %arg3[%c1_38, %c42_39] : memref<2x49xf32, #tpu.memory_space<smem>>
      %104 = vector.extract_strided_slice %96 {offsets = [1, 0, 0], sizes = [1, 16, 16], strides = [1, 1, 1]} : vector<2x16x16xf32> to vector<1x16x16xf32>
      %105 = vector.shape_cast %104 : vector<1x16x16xf32> to vector<16x16xf32>
      %106 = vector.broadcast %103 : f32 to vector<16x16xf32>
      %107 = arith.mulf %106, %105 : vector<16x16xf32>
      %108 = arith.addf %95, %107 : vector<16x16xf32>
      %109 = vector.extract_strided_slice %11 {offsets = [0, 0, 1], sizes = [2, 22, 16], strides = [1, 1, 1]} : vector<2x22x22xf32> to vector<2x22x16xf32>
      %110 = vector.extract_strided_slice %109 {offsets = [0, 0, 0], sizes = [2, 16, 16], strides = [1, 1, 1]} : vector<2x22x16xf32> to vector<2x16x16xf32>
      %c0_40 = arith.constant 0 : index
      %c1_41 = arith.constant 1 : index
      %111 = memref.load %arg3[%c0_40, %c1_41] : memref<2x49xf32, #tpu.memory_space<smem>>
      %112 = vector.extract_strided_slice %110 {offsets = [0, 0, 0], sizes = [1, 16, 16], strides = [1, 1, 1]} : vector<2x16x16xf32> to vector<1x16x16xf32>
      %113 = vector.shape_cast %112 : vector<1x16x16xf32> to vector<16x16xf32>
      %114 = vector.broadcast %111 : f32 to vector<16x16xf32>
      %115 = arith.mulf %114, %113 : vector<16x16xf32>
      %116 = arith.addf %102, %115 : vector<16x16xf32>
      %c1_42 = arith.constant 1 : index
      %c1_43 = arith.constant 1 : index
      %117 = memref.load %arg3[%c1_42, %c1_43] : memref<2x49xf32, #tpu.memory_space<smem>>
      %118 = vector.extract_strided_slice %110 {offsets = [1, 0, 0], sizes = [1, 16, 16], strides = [1, 1, 1]} : vector<2x16x16xf32> to vector<1x16x16xf32>
      %119 = vector.shape_cast %118 : vector<1x16x16xf32> to vector<16x16xf32>
      %120 = vector.broadcast %117 : f32 to vector<16x16xf32>
      %121 = arith.mulf %120, %119 : vector<16x16xf32>
      %122 = arith.addf %108, %121 : vector<16x16xf32>
      %123 = vector.extract_strided_slice %109 {offsets = [0, 1, 0], sizes = [2, 16, 16], strides = [1, 1, 1]} : vector<2x22x16xf32> to vector<2x16x16xf32>
      %c0_44 = arith.constant 0 : index
      %c8 = arith.constant 8 : index
      %124 = memref.load %arg3[%c0_44, %c8] : memref<2x49xf32, #tpu.memory_space<smem>>
      %125 = vector.extract_strided_slice %123 {offsets = [0, 0, 0], sizes = [1, 16, 16], strides = [1, 1, 1]} : vector<2x16x16xf32> to vector<1x16x16xf32>
      %126 = vector.shape_cast %125 : vector<1x16x16xf32> to vector<16x16xf32>
      %127 = vector.broadcast %124 : f32 to vector<16x16xf32>
      %128 = arith.mulf %127, %126 : vector<16x16xf32>
      %129 = arith.addf %116, %128 : vector<16x16xf32>
      %c1_45 = arith.constant 1 : index
      %c8_46 = arith.constant 8 : index
      %130 = memref.load %arg3[%c1_45, %c8_46] : memref<2x49xf32, #tpu.memory_space<smem>>
      %131 = vector.extract_strided_slice %123 {offsets = [1, 0, 0], sizes = [1, 16, 16], strides = [1, 1, 1]} : vector<2x16x16xf32> to vector<1x16x16xf32>
      %132 = vector.shape_cast %131 : vector<1x16x16xf32> to vector<16x16xf32>
      %133 = vector.broadcast %130 : f32 to vector<16x16xf32>
      %134 = arith.mulf %133, %132 : vector<16x16xf32>
      %135 = arith.addf %122, %134 : vector<16x16xf32>
      %136 = vector.extract_strided_slice %109 {offsets = [0, 2, 0], sizes = [2, 16, 16], strides = [1, 1, 1]} : vector<2x22x16xf32> to vector<2x16x16xf32>
      %c0_47 = arith.constant 0 : index
      %c15 = arith.constant 15 : index
      %137 = memref.load %arg3[%c0_47, %c15] : memref<2x49xf32, #tpu.memory_space<smem>>
      %138 = vector.extract_strided_slice %136 {offsets = [0, 0, 0], sizes = [1, 16, 16], strides = [1, 1, 1]} : vector<2x16x16xf32> to vector<1x16x16xf32>
      %139 = vector.shape_cast %138 : vector<1x16x16xf32> to vector<16x16xf32>
      %140 = vector.broadcast %137 : f32 to vector<16x16xf32>
      %141 = arith.mulf %140, %139 : vector<16x16xf32>
      %142 = arith.addf %129, %141 : vector<16x16xf32>
      %c1_48 = arith.constant 1 : index
      %c15_49 = arith.constant 15 : index
      %143 = memref.load %arg3[%c1_48, %c15_49] : memref<2x49xf32, #tpu.memory_space<smem>>
      %144 = vector.extract_strided_slice %136 {offsets = [1, 0, 0], sizes = [1, 16, 16], strides = [1, 1, 1]} : vector<2x16x16xf32> to vector<1x16x16xf32>
      %145 = vector.shape_cast %144 : vector<1x16x16xf32> to vector<16x16xf32>
      %146 = vector.broadcast %143 : f32 to vector<16x16xf32>
      %147 = arith.mulf %146, %145 : vector<16x16xf32>
      %148 = arith.addf %135, %147 : vector<16x16xf32>
      %149 = vector.extract_strided_slice %109 {offsets = [0, 3, 0], sizes = [2, 16, 16], strides = [1, 1, 1]} : vector<2x22x16xf32> to vector<2x16x16xf32>
      %c0_50 = arith.constant 0 : index
      %c22 = arith.constant 22 : index
      %150 = memref.load %arg3[%c0_50, %c22] : memref<2x49xf32, #tpu.memory_space<smem>>
      %151 = vector.extract_strided_slice %149 {offsets = [0, 0, 0], sizes = [1, 16, 16], strides = [1, 1, 1]} : vector<2x16x16xf32> to vector<1x16x16xf32>
      %152 = vector.shape_cast %151 : vector<1x16x16xf32> to vector<16x16xf32>
      %153 = vector.broadcast %150 : f32 to vector<16x16xf32>
      %154 = arith.mulf %153, %152 : vector<16x16xf32>
      %155 = arith.addf %142, %154 : vector<16x16xf32>
      %c1_51 = arith.constant 1 : index
      %c22_52 = arith.constant 22 : index
      %156 = memref.load %arg3[%c1_51, %c22_52] : memref<2x49xf32, #tpu.memory_space<smem>>
      %157 = vector.extract_strided_slice %149 {offsets = [1, 0, 0], sizes = [1, 16, 16], strides = [1, 1, 1]} : vector<2x16x16xf32> to vector<1x16x16xf32>
      %158 = vector.shape_cast %157 : vector<1x16x16xf32> to vector<16x16xf32>
      %159 = vector.broadcast %156 : f32 to vector<16x16xf32>
      %160 = arith.mulf %159, %158 : vector<16x16xf32>
      %161 = arith.addf %148, %160 : vector<16x16xf32>
      %162 = vector.extract_strided_slice %109 {offsets = [0, 4, 0], sizes = [2, 16, 16], strides = [1, 1, 1]} : vector<2x22x16xf32> to vector<2x16x16xf32>
      %c0_53 = arith.constant 0 : index
      %c29 = arith.constant 29 : index
      %163 = memref.load %arg3[%c0_53, %c29] : memref<2x49xf32, #tpu.memory_space<smem>>
      %164 = vector.extract_strided_slice %162 {offsets = [0, 0, 0], sizes = [1, 16, 16], strides = [1, 1, 1]} : vector<2x16x16xf32> to vector<1x16x16xf32>
      %165 = vector.shape_cast %164 : vector<1x16x16xf32> to vector<16x16xf32>
      %166 = vector.broadcast %163 : f32 to vector<16x16xf32>
      %167 = arith.mulf %166, %165 : vector<16x16xf32>
      %168 = arith.addf %155, %167 : vector<16x16xf32>
      %c1_54 = arith.constant 1 : index
      %c29_55 = arith.constant 29 : index
      %169 = memref.load %arg3[%c1_54, %c29_55] : memref<2x49xf32, #tpu.memory_space<smem>>
      %170 = vector.extract_strided_slice %162 {offsets = [1, 0, 0], sizes = [1, 16, 16], strides = [1, 1, 1]} : vector<2x16x16xf32> to vector<1x16x16xf32>
      %171 = vector.shape_cast %170 : vector<1x16x16xf32> to vector<16x16xf32>
      %172 = vector.broadcast %169 : f32 to vector<16x16xf32>
      %173 = arith.mulf %172, %171 : vector<16x16xf32>
      %174 = arith.addf %161, %173 : vector<16x16xf32>
      %175 = vector.extract_strided_slice %109 {offsets = [0, 5, 0], sizes = [2, 16, 16], strides = [1, 1, 1]} : vector<2x22x16xf32> to vector<2x16x16xf32>
      %c0_56 = arith.constant 0 : index
      %c36 = arith.constant 36 : index
      %176 = memref.load %arg3[%c0_56, %c36] : memref<2x49xf32, #tpu.memory_space<smem>>
      %177 = vector.extract_strided_slice %175 {offsets = [0, 0, 0], sizes = [1, 16, 16], strides = [1, 1, 1]} : vector<2x16x16xf32> to vector<1x16x16xf32>
      %178 = vector.shape_cast %177 : vector<1x16x16xf32> to vector<16x16xf32>
      %179 = vector.broadcast %176 : f32 to vector<16x16xf32>
      %180 = arith.mulf %179, %178 : vector<16x16xf32>
      %181 = arith.addf %168, %180 : vector<16x16xf32>
      %c1_57 = arith.constant 1 : index
      %c36_58 = arith.constant 36 : index
      %182 = memref.load %arg3[%c1_57, %c36_58] : memref<2x49xf32, #tpu.memory_space<smem>>
      %183 = vector.extract_strided_slice %175 {offsets = [1, 0, 0], sizes = [1, 16, 16], strides = [1, 1, 1]} : vector<2x16x16xf32> to vector<1x16x16xf32>
      %184 = vector.shape_cast %183 : vector<1x16x16xf32> to vector<16x16xf32>
      %185 = vector.broadcast %182 : f32 to vector<16x16xf32>
      %186 = arith.mulf %185, %184 : vector<16x16xf32>
      %187 = arith.addf %174, %186 : vector<16x16xf32>
      %188 = vector.extract_strided_slice %109 {offsets = [0, 6, 0], sizes = [2, 16, 16], strides = [1, 1, 1]} : vector<2x22x16xf32> to vector<2x16x16xf32>
      %c0_59 = arith.constant 0 : index
      %c43 = arith.constant 43 : index
      %189 = memref.load %arg3[%c0_59, %c43] : memref<2x49xf32, #tpu.memory_space<smem>>
      %190 = vector.extract_strided_slice %188 {offsets = [0, 0, 0], sizes = [1, 16, 16], strides = [1, 1, 1]} : vector<2x16x16xf32> to vector<1x16x16xf32>
      %191 = vector.shape_cast %190 : vector<1x16x16xf32> to vector<16x16xf32>
      %192 = vector.broadcast %189 : f32 to vector<16x16xf32>
      %193 = arith.mulf %192, %191 : vector<16x16xf32>
      %194 = arith.addf %181, %193 : vector<16x16xf32>
      %c1_60 = arith.constant 1 : index
      %c43_61 = arith.constant 43 : index
      %195 = memref.load %arg3[%c1_60, %c43_61] : memref<2x49xf32, #tpu.memory_space<smem>>
      %196 = vector.extract_strided_slice %188 {offsets = [1, 0, 0], sizes = [1, 16, 16], strides = [1, 1, 1]} : vector<2x16x16xf32> to vector<1x16x16xf32>
      %197 = vector.shape_cast %196 : vector<1x16x16xf32> to vector<16x16xf32>
      %198 = vector.broadcast %195 : f32 to vector<16x16xf32>
      %199 = arith.mulf %198, %197 : vector<16x16xf32>
      %200 = arith.addf %187, %199 : vector<16x16xf32>
      %201 = vector.extract_strided_slice %11 {offsets = [0, 0, 2], sizes = [2, 22, 16], strides = [1, 1, 1]} : vector<2x22x22xf32> to vector<2x22x16xf32>
      %202 = vector.extract_strided_slice %201 {offsets = [0, 0, 0], sizes = [2, 16, 16], strides = [1, 1, 1]} : vector<2x22x16xf32> to vector<2x16x16xf32>
      %c0_62 = arith.constant 0 : index
      %c2 = arith.constant 2 : index
      %203 = memref.load %arg3[%c0_62, %c2] : memref<2x49xf32, #tpu.memory_space<smem>>
      %204 = vector.extract_strided_slice %202 {offsets = [0, 0, 0], sizes = [1, 16, 16], strides = [1, 1, 1]} : vector<2x16x16xf32> to vector<1x16x16xf32>
      %205 = vector.shape_cast %204 : vector<1x16x16xf32> to vector<16x16xf32>
      %206 = vector.broadcast %203 : f32 to vector<16x16xf32>
      %207 = arith.mulf %206, %205 : vector<16x16xf32>
      %208 = arith.addf %194, %207 : vector<16x16xf32>
      %c1_63 = arith.constant 1 : index
      %c2_64 = arith.constant 2 : index
      %209 = memref.load %arg3[%c1_63, %c2_64] : memref<2x49xf32, #tpu.memory_space<smem>>
      %210 = vector.extract_strided_slice %202 {offsets = [1, 0, 0], sizes = [1, 16, 16], strides = [1, 1, 1]} : vector<2x16x16xf32> to vector<1x16x16xf32>
      %211 = vector.shape_cast %210 : vector<1x16x16xf32> to vector<16x16xf32>
      %212 = vector.broadcast %209 : f32 to vector<16x16xf32>
      %213 = arith.mulf %212, %211 : vector<16x16xf32>
      %214 = arith.addf %200, %213 : vector<16x16xf32>
      %215 = vector.extract_strided_slice %201 {offsets = [0, 1, 0], sizes = [2, 16, 16], strides = [1, 1, 1]} : vector<2x22x16xf32> to vector<2x16x16xf32>
      %c0_65 = arith.constant 0 : index
      %c9 = arith.constant 9 : index
      %216 = memref.load %arg3[%c0_65, %c9] : memref<2x49xf32, #tpu.memory_space<smem>>
      %217 = vector.extract_strided_slice %215 {offsets = [0, 0, 0], sizes = [1, 16, 16], strides = [1, 1, 1]} : vector<2x16x16xf32> to vector<1x16x16xf32>
      %218 = vector.shape_cast %217 : vector<1x16x16xf32> to vector<16x16xf32>
      %219 = vector.broadcast %216 : f32 to vector<16x16xf32>
      %220 = arith.mulf %219, %218 : vector<16x16xf32>
      %221 = arith.addf %208, %220 : vector<16x16xf32>
      %c1_66 = arith.constant 1 : index
      %c9_67 = arith.constant 9 : index
      %222 = memref.load %arg3[%c1_66, %c9_67] : memref<2x49xf32, #tpu.memory_space<smem>>
      %223 = vector.extract_strided_slice %215 {offsets = [1, 0, 0], sizes = [1, 16, 16], strides = [1, 1, 1]} : vector<2x16x16xf32> to vector<1x16x16xf32>
      %224 = vector.shape_cast %223 : vector<1x16x16xf32> to vector<16x16xf32>
      %225 = vector.broadcast %222 : f32 to vector<16x16xf32>
      %226 = arith.mulf %225, %224 : vector<16x16xf32>
      %227 = arith.addf %214, %226 : vector<16x16xf32>
      %228 = vector.extract_strided_slice %201 {offsets = [0, 2, 0], sizes = [2, 16, 16], strides = [1, 1, 1]} : vector<2x22x16xf32> to vector<2x16x16xf32>
      %c0_68 = arith.constant 0 : index
      %c16 = arith.constant 16 : index
      %229 = memref.load %arg3[%c0_68, %c16] : memref<2x49xf32, #tpu.memory_space<smem>>
      %230 = vector.extract_strided_slice %228 {offsets = [0, 0, 0], sizes = [1, 16, 16], strides = [1, 1, 1]} : vector<2x16x16xf32> to vector<1x16x16xf32>
      %231 = vector.shape_cast %230 : vector<1x16x16xf32> to vector<16x16xf32>
      %232 = vector.broadcast %229 : f32 to vector<16x16xf32>
      %233 = arith.mulf %232, %231 : vector<16x16xf32>
      %234 = arith.addf %221, %233 : vector<16x16xf32>
      %c1_69 = arith.constant 1 : index
      %c16_70 = arith.constant 16 : index
      %235 = memref.load %arg3[%c1_69, %c16_70] : memref<2x49xf32, #tpu.memory_space<smem>>
      %236 = vector.extract_strided_slice %228 {offsets = [1, 0, 0], sizes = [1, 16, 16], strides = [1, 1, 1]} : vector<2x16x16xf32> to vector<1x16x16xf32>
      %237 = vector.shape_cast %236 : vector<1x16x16xf32> to vector<16x16xf32>
      %238 = vector.broadcast %235 : f32 to vector<16x16xf32>
      %239 = arith.mulf %238, %237 : vector<16x16xf32>
      %240 = arith.addf %227, %239 : vector<16x16xf32>
      %241 = arith.addf %14, %228 : vector<2x16x16xf32>
      %242 = arith.addf %15, %228 : vector<2x16x16xf32>
      %243 = vector.extract_strided_slice %201 {offsets = [0, 3, 0], sizes = [2, 16, 16], strides = [1, 1, 1]} : vector<2x22x16xf32> to vector<2x16x16xf32>
      %c0_71 = arith.constant 0 : index
      %c23 = arith.constant 23 : index
      %244 = memref.load %arg3[%c0_71, %c23] : memref<2x49xf32, #tpu.memory_space<smem>>
      %245 = vector.extract_strided_slice %243 {offsets = [0, 0, 0], sizes = [1, 16, 16], strides = [1, 1, 1]} : vector<2x16x16xf32> to vector<1x16x16xf32>
      %246 = vector.shape_cast %245 : vector<1x16x16xf32> to vector<16x16xf32>
      %247 = vector.broadcast %244 : f32 to vector<16x16xf32>
      %248 = arith.mulf %247, %246 : vector<16x16xf32>
      %249 = arith.addf %234, %248 : vector<16x16xf32>
      %c1_72 = arith.constant 1 : index
      %c23_73 = arith.constant 23 : index
      %250 = memref.load %arg3[%c1_72, %c23_73] : memref<2x49xf32, #tpu.memory_space<smem>>
      %251 = vector.extract_strided_slice %243 {offsets = [1, 0, 0], sizes = [1, 16, 16], strides = [1, 1, 1]} : vector<2x16x16xf32> to vector<1x16x16xf32>
      %252 = vector.shape_cast %251 : vector<1x16x16xf32> to vector<16x16xf32>
      %253 = vector.broadcast %250 : f32 to vector<16x16xf32>
      %254 = arith.mulf %253, %252 : vector<16x16xf32>
      %255 = arith.addf %240, %254 : vector<16x16xf32>
      %cst_74 = arith.constant 2.000000e+00 : f32
      %256 = vector.broadcast %cst_74 : f32 to vector<2x16x16xf32>
      %257 = arith.mulf %256, %243 : vector<2x16x16xf32>
      %258 = arith.addf %241, %257 : vector<2x16x16xf32>
      %259 = arith.addf %16, %243 : vector<2x16x16xf32>
      %260 = vector.extract_strided_slice %201 {offsets = [0, 4, 0], sizes = [2, 16, 16], strides = [1, 1, 1]} : vector<2x22x16xf32> to vector<2x16x16xf32>
      %c0_75 = arith.constant 0 : index
      %c30 = arith.constant 30 : index
      %261 = memref.load %arg3[%c0_75, %c30] : memref<2x49xf32, #tpu.memory_space<smem>>
      %262 = vector.extract_strided_slice %260 {offsets = [0, 0, 0], sizes = [1, 16, 16], strides = [1, 1, 1]} : vector<2x16x16xf32> to vector<1x16x16xf32>
      %263 = vector.shape_cast %262 : vector<1x16x16xf32> to vector<16x16xf32>
      %264 = vector.broadcast %261 : f32 to vector<16x16xf32>
      %265 = arith.mulf %264, %263 : vector<16x16xf32>
      %266 = arith.addf %249, %265 : vector<16x16xf32>
      %c1_76 = arith.constant 1 : index
      %c30_77 = arith.constant 30 : index
      %267 = memref.load %arg3[%c1_76, %c30_77] : memref<2x49xf32, #tpu.memory_space<smem>>
      %268 = vector.extract_strided_slice %260 {offsets = [1, 0, 0], sizes = [1, 16, 16], strides = [1, 1, 1]} : vector<2x16x16xf32> to vector<1x16x16xf32>
      %269 = vector.shape_cast %268 : vector<1x16x16xf32> to vector<16x16xf32>
      %270 = vector.broadcast %267 : f32 to vector<16x16xf32>
      %271 = arith.mulf %270, %269 : vector<16x16xf32>
      %272 = arith.addf %255, %271 : vector<16x16xf32>
      %273 = arith.addf %258, %260 : vector<2x16x16xf32>
      %274 = arith.subf %242, %260 : vector<2x16x16xf32>
      %275 = vector.extract_strided_slice %201 {offsets = [0, 5, 0], sizes = [2, 16, 16], strides = [1, 1, 1]} : vector<2x22x16xf32> to vector<2x16x16xf32>
      %c0_78 = arith.constant 0 : index
      %c37 = arith.constant 37 : index
      %276 = memref.load %arg3[%c0_78, %c37] : memref<2x49xf32, #tpu.memory_space<smem>>
      %277 = vector.extract_strided_slice %275 {offsets = [0, 0, 0], sizes = [1, 16, 16], strides = [1, 1, 1]} : vector<2x16x16xf32> to vector<1x16x16xf32>
      %278 = vector.shape_cast %277 : vector<1x16x16xf32> to vector<16x16xf32>
      %279 = vector.broadcast %276 : f32 to vector<16x16xf32>
      %280 = arith.mulf %279, %278 : vector<16x16xf32>
      %281 = arith.addf %266, %280 : vector<16x16xf32>
      %c1_79 = arith.constant 1 : index
      %c37_80 = arith.constant 37 : index
      %282 = memref.load %arg3[%c1_79, %c37_80] : memref<2x49xf32, #tpu.memory_space<smem>>
      %283 = vector.extract_strided_slice %275 {offsets = [1, 0, 0], sizes = [1, 16, 16], strides = [1, 1, 1]} : vector<2x16x16xf32> to vector<1x16x16xf32>
      %284 = vector.shape_cast %283 : vector<1x16x16xf32> to vector<16x16xf32>
      %285 = vector.broadcast %282 : f32 to vector<16x16xf32>
      %286 = arith.mulf %285, %284 : vector<16x16xf32>
      %287 = arith.addf %272, %286 : vector<16x16xf32>
      %288 = vector.extract_strided_slice %201 {offsets = [0, 6, 0], sizes = [2, 16, 16], strides = [1, 1, 1]} : vector<2x22x16xf32> to vector<2x16x16xf32>
      %c0_81 = arith.constant 0 : index
      %c44 = arith.constant 44 : index
      %289 = memref.load %arg3[%c0_81, %c44] : memref<2x49xf32, #tpu.memory_space<smem>>
      %290 = vector.extract_strided_slice %288 {offsets = [0, 0, 0], sizes = [1, 16, 16], strides = [1, 1, 1]} : vector<2x16x16xf32> to vector<1x16x16xf32>
      %291 = vector.shape_cast %290 : vector<1x16x16xf32> to vector<16x16xf32>
      %292 = vector.broadcast %289 : f32 to vector<16x16xf32>
      %293 = arith.mulf %292, %291 : vector<16x16xf32>
      %294 = arith.addf %281, %293 : vector<16x16xf32>
      %c1_82 = arith.constant 1 : index
      %c44_83 = arith.constant 44 : index
      %295 = memref.load %arg3[%c1_82, %c44_83] : memref<2x49xf32, #tpu.memory_space<smem>>
      %296 = vector.extract_strided_slice %288 {offsets = [1, 0, 0], sizes = [1, 16, 16], strides = [1, 1, 1]} : vector<2x16x16xf32> to vector<1x16x16xf32>
      %297 = vector.shape_cast %296 : vector<1x16x16xf32> to vector<16x16xf32>
      %298 = vector.broadcast %295 : f32 to vector<16x16xf32>
      %299 = arith.mulf %298, %297 : vector<16x16xf32>
      %300 = arith.addf %287, %299 : vector<16x16xf32>
      %301 = vector.extract_strided_slice %11 {offsets = [0, 0, 3], sizes = [2, 22, 16], strides = [1, 1, 1]} : vector<2x22x22xf32> to vector<2x22x16xf32>
      %302 = vector.extract_strided_slice %301 {offsets = [0, 0, 0], sizes = [2, 16, 16], strides = [1, 1, 1]} : vector<2x22x16xf32> to vector<2x16x16xf32>
      %c0_84 = arith.constant 0 : index
      %c3_85 = arith.constant 3 : index
      %303 = memref.load %arg3[%c0_84, %c3_85] : memref<2x49xf32, #tpu.memory_space<smem>>
      %304 = vector.extract_strided_slice %302 {offsets = [0, 0, 0], sizes = [1, 16, 16], strides = [1, 1, 1]} : vector<2x16x16xf32> to vector<1x16x16xf32>
      %305 = vector.shape_cast %304 : vector<1x16x16xf32> to vector<16x16xf32>
      %306 = vector.broadcast %303 : f32 to vector<16x16xf32>
      %307 = arith.mulf %306, %305 : vector<16x16xf32>
      %308 = arith.addf %294, %307 : vector<16x16xf32>
      %c1_86 = arith.constant 1 : index
      %c3_87 = arith.constant 3 : index
      %309 = memref.load %arg3[%c1_86, %c3_87] : memref<2x49xf32, #tpu.memory_space<smem>>
      %310 = vector.extract_strided_slice %302 {offsets = [1, 0, 0], sizes = [1, 16, 16], strides = [1, 1, 1]} : vector<2x16x16xf32> to vector<1x16x16xf32>
      %311 = vector.shape_cast %310 : vector<1x16x16xf32> to vector<16x16xf32>
      %312 = vector.broadcast %309 : f32 to vector<16x16xf32>
      %313 = arith.mulf %312, %311 : vector<16x16xf32>
      %314 = arith.addf %300, %313 : vector<16x16xf32>
      %315 = vector.extract_strided_slice %301 {offsets = [0, 1, 0], sizes = [2, 16, 16], strides = [1, 1, 1]} : vector<2x22x16xf32> to vector<2x16x16xf32>
      %c0_88 = arith.constant 0 : index
      %c10 = arith.constant 10 : index
      %316 = memref.load %arg3[%c0_88, %c10] : memref<2x49xf32, #tpu.memory_space<smem>>
      %317 = vector.extract_strided_slice %315 {offsets = [0, 0, 0], sizes = [1, 16, 16], strides = [1, 1, 1]} : vector<2x16x16xf32> to vector<1x16x16xf32>
      %318 = vector.shape_cast %317 : vector<1x16x16xf32> to vector<16x16xf32>
      %319 = vector.broadcast %316 : f32 to vector<16x16xf32>
      %320 = arith.mulf %319, %318 : vector<16x16xf32>
      %321 = arith.addf %308, %320 : vector<16x16xf32>
      %c1_89 = arith.constant 1 : index
      %c10_90 = arith.constant 10 : index
      %322 = memref.load %arg3[%c1_89, %c10_90] : memref<2x49xf32, #tpu.memory_space<smem>>
      %323 = vector.extract_strided_slice %315 {offsets = [1, 0, 0], sizes = [1, 16, 16], strides = [1, 1, 1]} : vector<2x16x16xf32> to vector<1x16x16xf32>
      %324 = vector.shape_cast %323 : vector<1x16x16xf32> to vector<16x16xf32>
      %325 = vector.broadcast %322 : f32 to vector<16x16xf32>
      %326 = arith.mulf %325, %324 : vector<16x16xf32>
      %327 = arith.addf %314, %326 : vector<16x16xf32>
      %328 = vector.extract_strided_slice %301 {offsets = [0, 2, 0], sizes = [2, 16, 16], strides = [1, 1, 1]} : vector<2x22x16xf32> to vector<2x16x16xf32>
      %c0_91 = arith.constant 0 : index
      %c17 = arith.constant 17 : index
      %329 = memref.load %arg3[%c0_91, %c17] : memref<2x49xf32, #tpu.memory_space<smem>>
      %330 = vector.extract_strided_slice %328 {offsets = [0, 0, 0], sizes = [1, 16, 16], strides = [1, 1, 1]} : vector<2x16x16xf32> to vector<1x16x16xf32>
      %331 = vector.shape_cast %330 : vector<1x16x16xf32> to vector<16x16xf32>
      %332 = vector.broadcast %329 : f32 to vector<16x16xf32>
      %333 = arith.mulf %332, %331 : vector<16x16xf32>
      %334 = arith.addf %321, %333 : vector<16x16xf32>
      %c1_92 = arith.constant 1 : index
      %c17_93 = arith.constant 17 : index
      %335 = memref.load %arg3[%c1_92, %c17_93] : memref<2x49xf32, #tpu.memory_space<smem>>
      %336 = vector.extract_strided_slice %328 {offsets = [1, 0, 0], sizes = [1, 16, 16], strides = [1, 1, 1]} : vector<2x16x16xf32> to vector<1x16x16xf32>
      %337 = vector.shape_cast %336 : vector<1x16x16xf32> to vector<16x16xf32>
      %338 = vector.broadcast %335 : f32 to vector<16x16xf32>
      %339 = arith.mulf %338, %337 : vector<16x16xf32>
      %340 = arith.addf %327, %339 : vector<16x16xf32>
      %cst_94 = arith.constant 2.000000e+00 : f32
      %341 = vector.broadcast %cst_94 : f32 to vector<2x16x16xf32>
      %342 = arith.mulf %341, %328 : vector<2x16x16xf32>
      %343 = arith.addf %274, %342 : vector<2x16x16xf32>
      %344 = arith.addf %259, %328 : vector<2x16x16xf32>
      %345 = vector.extract_strided_slice %301 {offsets = [0, 3, 0], sizes = [2, 16, 16], strides = [1, 1, 1]} : vector<2x22x16xf32> to vector<2x16x16xf32>
      %c0_95 = arith.constant 0 : index
      %c24 = arith.constant 24 : index
      %346 = memref.load %arg3[%c0_95, %c24] : memref<2x49xf32, #tpu.memory_space<smem>>
      %347 = vector.extract_strided_slice %345 {offsets = [0, 0, 0], sizes = [1, 16, 16], strides = [1, 1, 1]} : vector<2x16x16xf32> to vector<1x16x16xf32>
      %348 = vector.shape_cast %347 : vector<1x16x16xf32> to vector<16x16xf32>
      %349 = vector.broadcast %346 : f32 to vector<16x16xf32>
      %350 = arith.mulf %349, %348 : vector<16x16xf32>
      %351 = arith.addf %334, %350 : vector<16x16xf32>
      %c1_96 = arith.constant 1 : index
      %c24_97 = arith.constant 24 : index
      %352 = memref.load %arg3[%c1_96, %c24_97] : memref<2x49xf32, #tpu.memory_space<smem>>
      %353 = vector.extract_strided_slice %345 {offsets = [1, 0, 0], sizes = [1, 16, 16], strides = [1, 1, 1]} : vector<2x16x16xf32> to vector<1x16x16xf32>
      %354 = vector.shape_cast %353 : vector<1x16x16xf32> to vector<16x16xf32>
      %355 = vector.broadcast %352 : f32 to vector<16x16xf32>
      %356 = arith.mulf %355, %354 : vector<16x16xf32>
      %357 = arith.addf %340, %356 : vector<16x16xf32>
      %cst_98 = arith.constant -4.000000e+00 : f32
      %358 = vector.broadcast %cst_98 : f32 to vector<2x16x16xf32>
      %359 = arith.mulf %358, %345 : vector<2x16x16xf32>
      %360 = arith.addf %344, %359 : vector<2x16x16xf32>
      %361 = vector.extract_strided_slice %301 {offsets = [0, 4, 0], sizes = [2, 16, 16], strides = [1, 1, 1]} : vector<2x22x16xf32> to vector<2x16x16xf32>
      %c0_99 = arith.constant 0 : index
      %c31 = arith.constant 31 : index
      %362 = memref.load %arg3[%c0_99, %c31] : memref<2x49xf32, #tpu.memory_space<smem>>
      %363 = vector.extract_strided_slice %361 {offsets = [0, 0, 0], sizes = [1, 16, 16], strides = [1, 1, 1]} : vector<2x16x16xf32> to vector<1x16x16xf32>
      %364 = vector.shape_cast %363 : vector<1x16x16xf32> to vector<16x16xf32>
      %365 = vector.broadcast %362 : f32 to vector<16x16xf32>
      %366 = arith.mulf %365, %364 : vector<16x16xf32>
      %367 = arith.addf %351, %366 : vector<16x16xf32>
      %c1_100 = arith.constant 1 : index
      %c31_101 = arith.constant 31 : index
      %368 = memref.load %arg3[%c1_100, %c31_101] : memref<2x49xf32, #tpu.memory_space<smem>>
      %369 = vector.extract_strided_slice %361 {offsets = [1, 0, 0], sizes = [1, 16, 16], strides = [1, 1, 1]} : vector<2x16x16xf32> to vector<1x16x16xf32>
      %370 = vector.shape_cast %369 : vector<1x16x16xf32> to vector<16x16xf32>
      %371 = vector.broadcast %368 : f32 to vector<16x16xf32>
      %372 = arith.mulf %371, %370 : vector<16x16xf32>
      %373 = arith.addf %357, %372 : vector<16x16xf32>
      %cst_102 = arith.constant -2.000000e+00 : f32
      %374 = vector.broadcast %cst_102 : f32 to vector<2x16x16xf32>
      %375 = arith.mulf %374, %361 : vector<2x16x16xf32>
      %376 = arith.addf %343, %375 : vector<2x16x16xf32>
      %377 = arith.addf %360, %361 : vector<2x16x16xf32>
      %378 = vector.extract_strided_slice %301 {offsets = [0, 5, 0], sizes = [2, 16, 16], strides = [1, 1, 1]} : vector<2x22x16xf32> to vector<2x16x16xf32>
      %c0_103 = arith.constant 0 : index
      %c38 = arith.constant 38 : index
      %379 = memref.load %arg3[%c0_103, %c38] : memref<2x49xf32, #tpu.memory_space<smem>>
      %380 = vector.extract_strided_slice %378 {offsets = [0, 0, 0], sizes = [1, 16, 16], strides = [1, 1, 1]} : vector<2x16x16xf32> to vector<1x16x16xf32>
      %381 = vector.shape_cast %380 : vector<1x16x16xf32> to vector<16x16xf32>
      %382 = vector.broadcast %379 : f32 to vector<16x16xf32>
      %383 = arith.mulf %382, %381 : vector<16x16xf32>
      %384 = arith.addf %367, %383 : vector<16x16xf32>
      %c1_104 = arith.constant 1 : index
      %c38_105 = arith.constant 38 : index
      %385 = memref.load %arg3[%c1_104, %c38_105] : memref<2x49xf32, #tpu.memory_space<smem>>
      %386 = vector.extract_strided_slice %378 {offsets = [1, 0, 0], sizes = [1, 16, 16], strides = [1, 1, 1]} : vector<2x16x16xf32> to vector<1x16x16xf32>
      %387 = vector.shape_cast %386 : vector<1x16x16xf32> to vector<16x16xf32>
      %388 = vector.broadcast %385 : f32 to vector<16x16xf32>
      %389 = arith.mulf %388, %387 : vector<16x16xf32>
      %390 = arith.addf %373, %389 : vector<16x16xf32>
      %391 = vector.extract_strided_slice %301 {offsets = [0, 6, 0], sizes = [2, 16, 16], strides = [1, 1, 1]} : vector<2x22x16xf32> to vector<2x16x16xf32>
      %c0_106 = arith.constant 0 : index
      %c45 = arith.constant 45 : index
      %392 = memref.load %arg3[%c0_106, %c45] : memref<2x49xf32, #tpu.memory_space<smem>>
      %393 = vector.extract_strided_slice %391 {offsets = [0, 0, 0], sizes = [1, 16, 16], strides = [1, 1, 1]} : vector<2x16x16xf32> to vector<1x16x16xf32>
      %394 = vector.shape_cast %393 : vector<1x16x16xf32> to vector<16x16xf32>
      %395 = vector.broadcast %392 : f32 to vector<16x16xf32>
      %396 = arith.mulf %395, %394 : vector<16x16xf32>
      %397 = arith.addf %384, %396 : vector<16x16xf32>
      %c1_107 = arith.constant 1 : index
      %c45_108 = arith.constant 45 : index
      %398 = memref.load %arg3[%c1_107, %c45_108] : memref<2x49xf32, #tpu.memory_space<smem>>
      %399 = vector.extract_strided_slice %391 {offsets = [1, 0, 0], sizes = [1, 16, 16], strides = [1, 1, 1]} : vector<2x16x16xf32> to vector<1x16x16xf32>
      %400 = vector.shape_cast %399 : vector<1x16x16xf32> to vector<16x16xf32>
      %401 = vector.broadcast %398 : f32 to vector<16x16xf32>
      %402 = arith.mulf %401, %400 : vector<16x16xf32>
      %403 = arith.addf %390, %402 : vector<16x16xf32>
      %404 = vector.extract_strided_slice %11 {offsets = [0, 0, 4], sizes = [2, 22, 16], strides = [1, 1, 1]} : vector<2x22x22xf32> to vector<2x22x16xf32>
      %405 = vector.extract_strided_slice %404 {offsets = [0, 0, 0], sizes = [2, 16, 16], strides = [1, 1, 1]} : vector<2x22x16xf32> to vector<2x16x16xf32>
      %c0_109 = arith.constant 0 : index
      %c4 = arith.constant 4 : index
      %406 = memref.load %arg3[%c0_109, %c4] : memref<2x49xf32, #tpu.memory_space<smem>>
      %407 = vector.extract_strided_slice %405 {offsets = [0, 0, 0], sizes = [1, 16, 16], strides = [1, 1, 1]} : vector<2x16x16xf32> to vector<1x16x16xf32>
      %408 = vector.shape_cast %407 : vector<1x16x16xf32> to vector<16x16xf32>
      %409 = vector.broadcast %406 : f32 to vector<16x16xf32>
      %410 = arith.mulf %409, %408 : vector<16x16xf32>
      %411 = arith.addf %397, %410 : vector<16x16xf32>
      %c1_110 = arith.constant 1 : index
      %c4_111 = arith.constant 4 : index
      %412 = memref.load %arg3[%c1_110, %c4_111] : memref<2x49xf32, #tpu.memory_space<smem>>
      %413 = vector.extract_strided_slice %405 {offsets = [1, 0, 0], sizes = [1, 16, 16], strides = [1, 1, 1]} : vector<2x16x16xf32> to vector<1x16x16xf32>
      %414 = vector.shape_cast %413 : vector<1x16x16xf32> to vector<16x16xf32>
      %415 = vector.broadcast %412 : f32 to vector<16x16xf32>
      %416 = arith.mulf %415, %414 : vector<16x16xf32>
      %417 = arith.addf %403, %416 : vector<16x16xf32>
      %418 = vector.extract_strided_slice %404 {offsets = [0, 1, 0], sizes = [2, 16, 16], strides = [1, 1, 1]} : vector<2x22x16xf32> to vector<2x16x16xf32>
      %c0_112 = arith.constant 0 : index
      %c11 = arith.constant 11 : index
      %419 = memref.load %arg3[%c0_112, %c11] : memref<2x49xf32, #tpu.memory_space<smem>>
      %420 = vector.extract_strided_slice %418 {offsets = [0, 0, 0], sizes = [1, 16, 16], strides = [1, 1, 1]} : vector<2x16x16xf32> to vector<1x16x16xf32>
      %421 = vector.shape_cast %420 : vector<1x16x16xf32> to vector<16x16xf32>
      %422 = vector.broadcast %419 : f32 to vector<16x16xf32>
      %423 = arith.mulf %422, %421 : vector<16x16xf32>
      %424 = arith.addf %411, %423 : vector<16x16xf32>
      %c1_113 = arith.constant 1 : index
      %c11_114 = arith.constant 11 : index
      %425 = memref.load %arg3[%c1_113, %c11_114] : memref<2x49xf32, #tpu.memory_space<smem>>
      %426 = vector.extract_strided_slice %418 {offsets = [1, 0, 0], sizes = [1, 16, 16], strides = [1, 1, 1]} : vector<2x16x16xf32> to vector<1x16x16xf32>
      %427 = vector.shape_cast %426 : vector<1x16x16xf32> to vector<16x16xf32>
      %428 = vector.broadcast %425 : f32 to vector<16x16xf32>
      %429 = arith.mulf %428, %427 : vector<16x16xf32>
      %430 = arith.addf %417, %429 : vector<16x16xf32>
      %431 = vector.extract_strided_slice %404 {offsets = [0, 2, 0], sizes = [2, 16, 16], strides = [1, 1, 1]} : vector<2x22x16xf32> to vector<2x16x16xf32>
      %c0_115 = arith.constant 0 : index
      %c18 = arith.constant 18 : index
      %432 = memref.load %arg3[%c0_115, %c18] : memref<2x49xf32, #tpu.memory_space<smem>>
      %433 = vector.extract_strided_slice %431 {offsets = [0, 0, 0], sizes = [1, 16, 16], strides = [1, 1, 1]} : vector<2x16x16xf32> to vector<1x16x16xf32>
      %434 = vector.shape_cast %433 : vector<1x16x16xf32> to vector<16x16xf32>
      %435 = vector.broadcast %432 : f32 to vector<16x16xf32>
      %436 = arith.mulf %435, %434 : vector<16x16xf32>
      %437 = arith.addf %424, %436 : vector<16x16xf32>
      %c1_116 = arith.constant 1 : index
      %c18_117 = arith.constant 18 : index
      %438 = memref.load %arg3[%c1_116, %c18_117] : memref<2x49xf32, #tpu.memory_space<smem>>
      %439 = vector.extract_strided_slice %431 {offsets = [1, 0, 0], sizes = [1, 16, 16], strides = [1, 1, 1]} : vector<2x16x16xf32> to vector<1x16x16xf32>
      %440 = vector.shape_cast %439 : vector<1x16x16xf32> to vector<16x16xf32>
      %441 = vector.broadcast %438 : f32 to vector<16x16xf32>
      %442 = arith.mulf %441, %440 : vector<16x16xf32>
      %443 = arith.addf %430, %442 : vector<16x16xf32>
      %444 = arith.subf %273, %431 : vector<2x16x16xf32>
      %445 = arith.addf %376, %431 : vector<2x16x16xf32>
      %446 = vector.extract_strided_slice %404 {offsets = [0, 3, 0], sizes = [2, 16, 16], strides = [1, 1, 1]} : vector<2x22x16xf32> to vector<2x16x16xf32>
      %c0_118 = arith.constant 0 : index
      %c25 = arith.constant 25 : index
      %447 = memref.load %arg3[%c0_118, %c25] : memref<2x49xf32, #tpu.memory_space<smem>>
      %448 = vector.extract_strided_slice %446 {offsets = [0, 0, 0], sizes = [1, 16, 16], strides = [1, 1, 1]} : vector<2x16x16xf32> to vector<1x16x16xf32>
      %449 = vector.shape_cast %448 : vector<1x16x16xf32> to vector<16x16xf32>
      %450 = vector.broadcast %447 : f32 to vector<16x16xf32>
      %451 = arith.mulf %450, %449 : vector<16x16xf32>
      %452 = arith.addf %437, %451 : vector<16x16xf32>
      %c1_119 = arith.constant 1 : index
      %c25_120 = arith.constant 25 : index
      %453 = memref.load %arg3[%c1_119, %c25_120] : memref<2x49xf32, #tpu.memory_space<smem>>
      %454 = vector.extract_strided_slice %446 {offsets = [1, 0, 0], sizes = [1, 16, 16], strides = [1, 1, 1]} : vector<2x16x16xf32> to vector<1x16x16xf32>
      %455 = vector.shape_cast %454 : vector<1x16x16xf32> to vector<16x16xf32>
      %456 = vector.broadcast %453 : f32 to vector<16x16xf32>
      %457 = arith.mulf %456, %455 : vector<16x16xf32>
      %458 = arith.addf %443, %457 : vector<16x16xf32>
      %cst_121 = arith.constant -2.000000e+00 : f32
      %459 = vector.broadcast %cst_121 : f32 to vector<2x16x16xf32>
      %460 = arith.mulf %459, %446 : vector<2x16x16xf32>
      %461 = arith.addf %444, %460 : vector<2x16x16xf32>
      %462 = arith.addf %377, %446 : vector<2x16x16xf32>
      %463 = vector.extract_strided_slice %404 {offsets = [0, 4, 0], sizes = [2, 16, 16], strides = [1, 1, 1]} : vector<2x22x16xf32> to vector<2x16x16xf32>
      %c0_122 = arith.constant 0 : index
      %c32 = arith.constant 32 : index
      %464 = memref.load %arg3[%c0_122, %c32] : memref<2x49xf32, #tpu.memory_space<smem>>
      %465 = vector.extract_strided_slice %463 {offsets = [0, 0, 0], sizes = [1, 16, 16], strides = [1, 1, 1]} : vector<2x16x16xf32> to vector<1x16x16xf32>
      %466 = vector.shape_cast %465 : vector<1x16x16xf32> to vector<16x16xf32>
      %467 = vector.broadcast %464 : f32 to vector<16x16xf32>
      %468 = arith.mulf %467, %466 : vector<16x16xf32>
      %469 = arith.addf %452, %468 : vector<16x16xf32>
      %c1_123 = arith.constant 1 : index
      %c32_124 = arith.constant 32 : index
      %470 = memref.load %arg3[%c1_123, %c32_124] : memref<2x49xf32, #tpu.memory_space<smem>>
      %471 = vector.extract_strided_slice %463 {offsets = [1, 0, 0], sizes = [1, 16, 16], strides = [1, 1, 1]} : vector<2x16x16xf32> to vector<1x16x16xf32>
      %472 = vector.shape_cast %471 : vector<1x16x16xf32> to vector<16x16xf32>
      %473 = vector.broadcast %470 : f32 to vector<16x16xf32>
      %474 = arith.mulf %473, %472 : vector<16x16xf32>
      %475 = arith.addf %458, %474 : vector<16x16xf32>
      %476 = arith.subf %461, %463 : vector<2x16x16xf32>
      %477 = arith.subf %445, %463 : vector<2x16x16xf32>
      %478 = vector.extract_strided_slice %404 {offsets = [0, 5, 0], sizes = [2, 16, 16], strides = [1, 1, 1]} : vector<2x22x16xf32> to vector<2x16x16xf32>
      %c0_125 = arith.constant 0 : index
      %c39 = arith.constant 39 : index
      %479 = memref.load %arg3[%c0_125, %c39] : memref<2x49xf32, #tpu.memory_space<smem>>
      %480 = vector.extract_strided_slice %478 {offsets = [0, 0, 0], sizes = [1, 16, 16], strides = [1, 1, 1]} : vector<2x16x16xf32> to vector<1x16x16xf32>
      %481 = vector.shape_cast %480 : vector<1x16x16xf32> to vector<16x16xf32>
      %482 = vector.broadcast %479 : f32 to vector<16x16xf32>
      %483 = arith.mulf %482, %481 : vector<16x16xf32>
      %484 = arith.addf %469, %483 : vector<16x16xf32>
      %c1_126 = arith.constant 1 : index
      %c39_127 = arith.constant 39 : index
      %485 = memref.load %arg3[%c1_126, %c39_127] : memref<2x49xf32, #tpu.memory_space<smem>>
      %486 = vector.extract_strided_slice %478 {offsets = [1, 0, 0], sizes = [1, 16, 16], strides = [1, 1, 1]} : vector<2x16x16xf32> to vector<1x16x16xf32>
      %487 = vector.shape_cast %486 : vector<1x16x16xf32> to vector<16x16xf32>
      %488 = vector.broadcast %485 : f32 to vector<16x16xf32>
      %489 = arith.mulf %488, %487 : vector<16x16xf32>
      %490 = arith.addf %475, %489 : vector<16x16xf32>
      %491 = vector.extract_strided_slice %404 {offsets = [0, 6, 0], sizes = [2, 16, 16], strides = [1, 1, 1]} : vector<2x22x16xf32> to vector<2x16x16xf32>
      %c0_128 = arith.constant 0 : index
      %c46 = arith.constant 46 : index
      %492 = memref.load %arg3[%c0_128, %c46] : memref<2x49xf32, #tpu.memory_space<smem>>
      %493 = vector.extract_strided_slice %491 {offsets = [0, 0, 0], sizes = [1, 16, 16], strides = [1, 1, 1]} : vector<2x16x16xf32> to vector<1x16x16xf32>
      %494 = vector.shape_cast %493 : vector<1x16x16xf32> to vector<16x16xf32>
      %495 = vector.broadcast %492 : f32 to vector<16x16xf32>
      %496 = arith.mulf %495, %494 : vector<16x16xf32>
      %497 = arith.addf %484, %496 : vector<16x16xf32>
      %c1_129 = arith.constant 1 : index
      %c46_130 = arith.constant 46 : index
      %498 = memref.load %arg3[%c1_129, %c46_130] : memref<2x49xf32, #tpu.memory_space<smem>>
      %499 = vector.extract_strided_slice %491 {offsets = [1, 0, 0], sizes = [1, 16, 16], strides = [1, 1, 1]} : vector<2x16x16xf32> to vector<1x16x16xf32>
      %500 = vector.shape_cast %499 : vector<1x16x16xf32> to vector<16x16xf32>
      %501 = vector.broadcast %498 : f32 to vector<16x16xf32>
      %502 = arith.mulf %501, %500 : vector<16x16xf32>
      %503 = arith.addf %490, %502 : vector<16x16xf32>
      %504 = vector.extract_strided_slice %11 {offsets = [0, 0, 5], sizes = [2, 22, 16], strides = [1, 1, 1]} : vector<2x22x22xf32> to vector<2x22x16xf32>
      %505 = vector.extract_strided_slice %504 {offsets = [0, 0, 0], sizes = [2, 16, 16], strides = [1, 1, 1]} : vector<2x22x16xf32> to vector<2x16x16xf32>
      %c0_131 = arith.constant 0 : index
      %c5 = arith.constant 5 : index
      %506 = memref.load %arg3[%c0_131, %c5] : memref<2x49xf32, #tpu.memory_space<smem>>
      %507 = vector.extract_strided_slice %505 {offsets = [0, 0, 0], sizes = [1, 16, 16], strides = [1, 1, 1]} : vector<2x16x16xf32> to vector<1x16x16xf32>
      %508 = vector.shape_cast %507 : vector<1x16x16xf32> to vector<16x16xf32>
      %509 = vector.broadcast %506 : f32 to vector<16x16xf32>
      %510 = arith.mulf %509, %508 : vector<16x16xf32>
      %511 = arith.addf %497, %510 : vector<16x16xf32>
      %c1_132 = arith.constant 1 : index
      %c5_133 = arith.constant 5 : index
      %512 = memref.load %arg3[%c1_132, %c5_133] : memref<2x49xf32, #tpu.memory_space<smem>>
      %513 = vector.extract_strided_slice %505 {offsets = [1, 0, 0], sizes = [1, 16, 16], strides = [1, 1, 1]} : vector<2x16x16xf32> to vector<1x16x16xf32>
      %514 = vector.shape_cast %513 : vector<1x16x16xf32> to vector<16x16xf32>
      %515 = vector.broadcast %512 : f32 to vector<16x16xf32>
      %516 = arith.mulf %515, %514 : vector<16x16xf32>
      %517 = arith.addf %503, %516 : vector<16x16xf32>
      %518 = vector.extract_strided_slice %504 {offsets = [0, 1, 0], sizes = [2, 16, 16], strides = [1, 1, 1]} : vector<2x22x16xf32> to vector<2x16x16xf32>
      %c0_134 = arith.constant 0 : index
      %c12 = arith.constant 12 : index
      %519 = memref.load %arg3[%c0_134, %c12] : memref<2x49xf32, #tpu.memory_space<smem>>
      %520 = vector.extract_strided_slice %518 {offsets = [0, 0, 0], sizes = [1, 16, 16], strides = [1, 1, 1]} : vector<2x16x16xf32> to vector<1x16x16xf32>
      %521 = vector.shape_cast %520 : vector<1x16x16xf32> to vector<16x16xf32>
      %522 = vector.broadcast %519 : f32 to vector<16x16xf32>
      %523 = arith.mulf %522, %521 : vector<16x16xf32>
      %524 = arith.addf %511, %523 : vector<16x16xf32>
      %c1_135 = arith.constant 1 : index
      %c12_136 = arith.constant 12 : index
      %525 = memref.load %arg3[%c1_135, %c12_136] : memref<2x49xf32, #tpu.memory_space<smem>>
      %526 = vector.extract_strided_slice %518 {offsets = [1, 0, 0], sizes = [1, 16, 16], strides = [1, 1, 1]} : vector<2x16x16xf32> to vector<1x16x16xf32>
      %527 = vector.shape_cast %526 : vector<1x16x16xf32> to vector<16x16xf32>
      %528 = vector.broadcast %525 : f32 to vector<16x16xf32>
      %529 = arith.mulf %528, %527 : vector<16x16xf32>
      %530 = arith.addf %517, %529 : vector<16x16xf32>
      %531 = vector.extract_strided_slice %504 {offsets = [0, 2, 0], sizes = [2, 16, 16], strides = [1, 1, 1]} : vector<2x22x16xf32> to vector<2x16x16xf32>
      %c0_137 = arith.constant 0 : index
      %c19 = arith.constant 19 : index
      %532 = memref.load %arg3[%c0_137, %c19] : memref<2x49xf32, #tpu.memory_space<smem>>
      %533 = vector.extract_strided_slice %531 {offsets = [0, 0, 0], sizes = [1, 16, 16], strides = [1, 1, 1]} : vector<2x16x16xf32> to vector<1x16x16xf32>
      %534 = vector.shape_cast %533 : vector<1x16x16xf32> to vector<16x16xf32>
      %535 = vector.broadcast %532 : f32 to vector<16x16xf32>
      %536 = arith.mulf %535, %534 : vector<16x16xf32>
      %537 = arith.addf %524, %536 : vector<16x16xf32>
      %c1_138 = arith.constant 1 : index
      %c19_139 = arith.constant 19 : index
      %538 = memref.load %arg3[%c1_138, %c19_139] : memref<2x49xf32, #tpu.memory_space<smem>>
      %539 = vector.extract_strided_slice %531 {offsets = [1, 0, 0], sizes = [1, 16, 16], strides = [1, 1, 1]} : vector<2x16x16xf32> to vector<1x16x16xf32>
      %540 = vector.shape_cast %539 : vector<1x16x16xf32> to vector<16x16xf32>
      %541 = vector.broadcast %538 : f32 to vector<16x16xf32>
      %542 = arith.mulf %541, %540 : vector<16x16xf32>
      %543 = arith.addf %530, %542 : vector<16x16xf32>
      %544 = vector.extract_strided_slice %504 {offsets = [0, 3, 0], sizes = [2, 16, 16], strides = [1, 1, 1]} : vector<2x22x16xf32> to vector<2x16x16xf32>
      %c0_140 = arith.constant 0 : index
      %c26 = arith.constant 26 : index
      %545 = memref.load %arg3[%c0_140, %c26] : memref<2x49xf32, #tpu.memory_space<smem>>
      %546 = vector.extract_strided_slice %544 {offsets = [0, 0, 0], sizes = [1, 16, 16], strides = [1, 1, 1]} : vector<2x16x16xf32> to vector<1x16x16xf32>
      %547 = vector.shape_cast %546 : vector<1x16x16xf32> to vector<16x16xf32>
      %548 = vector.broadcast %545 : f32 to vector<16x16xf32>
      %549 = arith.mulf %548, %547 : vector<16x16xf32>
      %550 = arith.addf %537, %549 : vector<16x16xf32>
      %c1_141 = arith.constant 1 : index
      %c26_142 = arith.constant 26 : index
      %551 = memref.load %arg3[%c1_141, %c26_142] : memref<2x49xf32, #tpu.memory_space<smem>>
      %552 = vector.extract_strided_slice %544 {offsets = [1, 0, 0], sizes = [1, 16, 16], strides = [1, 1, 1]} : vector<2x16x16xf32> to vector<1x16x16xf32>
      %553 = vector.shape_cast %552 : vector<1x16x16xf32> to vector<16x16xf32>
      %554 = vector.broadcast %551 : f32 to vector<16x16xf32>
      %555 = arith.mulf %554, %553 : vector<16x16xf32>
      %556 = arith.addf %543, %555 : vector<16x16xf32>
      %557 = vector.extract_strided_slice %504 {offsets = [0, 4, 0], sizes = [2, 16, 16], strides = [1, 1, 1]} : vector<2x22x16xf32> to vector<2x16x16xf32>
      %c0_143 = arith.constant 0 : index
      %c33 = arith.constant 33 : index
      %558 = memref.load %arg3[%c0_143, %c33] : memref<2x49xf32, #tpu.memory_space<smem>>
      %559 = vector.extract_strided_slice %557 {offsets = [0, 0, 0], sizes = [1, 16, 16], strides = [1, 1, 1]} : vector<2x16x16xf32> to vector<1x16x16xf32>
      %560 = vector.shape_cast %559 : vector<1x16x16xf32> to vector<16x16xf32>
      %561 = vector.broadcast %558 : f32 to vector<16x16xf32>
      %562 = arith.mulf %561, %560 : vector<16x16xf32>
      %563 = arith.addf %550, %562 : vector<16x16xf32>
      %c1_144 = arith.constant 1 : index
      %c33_145 = arith.constant 33 : index
      %564 = memref.load %arg3[%c1_144, %c33_145] : memref<2x49xf32, #tpu.memory_space<smem>>
      %565 = vector.extract_strided_slice %557 {offsets = [1, 0, 0], sizes = [1, 16, 16], strides = [1, 1, 1]} : vector<2x16x16xf32> to vector<1x16x16xf32>
      %566 = vector.shape_cast %565 : vector<1x16x16xf32> to vector<16x16xf32>
      %567 = vector.broadcast %564 : f32 to vector<16x16xf32>
      %568 = arith.mulf %567, %566 : vector<16x16xf32>
      %569 = arith.addf %556, %568 : vector<16x16xf32>
      %570 = vector.extract_strided_slice %504 {offsets = [0, 5, 0], sizes = [2, 16, 16], strides = [1, 1, 1]} : vector<2x22x16xf32> to vector<2x16x16xf32>
      %c0_146 = arith.constant 0 : index
      %c40 = arith.constant 40 : index
      %571 = memref.load %arg3[%c0_146, %c40] : memref<2x49xf32, #tpu.memory_space<smem>>
      %572 = vector.extract_strided_slice %570 {offsets = [0, 0, 0], sizes = [1, 16, 16], strides = [1, 1, 1]} : vector<2x16x16xf32> to vector<1x16x16xf32>
      %573 = vector.shape_cast %572 : vector<1x16x16xf32> to vector<16x16xf32>
      %574 = vector.broadcast %571 : f32 to vector<16x16xf32>
      %575 = arith.mulf %574, %573 : vector<16x16xf32>
      %576 = arith.addf %563, %575 : vector<16x16xf32>
      %c1_147 = arith.constant 1 : index
      %c40_148 = arith.constant 40 : index
      %577 = memref.load %arg3[%c1_147, %c40_148] : memref<2x49xf32, #tpu.memory_space<smem>>
      %578 = vector.extract_strided_slice %570 {offsets = [1, 0, 0], sizes = [1, 16, 16], strides = [1, 1, 1]} : vector<2x16x16xf32> to vector<1x16x16xf32>
      %579 = vector.shape_cast %578 : vector<1x16x16xf32> to vector<16x16xf32>
      %580 = vector.broadcast %577 : f32 to vector<16x16xf32>
      %581 = arith.mulf %580, %579 : vector<16x16xf32>
      %582 = arith.addf %569, %581 : vector<16x16xf32>
      %583 = vector.extract_strided_slice %504 {offsets = [0, 6, 0], sizes = [2, 16, 16], strides = [1, 1, 1]} : vector<2x22x16xf32> to vector<2x16x16xf32>
      %c0_149 = arith.constant 0 : index
      %c47 = arith.constant 47 : index
      %584 = memref.load %arg3[%c0_149, %c47] : memref<2x49xf32, #tpu.memory_space<smem>>
      %585 = vector.extract_strided_slice %583 {offsets = [0, 0, 0], sizes = [1, 16, 16], strides = [1, 1, 1]} : vector<2x16x16xf32> to vector<1x16x16xf32>
      %586 = vector.shape_cast %585 : vector<1x16x16xf32> to vector<16x16xf32>
      %587 = vector.broadcast %584 : f32 to vector<16x16xf32>
      %588 = arith.mulf %587, %586 : vector<16x16xf32>
      %589 = arith.addf %576, %588 : vector<16x16xf32>
      %c1_150 = arith.constant 1 : index
      %c47_151 = arith.constant 47 : index
      %590 = memref.load %arg3[%c1_150, %c47_151] : memref<2x49xf32, #tpu.memory_space<smem>>
      %591 = vector.extract_strided_slice %583 {offsets = [1, 0, 0], sizes = [1, 16, 16], strides = [1, 1, 1]} : vector<2x16x16xf32> to vector<1x16x16xf32>
      %592 = vector.shape_cast %591 : vector<1x16x16xf32> to vector<16x16xf32>
      %593 = vector.broadcast %590 : f32 to vector<16x16xf32>
      %594 = arith.mulf %593, %592 : vector<16x16xf32>
      %595 = arith.addf %582, %594 : vector<16x16xf32>
      %596 = vector.extract_strided_slice %11 {offsets = [0, 0, 6], sizes = [2, 22, 16], strides = [1, 1, 1]} : vector<2x22x22xf32> to vector<2x22x16xf32>
      %597 = vector.extract_strided_slice %596 {offsets = [0, 0, 0], sizes = [2, 16, 16], strides = [1, 1, 1]} : vector<2x22x16xf32> to vector<2x16x16xf32>
      %c0_152 = arith.constant 0 : index
      %c6 = arith.constant 6 : index
      %598 = memref.load %arg3[%c0_152, %c6] : memref<2x49xf32, #tpu.memory_space<smem>>
      %599 = vector.extract_strided_slice %597 {offsets = [0, 0, 0], sizes = [1, 16, 16], strides = [1, 1, 1]} : vector<2x16x16xf32> to vector<1x16x16xf32>
      %600 = vector.shape_cast %599 : vector<1x16x16xf32> to vector<16x16xf32>
      %601 = vector.broadcast %598 : f32 to vector<16x16xf32>
      %602 = arith.mulf %601, %600 : vector<16x16xf32>
      %603 = arith.addf %589, %602 : vector<16x16xf32>
      %c1_153 = arith.constant 1 : index
      %c6_154 = arith.constant 6 : index
      %604 = memref.load %arg3[%c1_153, %c6_154] : memref<2x49xf32, #tpu.memory_space<smem>>
      %605 = vector.extract_strided_slice %597 {offsets = [1, 0, 0], sizes = [1, 16, 16], strides = [1, 1, 1]} : vector<2x16x16xf32> to vector<1x16x16xf32>
      %606 = vector.shape_cast %605 : vector<1x16x16xf32> to vector<16x16xf32>
      %607 = vector.broadcast %604 : f32 to vector<16x16xf32>
      %608 = arith.mulf %607, %606 : vector<16x16xf32>
      %609 = arith.addf %595, %608 : vector<16x16xf32>
      %610 = vector.extract_strided_slice %596 {offsets = [0, 1, 0], sizes = [2, 16, 16], strides = [1, 1, 1]} : vector<2x22x16xf32> to vector<2x16x16xf32>
      %c0_155 = arith.constant 0 : index
      %c13 = arith.constant 13 : index
      %611 = memref.load %arg3[%c0_155, %c13] : memref<2x49xf32, #tpu.memory_space<smem>>
      %612 = vector.extract_strided_slice %610 {offsets = [0, 0, 0], sizes = [1, 16, 16], strides = [1, 1, 1]} : vector<2x16x16xf32> to vector<1x16x16xf32>
      %613 = vector.shape_cast %612 : vector<1x16x16xf32> to vector<16x16xf32>
      %614 = vector.broadcast %611 : f32 to vector<16x16xf32>
      %615 = arith.mulf %614, %613 : vector<16x16xf32>
      %616 = arith.addf %603, %615 : vector<16x16xf32>
      %c1_156 = arith.constant 1 : index
      %c13_157 = arith.constant 13 : index
      %617 = memref.load %arg3[%c1_156, %c13_157] : memref<2x49xf32, #tpu.memory_space<smem>>
      %618 = vector.extract_strided_slice %610 {offsets = [1, 0, 0], sizes = [1, 16, 16], strides = [1, 1, 1]} : vector<2x16x16xf32> to vector<1x16x16xf32>
      %619 = vector.shape_cast %618 : vector<1x16x16xf32> to vector<16x16xf32>
      %620 = vector.broadcast %617 : f32 to vector<16x16xf32>
      %621 = arith.mulf %620, %619 : vector<16x16xf32>
      %622 = arith.addf %609, %621 : vector<16x16xf32>
      %623 = vector.extract_strided_slice %596 {offsets = [0, 2, 0], sizes = [2, 16, 16], strides = [1, 1, 1]} : vector<2x22x16xf32> to vector<2x16x16xf32>
      %c0_158 = arith.constant 0 : index
      %c20 = arith.constant 20 : index
      %624 = memref.load %arg3[%c0_158, %c20] : memref<2x49xf32, #tpu.memory_space<smem>>
      %625 = vector.extract_strided_slice %623 {offsets = [0, 0, 0], sizes = [1, 16, 16], strides = [1, 1, 1]} : vector<2x16x16xf32> to vector<1x16x16xf32>
      %626 = vector.shape_cast %625 : vector<1x16x16xf32> to vector<16x16xf32>
      %627 = vector.broadcast %624 : f32 to vector<16x16xf32>
      %628 = arith.mulf %627, %626 : vector<16x16xf32>
      %629 = arith.addf %616, %628 : vector<16x16xf32>
      %c1_159 = arith.constant 1 : index
      %c20_160 = arith.constant 20 : index
      %630 = memref.load %arg3[%c1_159, %c20_160] : memref<2x49xf32, #tpu.memory_space<smem>>
      %631 = vector.extract_strided_slice %623 {offsets = [1, 0, 0], sizes = [1, 16, 16], strides = [1, 1, 1]} : vector<2x16x16xf32> to vector<1x16x16xf32>
      %632 = vector.shape_cast %631 : vector<1x16x16xf32> to vector<16x16xf32>
      %633 = vector.broadcast %630 : f32 to vector<16x16xf32>
      %634 = arith.mulf %633, %632 : vector<16x16xf32>
      %635 = arith.addf %622, %634 : vector<16x16xf32>
      %636 = vector.extract_strided_slice %596 {offsets = [0, 3, 0], sizes = [2, 16, 16], strides = [1, 1, 1]} : vector<2x22x16xf32> to vector<2x16x16xf32>
      %c0_161 = arith.constant 0 : index
      %c27 = arith.constant 27 : index
      %637 = memref.load %arg3[%c0_161, %c27] : memref<2x49xf32, #tpu.memory_space<smem>>
      %638 = vector.extract_strided_slice %636 {offsets = [0, 0, 0], sizes = [1, 16, 16], strides = [1, 1, 1]} : vector<2x16x16xf32> to vector<1x16x16xf32>
      %639 = vector.shape_cast %638 : vector<1x16x16xf32> to vector<16x16xf32>
      %640 = vector.broadcast %637 : f32 to vector<16x16xf32>
      %641 = arith.mulf %640, %639 : vector<16x16xf32>
      %642 = arith.addf %629, %641 : vector<16x16xf32>
      %c1_162 = arith.constant 1 : index
      %c27_163 = arith.constant 27 : index
      %643 = memref.load %arg3[%c1_162, %c27_163] : memref<2x49xf32, #tpu.memory_space<smem>>
      %644 = vector.extract_strided_slice %636 {offsets = [1, 0, 0], sizes = [1, 16, 16], strides = [1, 1, 1]} : vector<2x16x16xf32> to vector<1x16x16xf32>
      %645 = vector.shape_cast %644 : vector<1x16x16xf32> to vector<16x16xf32>
      %646 = vector.broadcast %643 : f32 to vector<16x16xf32>
      %647 = arith.mulf %646, %645 : vector<16x16xf32>
      %648 = arith.addf %635, %647 : vector<16x16xf32>
      %649 = vector.extract_strided_slice %596 {offsets = [0, 4, 0], sizes = [2, 16, 16], strides = [1, 1, 1]} : vector<2x22x16xf32> to vector<2x16x16xf32>
      %c0_164 = arith.constant 0 : index
      %c34 = arith.constant 34 : index
      %650 = memref.load %arg3[%c0_164, %c34] : memref<2x49xf32, #tpu.memory_space<smem>>
      %651 = vector.extract_strided_slice %649 {offsets = [0, 0, 0], sizes = [1, 16, 16], strides = [1, 1, 1]} : vector<2x16x16xf32> to vector<1x16x16xf32>
      %652 = vector.shape_cast %651 : vector<1x16x16xf32> to vector<16x16xf32>
      %653 = vector.broadcast %650 : f32 to vector<16x16xf32>
      %654 = arith.mulf %653, %652 : vector<16x16xf32>
      %655 = arith.addf %642, %654 : vector<16x16xf32>
      %c1_165 = arith.constant 1 : index
      %c34_166 = arith.constant 34 : index
      %656 = memref.load %arg3[%c1_165, %c34_166] : memref<2x49xf32, #tpu.memory_space<smem>>
      %657 = vector.extract_strided_slice %649 {offsets = [1, 0, 0], sizes = [1, 16, 16], strides = [1, 1, 1]} : vector<2x16x16xf32> to vector<1x16x16xf32>
      %658 = vector.shape_cast %657 : vector<1x16x16xf32> to vector<16x16xf32>
      %659 = vector.broadcast %656 : f32 to vector<16x16xf32>
      %660 = arith.mulf %659, %658 : vector<16x16xf32>
      %661 = arith.addf %648, %660 : vector<16x16xf32>
      %662 = vector.extract_strided_slice %596 {offsets = [0, 5, 0], sizes = [2, 16, 16], strides = [1, 1, 1]} : vector<2x22x16xf32> to vector<2x16x16xf32>
      %c0_167 = arith.constant 0 : index
      %c41 = arith.constant 41 : index
      %663 = memref.load %arg3[%c0_167, %c41] : memref<2x49xf32, #tpu.memory_space<smem>>
      %664 = vector.extract_strided_slice %662 {offsets = [0, 0, 0], sizes = [1, 16, 16], strides = [1, 1, 1]} : vector<2x16x16xf32> to vector<1x16x16xf32>
      %665 = vector.shape_cast %664 : vector<1x16x16xf32> to vector<16x16xf32>
      %666 = vector.broadcast %663 : f32 to vector<16x16xf32>
      %667 = arith.mulf %666, %665 : vector<16x16xf32>
      %668 = arith.addf %655, %667 : vector<16x16xf32>
      %c1_168 = arith.constant 1 : index
      %c41_169 = arith.constant 41 : index
      %669 = memref.load %arg3[%c1_168, %c41_169] : memref<2x49xf32, #tpu.memory_space<smem>>
      %670 = vector.extract_strided_slice %662 {offsets = [1, 0, 0], sizes = [1, 16, 16], strides = [1, 1, 1]} : vector<2x16x16xf32> to vector<1x16x16xf32>
      %671 = vector.shape_cast %670 : vector<1x16x16xf32> to vector<16x16xf32>
      %672 = vector.broadcast %669 : f32 to vector<16x16xf32>
      %673 = arith.mulf %672, %671 : vector<16x16xf32>
      %674 = arith.addf %661, %673 : vector<16x16xf32>
      %675 = vector.extract_strided_slice %596 {offsets = [0, 6, 0], sizes = [2, 16, 16], strides = [1, 1, 1]} : vector<2x22x16xf32> to vector<2x16x16xf32>
      %c0_170 = arith.constant 0 : index
      %c48 = arith.constant 48 : index
      %676 = memref.load %arg3[%c0_170, %c48] : memref<2x49xf32, #tpu.memory_space<smem>>
      %677 = vector.extract_strided_slice %675 {offsets = [0, 0, 0], sizes = [1, 16, 16], strides = [1, 1, 1]} : vector<2x16x16xf32> to vector<1x16x16xf32>
      %678 = vector.shape_cast %677 : vector<1x16x16xf32> to vector<16x16xf32>
      %679 = vector.broadcast %676 : f32 to vector<16x16xf32>
      %680 = arith.mulf %679, %678 : vector<16x16xf32>
      %681 = arith.addf %668, %680 : vector<16x16xf32>
      %c1_171 = arith.constant 1 : index
      %c48_172 = arith.constant 48 : index
      %682 = memref.load %arg3[%c1_171, %c48_172] : memref<2x49xf32, #tpu.memory_space<smem>>
      %683 = vector.extract_strided_slice %675 {offsets = [1, 0, 0], sizes = [1, 16, 16], strides = [1, 1, 1]} : vector<2x16x16xf32> to vector<1x16x16xf32>
      %684 = vector.shape_cast %683 : vector<1x16x16xf32> to vector<16x16xf32>
      %685 = vector.broadcast %682 : f32 to vector<16x16xf32>
      %686 = arith.mulf %685, %684 : vector<16x16xf32>
      %687 = arith.addf %674, %686 : vector<16x16xf32>
      %688 = math.absf %476 : vector<2x16x16xf32>
      %689 = math.absf %477 : vector<2x16x16xf32>
      %690 = arith.addf %688, %689 : vector<2x16x16xf32>
      %691 = math.absf %462 : vector<2x16x16xf32>
      %cst_173 = arith.constant 2.000000e+00 : f32
      %692 = vector.broadcast %cst_173 : f32 to vector<2x16x16xf32>
      %693 = arith.mulf %692, %691 : vector<2x16x16xf32>
      %694 = arith.addf %690, %693 : vector<2x16x16xf32>
      %c0_174 = arith.constant 0 : index
      %695 = memref.load %arg4[%c0_174] : memref<2xf32, #tpu.memory_space<smem>>
      %696 = vector.broadcast %695 : f32 to vector<16x16xf32>
      %697 = arith.addf %681, %696 : vector<16x16xf32>
      %698 = vector.extract_strided_slice %694 {offsets = [0, 0, 0], sizes = [1, 16, 16], strides = [1, 1, 1]} : vector<2x16x16xf32> to vector<1x16x16xf32>
      %699 = vector.shape_cast %698 : vector<1x16x16xf32> to vector<16x16xf32>
      %700 = arith.addf %697, %699 : vector<16x16xf32>
      %cst_175 = arith.constant 0.000000e+00 : f32
      %701 = vector.broadcast %cst_175 : f32 to vector<16x16xf32>
      %702 = arith.cmpf oge, %700, %701 : vector<16x16xf32>
      %cst_176 = arith.constant 0.00999999977 : f32
      %703 = vector.broadcast %cst_176 : f32 to vector<16x16xf32>
      %704 = arith.mulf %703, %700 : vector<16x16xf32>
      %705 = arith.select %702, %700, %704 : vector<16x16xi1>, vector<16x16xf32>
      %706 = vector.extract_strided_slice %7 {offsets = [0, 0, 0], sizes = [1, 16, 16], strides = [1, 1, 1]} : vector<2x16x16xf32> to vector<1x16x16xf32>
      %707 = vector.shape_cast %706 : vector<1x16x16xf32> to vector<16x16xf32>
      %708 = arith.addf %705, %707 : vector<16x16xf32>
      %c0_177 = arith.constant 0 : index
      %c0_178 = arith.constant 0 : index
      %c0_179 = arith.constant 0 : index
      %c0_180 = arith.constant 0 : index
      %709 = vector.load %arg5[%c0_177, %c0_178, %c0_179, %c0_180] : memref<1x2x16x16xf32, #tpu.memory_space<vmem>>, vector<1x1x16x16xf32>
      %710 = vector.shape_cast %709 : vector<1x1x16x16xf32> to vector<16x16xf32>
      %711 = vector.shape_cast %708 : vector<16x16xf32> to vector<1x1x16x16xf32>
      tpu.vector_store %arg5[%c0_177, %c0_178, %c0_179, %c0_180], %711 {strides = array<i32>} : memref<1x2x16x16xf32, #tpu.memory_space<vmem>>, vector<1x1x16x16xf32>,
      %c1_181 = arith.constant 1 : index
      %712 = memref.load %arg4[%c1_181] : memref<2xf32, #tpu.memory_space<smem>>
      %713 = vector.broadcast %712 : f32 to vector<16x16xf32>
      %714 = arith.addf %687, %713 : vector<16x16xf32>
      %715 = vector.extract_strided_slice %694 {offsets = [1, 0, 0], sizes = [1, 16, 16], strides = [1, 1, 1]} : vector<2x16x16xf32> to vector<1x16x16xf32>
      %716 = vector.shape_cast %715 : vector<1x16x16xf32> to vector<16x16xf32>
      %717 = arith.addf %714, %716 : vector<16x16xf32>
      %cst_182 = arith.constant 0.000000e+00 : f32
      %718 = vector.broadcast %cst_182 : f32 to vector<16x16xf32>
      %719 = arith.cmpf oge, %717, %718 : vector<16x16xf32>
      %cst_183 = arith.constant 0.00999999977 : f32
      %720 = vector.broadcast %cst_183 : f32 to vector<16x16xf32>
      %721 = arith.mulf %720, %717 : vector<16x16xf32>
      %722 = arith.select %719, %717, %721 : vector<16x16xi1>, vector<16x16xf32>
      %723 = vector.extract_strided_slice %7 {offsets = [1, 0, 0], sizes = [1, 16, 16], strides = [1, 1, 1]} : vector<2x16x16xf32> to vector<1x16x16xf32>
      %724 = vector.shape_cast %723 : vector<1x16x16xf32> to vector<16x16xf32>
      %725 = arith.addf %722, %724 : vector<16x16xf32>
      %c0_184 = arith.constant 0 : index
      %c1_185 = arith.constant 1 : index
      %c0_186 = arith.constant 0 : index
      %c0_187 = arith.constant 0 : index
      %726 = vector.load %arg5[%c0_184, %c1_185, %c0_186, %c0_187] : memref<1x2x16x16xf32, #tpu.memory_space<vmem>>, vector<1x1x16x16xf32>
      %727 = vector.shape_cast %726 : vector<1x1x16x16xf32> to vector<16x16xf32>
      %728 = vector.shape_cast %725 : vector<16x16xf32> to vector<1x1x16x16xf32>
      tpu.vector_store %arg5[%c0_184, %c1_185, %c0_186, %c0_187], %728 {strides = array<i32>} : memref<1x2x16x16xf32, #tpu.memory_space<vmem>>, vector<1x1x16x16xf32>,
    } else {
    }
    %c0_i32_1 = arith.constant 0 : i32
    %3 = arith.cmpi ne, %arg1, %c0_i32_1 : i32
    %4 = arith.extui %3 : i1 to i32
    %c0_i32_2 = arith.constant 0 : i32
    %5 = arith.cmpi ne, %4, %c0_i32_2 : i32
    scf.if %5 {
      %c0 = arith.constant 0 : index
      %c0_3 = arith.constant 0 : index
      %c0_4 = arith.constant 0 : index
      %c0_5 = arith.constant 0 : index
      %6 = vector.load %arg2[%c0, %c0_3, %c0_4, %c0_5] : memref<1x2x16x16xf32, #tpu.memory_space<vmem>>, vector<1x2x16x16xf32>
      %7 = vector.shape_cast %6 : vector<1x2x16x16xf32> to vector<2x16x16xf32>
      %cst = arith.constant 8.000000e+00 : f32
      %8 = vector.broadcast %cst : f32 to vector<2x16x16xf32>
      %9 = arith.mulf %8, %7 : vector<2x16x16xf32>
      %cst_6 = arith.constant 0.000000e+00 : f32
      %10 = vector.broadcast %cst_6 : f32 to vector<2x16x16xf32>
      %11 = arith.cmpf oge, %9, %10 : vector<2x16x16xf32>
      %cst_7 = arith.constant 0.00999999977 : f32
      %12 = vector.broadcast %cst_7 : f32 to vector<2x16x16xf32>
      %13 = arith.mulf %12, %9 : vector<2x16x16xf32>
      %14 = arith.select %11, %9, %13 : vector<2x16x16xi1>, vector<2x16x16xf32>
      %15 = arith.addf %14, %7 : vector<2x16x16xf32>
      %c0_8 = arith.constant 0 : index
      %c0_9 = arith.constant 0 : index
      %c0_10 = arith.constant 0 : index
      %c0_11 = arith.constant 0 : index
      %16 = vector.load %arg5[%c0_8, %c0_9, %c0_10, %c0_11] : memref<1x2x16x16xf32, #tpu.memory_space<vmem>>, vector<1x2x16x16xf32>
      %17 = vector.shape_cast %16 : vector<1x2x16x16xf32> to vector<2x16x16xf32>
      %18 = vector.shape_cast %15 : vector<2x16x16xf32> to vector<1x2x16x16xf32>
      tpu.vector_store %arg5[%c0_8, %c0_9, %c0_10, %c0_11], %18 {strides = array<i32>} : memref<1x2x16x16xf32, #tpu.memory_space<vmem>>, vector<1x2x16x16xf32>,
    } else {
    }
    return
  }
  func.func @transform_0(%arg0: i32, %arg1: i32) -> (i32, i32, i32, i32) {
    %c0_i32 = arith.constant 0 : i32
    %c0_i32_0 = arith.constant 0 : i32
    %c0_i32_1 = arith.constant 0 : i32
    return %arg0, %arg1, %c0_i32, %c0_i32_0 : i32, i32, i32, i32
  }
  func.func @transform_1(%arg0: i32, %arg1: i32) -> (i32, i32) {
    %c0_i32 = arith.constant 0 : i32
    %c0_i32_0 = arith.constant 0 : i32
    %c0_i32_1 = arith.constant 0 : i32
    return %c0_i32, %c0_i32_0 : i32, i32
  }
  func.func @transform_2(%arg0: i32, %arg1: i32) -> i32 {
    %c0_i32 = arith.constant 0 : i32
    %c0_i32_0 = arith.constant 0 : i32
    return %c0_i32 : i32
  }
  func.func @transform_3(%arg0: i32, %arg1: i32) -> (i32, i32, i32, i32) {
    %c0_i32 = arith.constant 0 : i32
    %c0_i32_0 = arith.constant 0 : i32
    %c0_i32_1 = arith.constant 0 : i32
    return %arg0, %arg1, %c0_i32, %c0_i32_0 : i32, i32, i32, i32
  }
}

</mosaic_0001>

<llo_original>
// kernel: tpu_custom_call.1
$region0: #{tpu_custom_call.1}
  #allocation0 [shape = 'u32[]', space=smem, size = 0x4, offset = 0x4, fixed_abs, tag = 'smem constant byte address 0x4 - core index']
  #allocation1 [shape = 'u32[144,128]{1,0:T(1,128)}', space=vmem, size = 0x12000, scoped, tag = 'internal scratch']
  #allocation2 [shape = 'f32[2,22,22]{2,1,0:T(8,128)}', space=vmem, size = 0x6000, scoped, tag = 'scratch operand']
  %s0 = inlined_call_operand.hbm [shape: f32[2,8,16,16], index: 0, kind: input, shape index: {}]
  %s1 = inlined_call_operand.vmem [shape: f32[2,49], index: 1, kind: input, shape index: {}]
  %s2 = inlined_call_operand.vmem [shape: f32[2], index: 2, kind: input, shape index: {}]
  %s3 = inlined_call_operand.hbm [shape: f32[2,8,16,16], index: 3, kind: output, shape index: {}]
  %s4 = sld [smem:[#allocation0]]
  $region65: #{tpu_custom_call.1} parent=0
    _
  %s6 = ssub.s32 1, %s4
  %s7 = scalar_select 0, %s6, %s4
  $region1: #{tpu_custom_call.1} parent=0
    #allocation3 [shape = 'u8[32768]{0}', space=vmem, size = 0x8000, scoped, tag = 'input window, operand 0']
    #allocation4 [shape = 's32[2]{0}', space=sflag, size = 0x8, scoped, tag = 'scoped memory for tpu_custom_call.1']
    #allocation5 [shape = 's32[2]{0}', space=sflag, size = 0x8, scoped, tag = 'scoped memory for tpu_custom_call.1']
    #allocation6 [shape = 's32[2]{0}', space=sflag, size = 0x8, scoped, tag = 'scoped memory for tpu_custom_call.1']
    #allocation7 [shape = 'u8[1024]{0}', space=smem, size = 0x400, scoped, tag = 'input window, operand 1, single buffered']
    #allocation8 [shape = 'u8[512]{0}', space=smem, size = 0x200, scoped, tag = 'input window, operand 2, single buffered']
    #allocation9 [shape = 's32[1]{0}', space=sflag, size = 0x4, scoped, tag = 'scoped memory for tpu_custom_call.1']
    #allocation10 [shape = 'u8[32768]{0}', space=vmem, size = 0x8000, scoped, tag = 'output window, operand 0']
    %8 = vsyncpa [#allocation4], 0
    %s9 = scalar_lea.sflag [#allocation4], 1
    %10 = vsyncpa %s9, 0
    %11 = vsyncpa [#allocation6], 0
    %12 = vsyncpa [#allocation9], 0
    %13 = vsyncpa [#allocation5], 0
    %s14 = scalar_lea.sflag [#allocation5], 1
    %15 = vsyncpa %s14, 0
    loop: start=0, step=1, limit=10
    $region2: #{tpu_custom_call.1} parent=1 // loop_pre_header
      _
    $region3: #{tpu_custom_call.1} parent=1 // loop_header
      %s17 = sphi 0, %s21
      %p18 = scmp.ge.s32.totalorder %s17, 10
      %s24 = sphi 0, %s36
      %s25 = sphi 0, %s32
      %s26 = sphi 0, %s24
      %s27 = sphi 0, %s25
      %s28 = sphi 0, %s26
      %s29 = sphi 0, %s27
      %s41 = sphi 0, %s43
      %s44 = sphi 0, %s41
      %s45 = sphi 0, %s44
      %s61 = sphi 0, %s45
      %s65 = sphi 0, %s65
      %s67 = sphi 0, %s65
      %s68 = sphi 0, %s67
      %s82 = sphi 0, %s68
      %s86 = sphi 0, %s86
      %s88 = sphi 0, %s86
      %s89 = sphi 0, %s88
      %s103 = sphi 0, %s89
      %s111 = sphi 0, %s113
      %s114 = sphi 0, %s111
      %s115 = sphi 0, %s114
      %s131 = sphi 0, %s115
    $region4: #{tpu_custom_call.1} parent=1 // loop_header_branch
      %20 = sbr.rel (%p18) target = $region8
    $region5: #{tpu_custom_call.1} parent=1 // loop_body
      %s22 = ssub.s32 %s17, 1
      %s23 = ssub.s32 %s17, 2
      %s30 = sadd.s32 1, %s25
      %p31 = scmp.ge.s32.totalorder %s30, 4
      %s32 = scalar_select %p31, 0, %s30
      %s33 = sadd.s32 1, %s24
      %s34 = scalar_select %p31, %s33, %s24
      %p35 = scmp.ge.s32.totalorder %s34, 2
      %s36 = scalar_select %p35, 0, %s34
      %s37 = ssub.s32 %s24, %s36
      %s38 = ssub.s32 %s25, %s32
      %s39 = sor.u32 %s37, %s38
      %p40 = scmp.eq.s32.totalorder %s39, 0
      %s42 = sadd.s32 %s41, 1
      %s43 = scalar_select %p40, %s41, %s42
      %p46 = pneg %p40
      %p47 = scmp.eq.s32.totalorder %s17, 7
      %p48 = por %p46, %p47
      %p49 = scmp.ne.s32.totalorder %s41, %s44
      %p50 = scmp.eq.s32.totalorder %s17, 0
      %p51 = por %p49, %p50
      %p52 = scmp.ne.s32.totalorder %s41, %s44
      %p53 = scmp.eq.s32.totalorder %s22, 7
      %p54 = por %p52, %p53
      %p55 = scmp.ne.s32.totalorder %s44, %s45
      %p56 = scmp.eq.s32.totalorder %s22, 0
      %p57 = por %p55, %p56
      %p58 = scmp.ne.s32.totalorder %s44, %s45
      %p59 = scmp.eq.s32.totalorder %s23, 7
      %p60 = por %p58, %p59
      %p62 = scmp.ne.s32.totalorder %s45, %s61
      %p63 = scmp.eq.s32.totalorder %s23, 0
      %p64 = por %p62, %p63
      %s66 = sadd.s32 %s65, 1
      %p69 = scmp.eq.s32.totalorder %s17, 7
      %p70 = scmp.ne.s32.totalorder %s65, %s67
      %p71 = scmp.eq.s32.totalorder %s17, 0
      %p72 = por %p70, %p71
      %p73 = scmp.ne.s32.totalorder %s65, %s67
      %p74 = scmp.eq.s32.totalorder %s22, 7
      %p75 = por %p73, %p74
      %p76 = scmp.ne.s32.totalorder %s67, %s68
      %p77 = scmp.eq.s32.totalorder %s22, 0
      %p78 = por %p76, %p77
      %p79 = scmp.ne.s32.totalorder %s67, %s68
      %p80 = scmp.eq.s32.totalorder %s23, 7
      %p81 = por %p79, %p80
      %p83 = scmp.ne.s32.totalorder %s68, %s82
      %p84 = scmp.eq.s32.totalorder %s23, 0
      %p85 = por %p83, %p84
      %s87 = sadd.s32 %s86, 1
      %p90 = scmp.eq.s32.totalorder %s17, 7
      %p91 = scmp.ne.s32.totalorder %s86, %s88
      %p92 = scmp.eq.s32.totalorder %s17, 0
      %p93 = por %p91, %p92
      %p94 = scmp.ne.s32.totalorder %s86, %s88
      %p95 = scmp.eq.s32.totalorder %s22, 7
      %p96 = por %p94, %p95
      %p97 = scmp.ne.s32.totalorder %s88, %s89
      %p98 = scmp.eq.s32.totalorder %s22, 0
      %p99 = por %p97, %p98
      %p100 = scmp.ne.s32.totalorder %s88, %s89
      %p101 = scmp.eq.s32.totalorder %s23, 7
      %p102 = por %p100, %p101
      %p104 = scmp.ne.s32.totalorder %s89, %s103
      %p105 = scmp.eq.s32.totalorder %s23, 0
      %p106 = por %p104, %p105
      %s107 = ssub.s32 %s24, %s36
      %s108 = ssub.s32 %s25, %s32
      %s109 = sor.u32 %s107, %s108
      %p110 = scmp.eq.s32.totalorder %s109, 0
      %s112 = sadd.s32 %s111, 1
      %s113 = scalar_select %p110, %s111, %s112
      %p116 = pneg %p110
      %p117 = scmp.eq.s32.totalorder %s17, 7
      %p118 = por %p116, %p117
      %p119 = scmp.ne.s32.totalorder %s111, %s114
      %p120 = scmp.eq.s32.totalorder %s17, 0
      %p121 = por %p119, %p120
      %p122 = scmp.ne.s32.totalorder %s111, %s114
      %p123 = scmp.eq.s32.totalorder %s22, 7
      %p124 = por %p122, %p123
      %p125 = scmp.ne.s32.totalorder %s114, %s115
      %p126 = scmp.eq.s32.totalorder %s22, 0
      %p127 = por %p125, %p126
      %p128 = scmp.ne.s32.totalorder %s114, %s115
      %p129 = scmp.eq.s32.totalorder %s23, 7
      %p130 = por %p128, %p129
      %p132 = scmp.ne.s32.totalorder %s115, %s131
      %p133 = scmp.eq.s32.totalorder %s23, 0
      %p134 = por %p132, %p133
      %p135 = scmp.le.s32.totalorder 1, %s17
      %p136 = scmp.lt.s32.totalorder %s17, 9
      %p137 = pnand %p135, %p136
      %p138 = pneg %p137
      // Predicated region
      $region9: #{tpu_custom_call.1} parent=5 // pred_check
        _
      $region10: #{tpu_custom_call.1} parent=5 // pred_check_branch
        %140 = sbr.rel (%p137) target = $region12
      $region11: #{tpu_custom_call.1} parent=5 // pred_region
        %s141 = ssub.s32 %s17, 1
        // Predicated region
        $region13: #{tpu_custom_call.1} parent=11 // pred_check
          %p142 = pneg %p78
        $region14: #{tpu_custom_call.1} parent=11 // pred_check_branch
          %144 = sbr.rel (%p142) target = $region16
        $region15: #{tpu_custom_call.1} parent=11 // pred_region
          %s146 = ssub.s32 32, 32
          %147 = vsyncadd [#allocation6], %s146
          %s149 = sshll.u32 %s1, 4
          %s150 = int_to_ptr.vmem [resolvable:$true] %s149
          %152 = dma.vmem_to_smem %s150, 32, [#allocation7], [#allocation6]
        $region16: #{tpu_custom_call.1} parent=11 // pred_fallthru
          _
        // Predicated region
        $region17: #{tpu_custom_call.1} parent=11 // pred_check
          %p153 = pneg %p99
        $region18: #{tpu_custom_call.1} parent=11 // pred_check_branch
          %155 = sbr.rel (%p153) target = $region20
        $region19: #{tpu_custom_call.1} parent=11 // pred_region
          %s157 = ssub.s32 16, 16
          %158 = vsyncadd [#allocation9], %s157
          %s160 = sshll.u32 %s2, 4
          %s161 = int_to_ptr.vmem [resolvable:$true] %s160
          %163 = dma.vmem_to_smem %s161, 16, [#allocation8], [#allocation9]
        $region20: #{tpu_custom_call.1} parent=11 // pred_fallthru
          _
      $region12: #{tpu_custom_call.1} parent=5 // pred_fallthru
        _
      %p164 = scmp.lt.s32.totalorder %s17, 8
      // Predicated region
      $region21: #{tpu_custom_call.1} parent=5 // pred_check
        %p165 = pneg %p164
      $region22: #{tpu_custom_call.1} parent=5 // pred_check_branch
        %167 = sbr.rel (%p165) target = $region24
      $region23: #{tpu_custom_call.1} parent=5 // pred_region
        // Predicated region
        $region25: #{tpu_custom_call.1} parent=23 // pred_check
          %p168 = pneg %p51
        $region26: #{tpu_custom_call.1} parent=23 // pred_check_branch
          %170 = sbr.rel (%p168) target = $region28
        $region27: #{tpu_custom_call.1} parent=23 // pred_region
          %s171 = sand.u32 %s41, 1
          %s172 = scalar_lea.sflag [#allocation4], %s171
          %s173 = sand.u32 %s41, 1
          %s174 = smul.addr %s173, 32
          %s175 = scalar_lea.vmem [#allocation3], %s174
          %s176 = smul.u32 2, %s25
          %s178 = ssub.s32 512, 512
          %179 = vsyncadd %s172, %s178
          %s180 = smul.addr %s176, 2
          %s181 = smul.addr %s24, 16
          %s182 = sadd.s32 %s180, %s181
          %s183 = smul.addr %s182, 128
          %s184 = scalar_lea.hbm %s0, %s183
          %s185 = sshll.u32 %s175, 4
          %s186 = int_to_ptr.vmem [resolvable:$true] %s185
          %191 = dma.hbm_to_vmem [thread:$0]  %s184, 512, %s186, %s172, 128, 128, 8
        $region28: #{tpu_custom_call.1} parent=23 // pred_fallthru
          _
      $region24: #{tpu_custom_call.1} parent=5 // pred_fallthru
        _
      %p192 = scmp.le.s32.totalorder 1, %s17
      %p193 = scmp.lt.s32.totalorder %s17, 9
      %p194 = pnand %p192, %p193
      %p195 = pneg %p194
      // Predicated region
      $region29: #{tpu_custom_call.1} parent=5 // pred_check
        _
      $region30: #{tpu_custom_call.1} parent=5 // pred_check_branch
        %197 = sbr.rel (%p194) target = $region32
      $region31: #{tpu_custom_call.1} parent=5 // pred_region
        %s198 = ssub.s32 %s17, 1
        %s199 = sand.u32 %s44, 1
        %s200 = scalar_lea.sflag [#allocation4], %s199
        %s201 = sand.u32 %s44, 1
        %s202 = smul.addr %s201, 32
        %s203 = scalar_lea.vmem [#allocation3], %s202
        // Predicated region
        $region33: #{tpu_custom_call.1} parent=31 // pred_check
          %p204 = pneg %p57
        $region34: #{tpu_custom_call.1} parent=31 // pred_check_branch
          %206 = sbr.rel (%p204) target = $region36
        $region35: #{tpu_custom_call.1} parent=31 // pred_region
          %207 = dma.done %s200, 512
        $region36: #{tpu_custom_call.1} parent=31 // pred_fallthru
          _
        // Predicated region
        $region37: #{tpu_custom_call.1} parent=31 // pred_check
          %p208 = pneg %p78
        $region38: #{tpu_custom_call.1} parent=31 // pred_check_branch
          %210 = sbr.rel (%p208) target = $region40
        $region39: #{tpu_custom_call.1} parent=31 // pred_region
          %211 = dma.done [#allocation6], 32
        $region40: #{tpu_custom_call.1} parent=31 // pred_fallthru
          _
        // Predicated region
        $region41: #{tpu_custom_call.1} parent=31 // pred_check
          %p212 = pneg %p99
        $region42: #{tpu_custom_call.1} parent=31 // pred_check_branch
          %214 = sbr.rel (%p212) target = $region44
        $region43: #{tpu_custom_call.1} parent=31 // pred_region
          %215 = dma.done [#allocation9], 16
        $region44: #{tpu_custom_call.1} parent=31 // pred_fallthru
          _
        %216 = sfence
        %s217 = sand.u32 %s44, 1
        %s218 = scalar_lea.sflag [#allocation4], %s217
        %s219 = sand.u32 %s44, 1
        %s220 = smul.addr %s219, 32
        %s221 = scalar_lea.vmem [#allocation3], %s220
        %p222 = pneg %p57
        %p223 = pneg %p54
        %p224 = pneg %p78
        %p225 = pneg %p75
        %p226 = pneg %p99
        %p227 = pneg %p96
        %p228 = pneg %p127
        %p229 = pneg %p124
        %s230 = sand.u32 %s114, 1
        %s231 = scalar_lea.sflag [#allocation5], %s230
        %s232 = sand.u32 %s114, 1
        %s233 = smul.addr %s232, 32
        %s234 = scalar_lea.vmem [#allocation10], %s233
        %s235 = smul.u32 2, %s27
        %s236 = smul.u32 2, %s27
        %p237 = scmp.eq.s32.totalorder %s27, 0
        // Predicated region
        $region45: #{tpu_custom_call.1} parent=31 // pred_check
          %p238 = pneg %p237
        $region46: #{tpu_custom_call.1} parent=31 // pred_check_branch
          %240 = sbr.rel (%p238) target = $region48
        $region47: #{tpu_custom_call.1} parent=31 // pred_region
          %v241 = vld [vmem:[%s203] sm:$0xff]
          %v242 = vld [vmem:[%s203 + $0x8] sm:$0xff]
          %v243 = vld [vmem:[%s203 + $0x10] sm:$0xff]
          %v244 = vld [vmem:[%s203 + $0x18] sm:$0xff]
          %vm245 = vcmask 179200
          %246 = vst.msk [vmem:[#allocation2] sm:$0xff] %vm245, 0.0
          %247 = vst.msk [vmem:[#allocation2 + $0x8] sm:$0xff] %vm245, 0.0
          %vm248 = vcmask 177152
          %249 = vst.msk [vmem:[#allocation2 + $0x10] sm:$0x3f] %vm248, 0.0
          %250 = vst.msk [vmem:[#allocation2 + $0x18] sm:$0xff] %vm245, 0.0
          %251 = vst.msk [vmem:[#allocation2 + $0x20] sm:$0xff] %vm245, 0.0
          %252 = vst.msk [vmem:[#allocation2 + $0x28] sm:$0x3f] %vm248, 0.0
          %257 = vrot.lane.b32.xlu0 %v241, 3
          %v258 = vpop.permute.xlu0 %257
          %259 = vrot.lane.b32.xlu0 %v242, 3
          %v260 = vpop.permute.xlu0 %259
          %261 = vrot.lane.b32.xlu0 %v243, 3
          %v262 = vpop.permute.xlu0 %261
          %263 = vrot.lane.b32.xlu0 %v244, 3
          %v264 = vpop.permute.xlu0 %263
          %vm269 = vcmask 154648
          %270 = vst.msk [vmem:[#allocation2 + $0x3] sm:$0xff] %vm269, %v258
          %271 = vst.msk [vmem:[#allocation2 + $0xb] sm:$0xff] %vm269, %v260
          %272 = vst.msk [vmem:[#allocation2 + $0x1b] sm:$0xff] %vm269, %v262
          %273 = vst.msk [vmem:[#allocation2 + $0x23] sm:$0xff] %vm269, %v264
          %v274 = vld [vmem:[#allocation2] sm:$0xff]
          %v275 = vld [vmem:[#allocation2 + $0x8] sm:$0xff]
          %v276 = vld [vmem:[#allocation2 + $0x10] sm:$0x3f]
          %v277 = vld [vmem:[#allocation2 + $0x18] sm:$0xff]
          %v278 = vld [vmem:[#allocation2 + $0x20] sm:$0xff]
          %v279 = vld [vmem:[#allocation2 + $0x28] sm:$0x3f]
          %s280 = sld [smem:[#allocation7]]
          %v281 = vstv %s280
          %v282 = vmul.f32 %v281, %v274
          %v283 = vmul.f32 %v281, %v275
          %v284 = vadd.f32 %v282, 0.0
          %v285 = vadd.f32 %v283, 0.0
          %s286 = sld [smem:[#allocation7 + $0x80]]
          %v287 = vstv %s286
          %v288 = vmul.f32 %v287, %v277
          %v289 = vmul.f32 %v287, %v278
          %v290 = vadd.f32 %v288, 0.0
          %v291 = vadd.f32 %v289, 0.0
          %s292 = sld [smem:[#allocation7 + $0x7]]
          %v293 = vstv %s292
          %v294 = vmul.f32 %v293, %v274
          %v295 = vmul.f32 %v293, %v275
          %v296 = vmul.f32 %v293, %v276
          %vm300 = vcmask 1046528
          %v301 = vrot.slane %v294, 1
          %v302 = vrot.slane %v295, 1
          %v303 = vsel %vm300, %v301, %v302
          %v304 = vrot.slane %v296, 1
          %v305 = vsel %vm300, %v302, %v304
          %v308 = vadd.f32 %v284, %v303
          %v309 = vadd.f32 %v285, %v305
          %s310 = sld [smem:[#allocation7 + $0x87]]
          %v311 = vstv %s310
          %v312 = vmul.f32 %v311, %v277
          %v313 = vmul.f32 %v311, %v278
          %v314 = vmul.f32 %v311, %v279
          %v318 = vrot.slane %v312, 1
          %v319 = vrot.slane %v313, 1
          %v320 = vsel %vm300, %v318, %v319
          %v321 = vrot.slane %v314, 1
          %v322 = vsel %vm300, %v319, %v321
          %v325 = vadd.f32 %v290, %v320
          %v326 = vadd.f32 %v291, %v322
          %s327 = sld [smem:[#allocation7 + $0xe]]
          %v328 = vstv %s327
          %v329 = vmul.f32 %v328, %v274
          %v330 = vmul.f32 %v328, %v275
          %v331 = vmul.f32 %v328, %v276
          %vm335 = vcmask 1045504
          %v336 = vrot.slane %v329, 2
          %v337 = vrot.slane %v330, 2
          %v338 = vsel %vm335, %v336, %v337
          %v339 = vrot.slane %v331, 2
          %v340 = vsel %vm335, %v337, %v339
          %v343 = vadd.f32 %v308, %v338
          %v344 = vadd.f32 %v309, %v340
          %s345 = sld [smem:[#allocation7 + $0x8e]]
          %v346 = vstv %s345
          %v347 = vmul.f32 %v346, %v277
          %v348 = vmul.f32 %v346, %v278
          %v349 = vmul.f32 %v346, %v279
          %v353 = vrot.slane %v347, 2
          %v354 = vrot.slane %v348, 2
          %v355 = vsel %vm335, %v353, %v354
          %v356 = vrot.slane %v349, 2
          %v357 = vsel %vm335, %v354, %v356
          %v360 = vadd.f32 %v325, %v355
          %v361 = vadd.f32 %v326, %v357
          %s362 = sld [smem:[#allocation7 + $0x15]]
          %v363 = vstv %s362
          %v364 = vmul.f32 %v363, %v274
          %v365 = vmul.f32 %v363, %v275
          %v366 = vmul.f32 %v363, %v276
          %vm370 = vcmask 1044480
          %v371 = vrot.slane %v364, 3
          %v372 = vrot.slane %v365, 3
          %v373 = vsel %vm370, %v371, %v372
          %v374 = vrot.slane %v366, 3
          %v375 = vsel %vm370, %v372, %v374
          %v378 = vadd.f32 %v343, %v373
          %v379 = vadd.f32 %v344, %v375
          %s380 = sld [smem:[#allocation7 + $0x95]]
          %v381 = vstv %s380
          %v382 = vmul.f32 %v381, %v277
          %v383 = vmul.f32 %v381, %v278
          %v384 = vmul.f32 %v381, %v279
          %v388 = vrot.slane %v382, 3
          %v389 = vrot.slane %v383, 3
          %v390 = vsel %vm370, %v388, %v389
          %v391 = vrot.slane %v384, 3
          %v392 = vsel %vm370, %v389, %v391
          %v395 = vadd.f32 %v360, %v390
          %v396 = vadd.f32 %v361, %v392
          %s397 = sld [smem:[#allocation7 + $0x1c]]
          %v398 = vstv %s397
          %v399 = vmul.f32 %v398, %v274
          %v400 = vmul.f32 %v398, %v275
          %v401 = vmul.f32 %v398, %v276
          %vm405 = vcmask 1043456
          %v406 = vrot.slane %v399, 4
          %v407 = vrot.slane %v400, 4
          %v408 = vsel %vm405, %v406, %v407
          %v409 = vrot.slane %v401, 4
          %v410 = vsel %vm405, %v407, %v409
          %v413 = vadd.f32 %v378, %v408
          %v414 = vadd.f32 %v379, %v410
          %s415 = sld [smem:[#allocation7 + $0x9c]]
          %v416 = vstv %s415
          %v417 = vmul.f32 %v416, %v277
          %v418 = vmul.f32 %v416, %v278
          %v419 = vmul.f32 %v416, %v279
          %v423 = vrot.slane %v417, 4
          %v424 = vrot.slane %v418, 4
          %v425 = vsel %vm405, %v423, %v424
          %v426 = vrot.slane %v419, 4
          %v427 = vsel %vm405, %v424, %v426
          %v430 = vadd.f32 %v395, %v425
          %v431 = vadd.f32 %v396, %v427
          %s432 = sld [smem:[#allocation7 + $0x23]]
          %v433 = vstv %s432
          %v434 = vmul.f32 %v433, %v274
          %v435 = vmul.f32 %v433, %v275
          %v436 = vmul.f32 %v433, %v276
          %vm440 = vcmask 1042432
          %v441 = vrot.slane %v434, 5
          %v442 = vrot.slane %v435, 5
          %v443 = vsel %vm440, %v441, %v442
          %v444 = vrot.slane %v436, 5
          %v445 = vsel %vm440, %v442, %v444
          %v448 = vadd.f32 %v413, %v443
          %v449 = vadd.f32 %v414, %v445
          %s450 = sld [smem:[#allocation7 + $0xa3]]
          %v451 = vstv %s450
          %v452 = vmul.f32 %v451, %v277
          %v453 = vmul.f32 %v451, %v278
          %v454 = vmul.f32 %v451, %v279
          %v458 = vrot.slane %v452, 5
          %v459 = vrot.slane %v453, 5
          %v460 = vsel %vm440, %v458, %v459
          %v461 = vrot.slane %v454, 5
          %v462 = vsel %vm440, %v459, %v461
          %v465 = vadd.f32 %v430, %v460
          %v466 = vadd.f32 %v431, %v462
          %s467 = sld [smem:[#allocation7 + $0x2a]]
          %v468 = vstv %s467
          %v469 = vmul.f32 %v468, %v274
          %v470 = vmul.f32 %v468, %v275
          %v471 = vmul.f32 %v468, %v276
          %vm475 = vcmask 1041408
          %v476 = vrot.slane %v469, 6
          %v477 = vrot.slane %v470, 6
          %v478 = vsel %vm475, %v476, %v477
          %v479 = vrot.slane %v471, 6
          %v480 = vsel %vm475, %v477, %v479
          %v483 = vadd.f32 %v448, %v478
          %v484 = vadd.f32 %v449, %v480
          %s485 = sld [smem:[#allocation7 + $0xaa]]
          %v486 = vstv %s485
          %v487 = vmul.f32 %v486, %v277
          %v488 = vmul.f32 %v486, %v278
          %v489 = vmul.f32 %v486, %v279
          %v493 = vrot.slane %v487, 6
          %v494 = vrot.slane %v488, 6
          %v495 = vsel %vm475, %v493, %v494
          %v496 = vrot.slane %v489, 6
          %v497 = vsel %vm475, %v494, %v496
          %v500 = vadd.f32 %v465, %v495
          %v501 = vadd.f32 %v466, %v497
          %s502 = sld [smem:[#allocation7 + $0x1]]
          %v503 = vstv %s502
          %v504 = vmul.f32 %v503, %v274
          %v505 = vmul.f32 %v503, %v275
          %508 = vrot.lane.b32.xlu0 %v504, 127
          %v509 = vpop.permute.xlu0 %508
          %510 = vrot.lane.b32.xlu0 %v505, 127
          %v511 = vpop.permute.xlu0 %510
          %v514 = vadd.f32 %v483, %v509
          %v515 = vadd.f32 %v484, %v511
          %s516 = sld [smem:[#allocation7 + $0x81]]
          %v517 = vstv %s516
          %v518 = vmul.f32 %v517, %v277
          %v519 = vmul.f32 %v517, %v278
          %522 = vrot.lane.b32.xlu0 %v518, 127
          %v523 = vpop.permute.xlu0 %522
          %524 = vrot.lane.b32.xlu0 %v519, 127
          %v525 = vpop.permute.xlu0 %524
          %v528 = vadd.f32 %v500, %v523
          %v529 = vadd.f32 %v501, %v525
          %s530 = sld [smem:[#allocation7 + $0x8]]
          %v531 = vstv %s530
          %v532 = vmul.f32 %v531, %v274
          %v533 = vmul.f32 %v531, %v275
          %v534 = vmul.f32 %v531, %v276
          %v538 = vrot.slane %v532, 1
          %v539 = vrot.slane %v533, 1
          %v540 = vsel %vm300, %v538, %v539
          %v541 = vrot.slane %v534, 1
          %v542 = vsel %vm300, %v539, %v541
          %543 = vrot.lane.b32.xlu0 %v540, 127
          %v544 = vpop.permute.xlu0 %543
          %545 = vrot.lane.b32.xlu0 %v542, 127
          %v546 = vpop.permute.xlu0 %545
          %v549 = vadd.f32 %v514, %v544
          %v550 = vadd.f32 %v515, %v546
          %s551 = sld [smem:[#allocation7 + $0x88]]
          %v552 = vstv %s551
          %v553 = vmul.f32 %v552, %v277
          %v554 = vmul.f32 %v552, %v278
          %v555 = vmul.f32 %v552, %v279
          %v559 = vrot.slane %v553, 1
          %v560 = vrot.slane %v554, 1
          %v561 = vsel %vm300, %v559, %v560
          %v562 = vrot.slane %v555, 1
          %v563 = vsel %vm300, %v560, %v562
          %564 = vrot.lane.b32.xlu0 %v561, 127
          %v565 = vpop.permute.xlu0 %564
          %566 = vrot.lane.b32.xlu0 %v563, 127
          %v567 = vpop.permute.xlu0 %566
          %v570 = vadd.f32 %v528, %v565
          %v571 = vadd.f32 %v529, %v567
          %s572 = sld [smem:[#allocation7 + $0xf]]
          %v573 = vstv %s572
          %v574 = vmul.f32 %v573, %v274
          %v575 = vmul.f32 %v573, %v275
          %v576 = vmul.f32 %v573, %v276
          %v580 = vrot.slane %v574, 2
          %v581 = vrot.slane %v575, 2
          %v582 = vsel %vm335, %v580, %v581
          %v583 = vrot.slane %v576, 2
          %v584 = vsel %vm335, %v581, %v583
          %585 = vrot.lane.b32.xlu0 %v582, 127
          %v586 = vpop.permute.xlu0 %585
          %587 = vrot.lane.b32.xlu0 %v584, 127
          %v588 = vpop.permute.xlu0 %587
          %v591 = vadd.f32 %v549, %v586
          %v592 = vadd.f32 %v550, %v588
          %s593 = sld [smem:[#allocation7 + $0x8f]]
          %v594 = vstv %s593
          %v595 = vmul.f32 %v594, %v277
          %v596 = vmul.f32 %v594, %v278
          %v597 = vmul.f32 %v594, %v279
          %v601 = vrot.slane %v595, 2
          %v602 = vrot.slane %v596, 2
          %v603 = vsel %vm335, %v601, %v602
          %v604 = vrot.slane %v597, 2
          %v605 = vsel %vm335, %v602, %v604
          %606 = vrot.lane.b32.xlu0 %v603, 127
          %v607 = vpop.permute.xlu0 %606
          %608 = vrot.lane.b32.xlu0 %v605, 127
          %v609 = vpop.permute.xlu0 %608
          %v612 = vadd.f32 %v570, %v607
          %v613 = vadd.f32 %v571, %v609
          %s614 = sld [smem:[#allocation7 + $0x16]]
          %v615 = vstv %s614
          %v616 = vmul.f32 %v615, %v274
          %v617 = vmul.f32 %v615, %v275
          %v618 = vmul.f32 %v615, %v276
          %v622 = vrot.slane %v616, 3
          %v623 = vrot.slane %v617, 3
          %v624 = vsel %vm370, %v622, %v623
          %v625 = vrot.slane %v618, 3
          %v626 = vsel %vm370, %v623, %v625
          %627 = vrot.lane.b32.xlu0 %v624, 127
          %v628 = vpop.permute.xlu0 %627
          %629 = vrot.lane.b32.xlu0 %v626, 127
          %v630 = vpop.permute.xlu0 %629
          %v633 = vadd.f32 %v591, %v628
          %v634 = vadd.f32 %v592, %v630
          %s635 = sld [smem:[#allocation7 + $0x96]]
          %v636 = vstv %s635
          %v637 = vmul.f32 %v636, %v277
          %v638 = vmul.f32 %v636, %v278
          %v639 = vmul.f32 %v636, %v279
          %v643 = vrot.slane %v637, 3
          %v644 = vrot.slane %v638, 3
          %v645 = vsel %vm370, %v643, %v644
          %v646 = vrot.slane %v639, 3
          %v647 = vsel %vm370, %v644, %v646
          %648 = vrot.lane.b32.xlu0 %v645, 127
          %v649 = vpop.permute.xlu0 %648
          %650 = vrot.lane.b32.xlu0 %v647, 127
          %v651 = vpop.permute.xlu0 %650
          %v654 = vadd.f32 %v612, %v649
          %v655 = vadd.f32 %v613, %v651
          %s656 = sld [smem:[#allocation7 + $0x1d]]
          %v657 = vstv %s656
          %v658 = vmul.f32 %v657, %v274
          %v659 = vmul.f32 %v657, %v275
          %v660 = vmul.f32 %v657, %v276
          %v664 = vrot.slane %v658, 4
          %v665 = vrot.slane %v659, 4
          %v666 = vsel %vm405, %v664, %v665
          %v667 = vrot.slane %v660, 4
          %v668 = vsel %vm405, %v665, %v667
          %669 = vrot.lane.b32.xlu0 %v666, 127
          %v670 = vpop.permute.xlu0 %669
          %671 = vrot.lane.b32.xlu0 %v668, 127
          %v672 = vpop.permute.xlu0 %671
          %v675 = vadd.f32 %v633, %v670
          %v676 = vadd.f32 %v634, %v672
          %s677 = sld [smem:[#allocation7 + $0x9d]]
          %v678 = vstv %s677
          %v679 = vmul.f32 %v678, %v277
          %v680 = vmul.f32 %v678, %v278
          %v681 = vmul.f32 %v678, %v279
          %v685 = vrot.slane %v679, 4
          %v686 = vrot.slane %v680, 4
          %v687 = vsel %vm405, %v685, %v686
          %v688 = vrot.slane %v681, 4
          %v689 = vsel %vm405, %v686, %v688
          %690 = vrot.lane.b32.xlu0 %v687, 127
          %v691 = vpop.permute.xlu0 %690
          %692 = vrot.lane.b32.xlu0 %v689, 127
          %v693 = vpop.permute.xlu0 %692
          %v696 = vadd.f32 %v654, %v691
          %v697 = vadd.f32 %v655, %v693
          %s698 = sld [smem:[#allocation7 + $0x24]]
          %v699 = vstv %s698
          %v700 = vmul.f32 %v699, %v274
          %v701 = vmul.f32 %v699, %v275
          %v702 = vmul.f32 %v699, %v276
          %v706 = vrot.slane %v700, 5
          %v707 = vrot.slane %v701, 5
          %v708 = vsel %vm440, %v706, %v707
          %v709 = vrot.slane %v702, 5
          %v710 = vsel %vm440, %v707, %v709
          %711 = vrot.lane.b32.xlu0 %v708, 127
          %v712 = vpop.permute.xlu0 %711
          %713 = vrot.lane.b32.xlu0 %v710, 127
          %v714 = vpop.permute.xlu0 %713
          %v717 = vadd.f32 %v675, %v712
          %v718 = vadd.f32 %v676, %v714
          %s719 = sld [smem:[#allocation7 + $0xa4]]
          %v720 = vstv %s719
          %v721 = vmul.f32 %v720, %v277
          %v722 = vmul.f32 %v720, %v278
          %v723 = vmul.f32 %v720, %v279
          %v727 = vrot.slane %v721, 5
          %v728 = vrot.slane %v722, 5
          %v729 = vsel %vm440, %v727, %v728
          %v730 = vrot.slane %v723, 5
          %v731 = vsel %vm440, %v728, %v730
          %732 = vrot.lane.b32.xlu0 %v729, 127
          %v733 = vpop.permute.xlu0 %732
          %734 = vrot.lane.b32.xlu0 %v731, 127
          %v735 = vpop.permute.xlu0 %734
          %v738 = vadd.f32 %v696, %v733
          %v739 = vadd.f32 %v697, %v735
          %s740 = sld [smem:[#allocation7 + $0x2b]]
          %v741 = vstv %s740
          %v742 = vmul.f32 %v741, %v274
          %v743 = vmul.f32 %v741, %v275
          %v744 = vmul.f32 %v741, %v276
          %v748 = vrot.slane %v742, 6
          %v749 = vrot.slane %v743, 6
          %v750 = vsel %vm475, %v748, %v749
          %v751 = vrot.slane %v744, 6
          %v752 = vsel %vm475, %v749, %v751
          %753 = vrot.lane.b32.xlu0 %v750, 127
          %v754 = vpop.permute.xlu0 %753
          %755 = vrot.lane.b32.xlu0 %v752, 127
          %v756 = vpop.permute.xlu0 %755
          %v759 = vadd.f32 %v717, %v754
          %v760 = vadd.f32 %v718, %v756
          %s761 = sld [smem:[#allocation7 + $0xab]]
          %v762 = vstv %s761
          %v763 = vmul.f32 %v762, %v277
          %v764 = vmul.f32 %v762, %v278
          %v765 = vmul.f32 %v762, %v279
          %v769 = vrot.slane %v763, 6
          %v770 = vrot.slane %v764, 6
          %v771 = vsel %vm475, %v769, %v770
          %v772 = vrot.slane %v765, 6
          %v773 = vsel %vm475, %v770, %v772
          %774 = vrot.lane.b32.xlu0 %v771, 127
          %v775 = vpop.permute.xlu0 %774
          %776 = vrot.lane.b32.xlu0 %v773, 127
          %v777 = vpop.permute.xlu0 %776
          %v780 = vadd.f32 %v738, %v775
          %v781 = vadd.f32 %v739, %v777
          %s782 = sld [smem:[#allocation7 + $0x2]]
          %v783 = vstv %s782
          %v784 = vmul.f32 %v783, %v274
          %v785 = vmul.f32 %v783, %v275
          %788 = vrot.lane.b32.xlu0 %v784, 126
          %v789 = vpop.permute.xlu0 %788
          %790 = vrot.lane.b32.xlu0 %v785, 126
          %v791 = vpop.permute.xlu0 %790
          %v794 = vadd.f32 %v759, %v789
          %v795 = vadd.f32 %v760, %v791
          %s796 = sld [smem:[#allocation7 + $0x82]]
          %v797 = vstv %s796
          %v798 = vmul.f32 %v797, %v277
          %v799 = vmul.f32 %v797, %v278
          %802 = vrot.lane.b32.xlu0 %v798, 126
          %v803 = vpop.permute.xlu0 %802
          %804 = vrot.lane.b32.xlu0 %v799, 126
          %v805 = vpop.permute.xlu0 %804
          %v808 = vadd.f32 %v780, %v803
          %v809 = vadd.f32 %v781, %v805
          %s810 = sld [smem:[#allocation7 + $0x9]]
          %v811 = vstv %s810
          %v812 = vmul.f32 %v811, %v274
          %v813 = vmul.f32 %v811, %v275
          %v814 = vmul.f32 %v811, %v276
          %v818 = vrot.slane %v812, 1
          %v819 = vrot.slane %v813, 1
          %v820 = vsel %vm300, %v818, %v819
          %v821 = vrot.slane %v814, 1
          %v822 = vsel %vm300, %v819, %v821
          %823 = vrot.lane.b32.xlu0 %v820, 126
          %v824 = vpop.permute.xlu0 %823
          %825 = vrot.lane.b32.xlu0 %v822, 126
          %v826 = vpop.permute.xlu0 %825
          %v829 = vadd.f32 %v794, %v824
          %v830 = vadd.f32 %v795, %v826
          %s831 = sld [smem:[#allocation7 + $0x89]]
          %v832 = vstv %s831
          %v833 = vmul.f32 %v832, %v277
          %v834 = vmul.f32 %v832, %v278
          %v835 = vmul.f32 %v832, %v279
          %v839 = vrot.slane %v833, 1
          %v840 = vrot.slane %v834, 1
          %v841 = vsel %vm300, %v839, %v840
          %v842 = vrot.slane %v835, 1
          %v843 = vsel %vm300, %v840, %v842
          %844 = vrot.lane.b32.xlu0 %v841, 126
          %v845 = vpop.permute.xlu0 %844
          %846 = vrot.lane.b32.xlu0 %v843, 126
          %v847 = vpop.permute.xlu0 %846
          %v850 = vadd.f32 %v808, %v845
          %v851 = vadd.f32 %v809, %v847
          %s852 = sld [smem:[#allocation7 + $0x10]]
          %v853 = vstv %s852
          %v854 = vmul.f32 %v853, %v274
          %v855 = vmul.f32 %v853, %v275
          %v856 = vmul.f32 %v853, %v276
          %v860 = vrot.slane %v854, 2
          %v861 = vrot.slane %v855, 2
          %v862 = vsel %vm335, %v860, %v861
          %v863 = vrot.slane %v856, 2
          %v864 = vsel %vm335, %v861, %v863
          %865 = vrot.lane.b32.xlu0 %v862, 126
          %v866 = vpop.permute.xlu0 %865
          %867 = vrot.lane.b32.xlu0 %v864, 126
          %v868 = vpop.permute.xlu0 %867
          %v871 = vadd.f32 %v829, %v866
          %v872 = vadd.f32 %v830, %v868
          %s873 = sld [smem:[#allocation7 + $0x90]]
          %v874 = vstv %s873
          %v875 = vmul.f32 %v874, %v277
          %v876 = vmul.f32 %v874, %v278
          %v877 = vmul.f32 %v874, %v279
          %v881 = vrot.slane %v875, 2
          %v882 = vrot.slane %v876, 2
          %v883 = vsel %vm335, %v881, %v882
          %v884 = vrot.slane %v877, 2
          %v885 = vsel %vm335, %v882, %v884
          %886 = vrot.lane.b32.xlu0 %v883, 126
          %v887 = vpop.permute.xlu0 %886
          %888 = vrot.lane.b32.xlu0 %v885, 126
          %v889 = vpop.permute.xlu0 %888
          %v892 = vadd.f32 %v850, %v887
          %v893 = vadd.f32 %v851, %v889
          %v894 = vadd.f32 %v274, 0.0
          %v895 = vadd.f32 %v275, 0.0
          %v896 = vadd.f32 %v276, 0.0
          %v897 = vadd.f32 %v277, 0.0
          %v898 = vadd.f32 %v278, 0.0
          %v899 = vadd.f32 %v279, 0.0
          %s900 = sld [smem:[#allocation7 + $0x17]]
          %v901 = vstv %s900
          %v902 = vmul.f32 %v901, %v274
          %v903 = vmul.f32 %v901, %v275
          %v904 = vmul.f32 %v901, %v276
          %v908 = vrot.slane %v902, 3
          %v909 = vrot.slane %v903, 3
          %v910 = vsel %vm370, %v908, %v909
          %v911 = vrot.slane %v904, 3
          %v912 = vsel %vm370, %v909, %v911
          %913 = vrot.lane.b32.xlu0 %v910, 126
          %v914 = vpop.permute.xlu0 %913
          %915 = vrot.lane.b32.xlu0 %v912, 126
          %v916 = vpop.permute.xlu0 %915
          %v919 = vadd.f32 %v871, %v914
          %v920 = vadd.f32 %v872, %v916
          %s921 = sld [smem:[#allocation7 + $0x97]]
          %v922 = vstv %s921
          %v923 = vmul.f32 %v922, %v277
          %v924 = vmul.f32 %v922, %v278
          %v925 = vmul.f32 %v922, %v279
          %v929 = vrot.slane %v923, 3
          %v930 = vrot.slane %v924, 3
          %v931 = vsel %vm370, %v929, %v930
          %v932 = vrot.slane %v925, 3
          %v933 = vsel %vm370, %v930, %v932
          %934 = vrot.lane.b32.xlu0 %v931, 126
          %v935 = vpop.permute.xlu0 %934
          %936 = vrot.lane.b32.xlu0 %v933, 126
          %v937 = vpop.permute.xlu0 %936
          %v940 = vadd.f32 %v892, %v935
          %v941 = vadd.f32 %v893, %v937
          %v942 = vmul.f32 %v274, 2.0
          %v943 = vmul.f32 %v275, 2.0
          %v944 = vmul.f32 %v276, 2.0
          %v945 = vmul.f32 %v277, 2.0
          %v946 = vmul.f32 %v278, 2.0
          %v947 = vmul.f32 %v279, 2.0
          %v954 = vrot.slane %v942, 1
          %v955 = vrot.slane %v943, 1
          %v956 = vsel %vm300, %v954, %v955
          %v957 = vrot.slane %v944, 1
          %v958 = vsel %vm300, %v955, %v957
          %v959 = vrot.slane %v945, 1
          %v960 = vrot.slane %v946, 1
          %v961 = vsel %vm300, %v959, %v960
          %v962 = vrot.slane %v947, 1
          %v963 = vsel %vm300, %v960, %v962
          %v970 = vadd.f32 %v894, %v956
          %v971 = vadd.f32 %v895, %v958
          %v972 = vadd.f32 %v896, %v957
          %v973 = vadd.f32 %v897, %v961
          %v974 = vadd.f32 %v898, %v963
          %v975 = vadd.f32 %v899, %v962
          %s976 = sld [smem:[#allocation7 + $0x1e]]
          %v977 = vstv %s976
          %v978 = vmul.f32 %v977, %v274
          %v979 = vmul.f32 %v977, %v275
          %v980 = vmul.f32 %v977, %v276
          %v984 = vrot.slane %v978, 4
          %v985 = vrot.slane %v979, 4
          %v986 = vsel %vm405, %v984, %v985
          %v987 = vrot.slane %v980, 4
          %v988 = vsel %vm405, %v985, %v987
          %989 = vrot.lane.b32.xlu0 %v986, 126
          %v990 = vpop.permute.xlu0 %989
          %991 = vrot.lane.b32.xlu0 %v988, 126
          %v992 = vpop.permute.xlu0 %991
          %v995 = vadd.f32 %v919, %v990
          %v996 = vadd.f32 %v920, %v992
          %s997 = sld [smem:[#allocation7 + $0x9e]]
          %v998 = vstv %s997
          %v999 = vmul.f32 %v998, %v277
          %v1000 = vmul.f32 %v998, %v278
          %v1001 = vmul.f32 %v998, %v279
          %v1005 = vrot.slane %v999, 4
          %v1006 = vrot.slane %v1000, 4
          %v1007 = vsel %vm405, %v1005, %v1006
          %v1008 = vrot.slane %v1001, 4
          %v1009 = vsel %vm405, %v1006, %v1008
          %1010 = vrot.lane.b32.xlu0 %v1007, 126
          %v1011 = vpop.permute.xlu0 %1010
          %1012 = vrot.lane.b32.xlu0 %v1009, 126
          %v1013 = vpop.permute.xlu0 %1012
          %v1016 = vadd.f32 %v940, %v1011
          %v1017 = vadd.f32 %v941, %v1013
          %v1024 = vrot.slane %v274, 2
          %v1025 = vrot.slane %v275, 2
          %v1026 = vsel %vm335, %v1024, %v1025
          %v1027 = vrot.slane %v276, 2
          %v1028 = vsel %vm335, %v1025, %v1027
          %v1029 = vrot.slane %v277, 2
          %v1030 = vrot.slane %v278, 2
          %v1031 = vsel %vm335, %v1029, %v1030
          %v1032 = vrot.slane %v279, 2
          %v1033 = vsel %vm335, %v1030, %v1032
          %v1040 = vadd.f32 %v970, %v1026
          %v1041 = vadd.f32 %v971, %v1028
          %v1042 = vadd.f32 %v972, %v1027
          %v1043 = vadd.f32 %v973, %v1031
          %v1044 = vadd.f32 %v974, %v1033
          %v1045 = vadd.f32 %v975, %v1032
          %v1046 = vsub.f32 %v894, %v1026
          %v1047 = vsub.f32 %v895, %v1028
          %v1048 = vsub.f32 %v896, %v1027
          %v1049 = vsub.f32 %v897, %v1031
          %v1050 = vsub.f32 %v898, %v1033
          %v1051 = vsub.f32 %v899, %v1032
          %s1052 = sld [smem:[#allocation7 + $0x25]]
          %v1053 = vstv %s1052
          %v1054 = vmul.f32 %v1053, %v274
          %v1055 = vmul.f32 %v1053, %v275
          %v1056 = vmul.f32 %v1053, %v276
          %v1060 = vrot.slane %v1054, 5
          %v1061 = vrot.slane %v1055, 5
          %v1062 = vsel %vm440, %v1060, %v1061
          %v1063 = vrot.slane %v1056, 5
          %v1064 = vsel %vm440, %v1061, %v1063
          %1065 = vrot.lane.b32.xlu0 %v1062, 126
          %v1066 = vpop.permute.xlu0 %1065
          %1067 = vrot.lane.b32.xlu0 %v1064, 126
          %v1068 = vpop.permute.xlu0 %1067
          %v1071 = vadd.f32 %v995, %v1066
          %v1072 = vadd.f32 %v996, %v1068
          %s1073 = sld [smem:[#allocation7 + $0xa5]]
          %v1074 = vstv %s1073
          %v1075 = vmul.f32 %v1074, %v277
          %v1076 = vmul.f32 %v1074, %v278
          %v1077 = vmul.f32 %v1074, %v279
          %v1081 = vrot.slane %v1075, 5
          %v1082 = vrot.slane %v1076, 5
          %v1083 = vsel %vm440, %v1081, %v1082
          %v1084 = vrot.slane %v1077, 5
          %v1085 = vsel %vm440, %v1082, %v1084
          %1086 = vrot.lane.b32.xlu0 %v1083, 126
          %v1087 = vpop.permute.xlu0 %1086
          %1088 = vrot.lane.b32.xlu0 %v1085, 126
          %v1089 = vpop.permute.xlu0 %1088
          %v1092 = vadd.f32 %v1016, %v1087
          %v1093 = vadd.f32 %v1017, %v1089
          %s1094 = sld [smem:[#allocation7 + $0x2c]]
          %v1095 = vstv %s1094
          %v1096 = vmul.f32 %v1095, %v274
          %v1097 = vmul.f32 %v1095, %v275
          %v1098 = vmul.f32 %v1095, %v276
          %v1102 = vrot.slane %v1096, 6
          %v1103 = vrot.slane %v1097, 6
          %v1104 = vsel %vm475, %v1102, %v1103
          %v1105 = vrot.slane %v1098, 6
          %v1106 = vsel %vm475, %v1103, %v1105
          %1107 = vrot.lane.b32.xlu0 %v1104, 126
          %v1108 = vpop.permute.xlu0 %1107
          %1109 = vrot.lane.b32.xlu0 %v1106, 126
          %v1110 = vpop.permute.xlu0 %1109
          %v1113 = vadd.f32 %v1071, %v1108
          %v1114 = vadd.f32 %v1072, %v1110
          %s1115 = sld [smem:[#allocation7 + $0xac]]
          %v1116 = vstv %s1115
          %v1117 = vmul.f32 %v1116, %v277
          %v1118 = vmul.f32 %v1116, %v278
          %v1119 = vmul.f32 %v1116, %v279
          %v1123 = vrot.slane %v1117, 6
          %v1124 = vrot.slane %v1118, 6
          %v1125 = vsel %vm475, %v1123, %v1124
          %v1126 = vrot.slane %v1119, 6
          %v1127 = vsel %vm475, %v1124, %v1126
          %1128 = vrot.lane.b32.xlu0 %v1125, 126
          %v1129 = vpop.permute.xlu0 %1128
          %1130 = vrot.lane.b32.xlu0 %v1127, 126
          %v1131 = vpop.permute.xlu0 %1130
          %v1134 = vadd.f32 %v1092, %v1129
          %v1135 = vadd.f32 %v1093, %v1131
          %s1136 = sld [smem:[#allocation7 + $0x3]]
          %v1137 = vstv %s1136
          %v1138 = vmul.f32 %v1137, %v274
          %v1139 = vmul.f32 %v1137, %v275
          %1142 = vrot.lane.b32.xlu0 %v1138, 125
          %v1143 = vpop.permute.xlu0 %1142
          %1144 = vrot.lane.b32.xlu0 %v1139, 125
          %v1145 = vpop.permute.xlu0 %1144
          %v1148 = vadd.f32 %v1113, %v1143
          %v1149 = vadd.f32 %v1114, %v1145
          %s1150 = sld [smem:[#allocation7 + $0x83]]
          %v1151 = vstv %s1150
          %v1152 = vmul.f32 %v1151, %v277
          %v1153 = vmul.f32 %v1151, %v278
          %1156 = vrot.lane.b32.xlu0 %v1152, 125
          %v1157 = vpop.permute.xlu0 %1156
          %1158 = vrot.lane.b32.xlu0 %v1153, 125
          %v1159 = vpop.permute.xlu0 %1158
          %v1162 = vadd.f32 %v1134, %v1157
          %v1163 = vadd.f32 %v1135, %v1159
          %s1164 = sld [smem:[#allocation7 + $0xa]]
          %v1165 = vstv %s1164
          %v1166 = vmul.f32 %v1165, %v274
          %v1167 = vmul.f32 %v1165, %v275
          %v1168 = vmul.f32 %v1165, %v276
          %v1172 = vrot.slane %v1166, 1
          %v1173 = vrot.slane %v1167, 1
          %v1174 = vsel %vm300, %v1172, %v1173
          %v1175 = vrot.slane %v1168, 1
          %v1176 = vsel %vm300, %v1173, %v1175
          %1177 = vrot.lane.b32.xlu0 %v1174, 125
          %v1178 = vpop.permute.xlu0 %1177
          %1179 = vrot.lane.b32.xlu0 %v1176, 125
          %v1180 = vpop.permute.xlu0 %1179
          %v1183 = vadd.f32 %v1148, %v1178
          %v1184 = vadd.f32 %v1149, %v1180
          %s1185 = sld [smem:[#allocation7 + $0x8a]]
          %v1186 = vstv %s1185
          %v1187 = vmul.f32 %v1186, %v277
          %v1188 = vmul.f32 %v1186, %v278
          %v1189 = vmul.f32 %v1186, %v279
          %v1193 = vrot.slane %v1187, 1
          %v1194 = vrot.slane %v1188, 1
          %v1195 = vsel %vm300, %v1193, %v1194
          %v1196 = vrot.slane %v1189, 1
          %v1197 = vsel %vm300, %v1194, %v1196
          %1198 = vrot.lane.b32.xlu0 %v1195, 125
          %v1199 = vpop.permute.xlu0 %1198
          %1200 = vrot.lane.b32.xlu0 %v1197, 125
          %v1201 = vpop.permute.xlu0 %1200
          %v1204 = vadd.f32 %v1162, %v1199
          %v1205 = vadd.f32 %v1163, %v1201
          %s1206 = sld [smem:[#allocation7 + $0x11]]
          %v1207 = vstv %s1206
          %v1208 = vmul.f32 %v1207, %v274
          %v1209 = vmul.f32 %v1207, %v275
          %v1210 = vmul.f32 %v1207, %v276
          %v1214 = vrot.slane %v1208, 2
          %v1215 = vrot.slane %v1209, 2
          %v1216 = vsel %vm335, %v1214, %v1215
          %v1217 = vrot.slane %v1210, 2
          %v1218 = vsel %vm335, %v1215, %v1217
          %1219 = vrot.lane.b32.xlu0 %v1216, 125
          %v1220 = vpop.permute.xlu0 %1219
          %1221 = vrot.lane.b32.xlu0 %v1218, 125
          %v1222 = vpop.permute.xlu0 %1221
          %v1225 = vadd.f32 %v1183, %v1220
          %v1226 = vadd.f32 %v1184, %v1222
          %s1227 = sld [smem:[#allocation7 + $0x91]]
          %v1228 = vstv %s1227
          %v1229 = vmul.f32 %v1228, %v277
          %v1230 = vmul.f32 %v1228, %v278
          %v1231 = vmul.f32 %v1228, %v279
          %v1235 = vrot.slane %v1229, 2
          %v1236 = vrot.slane %v1230, 2
          %v1237 = vsel %vm335, %v1235, %v1236
          %v1238 = vrot.slane %v1231, 2
          %v1239 = vsel %vm335, %v1236, %v1238
          %1240 = vrot.lane.b32.xlu0 %v1237, 125
          %v1241 = vpop.permute.xlu0 %1240
          %1242 = vrot.lane.b32.xlu0 %v1239, 125
          %v1243 = vpop.permute.xlu0 %1242
          %v1246 = vadd.f32 %v1204, %v1241
          %v1247 = vadd.f32 %v1205, %v1243
          %1248 = vrot.lane.b32.xlu0 %v942, 127
          %v1249 = vpop.permute.xlu0 %1248
          %1250 = vrot.lane.b32.xlu0 %v943, 127
          %v1251 = vpop.permute.xlu0 %1250
          %1252 = vrot.lane.b32.xlu0 %v944, 127
          %v1253 = vpop.permute.xlu0 %1252
          %1254 = vrot.lane.b32.xlu0 %v945, 127
          %v1255 = vpop.permute.xlu0 %1254
          %1256 = vrot.lane.b32.xlu0 %v946, 127
          %v1257 = vpop.permute.xlu0 %1256
          %1258 = vrot.lane.b32.xlu0 %v947, 127
          %v1259 = vpop.permute.xlu0 %1258
          %v1266 = vadd.f32 %v1046, %v1249
          %v1267 = vadd.f32 %v1047, %v1251
          %v1268 = vadd.f32 %v1048, %v1253
          %v1269 = vadd.f32 %v1049, %v1255
          %v1270 = vadd.f32 %v1050, %v1257
          %v1271 = vadd.f32 %v1051, %v1259
          %vm1272 = vcmask 1040384
          %v1273 = vrot.slane %v274, 7
          %v1274 = vrot.slane %v275, 7
          %v1275 = vsel %vm1272, %v1273, %v1274
          %v1276 = vrot.slane %v276, 7
          %v1277 = vsel %vm1272, %v1274, %v1276
          %v1278 = vrot.slane %v277, 7
          %v1279 = vrot.slane %v278, 7
          %v1280 = vsel %vm1272, %v1278, %v1279
          %v1281 = vrot.slane %v279, 7
          %v1282 = vsel %vm1272, %v1279, %v1281
          %1283 = vrot.lane.b32.xlu0 %v1273, 127
          %v1284 = vpop.permute.xlu0 %1283
          %1285 = vrot.lane.b32.xlu0 %v1275, 127
          %v1286 = vpop.permute.xlu0 %1285
          %1287 = vrot.lane.b32.xlu0 %v1277, 127
          %v1288 = vpop.permute.xlu0 %1287
          %1289 = vrot.lane.b32.xlu0 %v1278, 127
          %v1290 = vpop.permute.xlu0 %1289
          %1291 = vrot.lane.b32.xlu0 %v1280, 127
          %v1292 = vpop.permute.xlu0 %1291
          %1293 = vrot.lane.b32.xlu0 %v1282, 127
          %v1294 = vpop.permute.xlu0 %1293
          %v1301 = vadd.f32 %v894, %v1284
          %v1302 = vadd.f32 %v895, %v1286
          %v1303 = vadd.f32 %v896, %v1288
          %v1304 = vadd.f32 %v897, %v1290
          %v1305 = vadd.f32 %v898, %v1292
          %v1306 = vadd.f32 %v899, %v1294
          %s1307 = sld [smem:[#allocation7 + $0x18]]
          %v1308 = vstv %s1307
          %v1309 = vmul.f32 %v1308, %v274
          %v1310 = vmul.f32 %v1308, %v275
          %v1311 = vmul.f32 %v1308, %v276
          %v1315 = vrot.slane %v1309, 3
          %v1316 = vrot.slane %v1310, 3
          %v1317 = vsel %vm370, %v1315, %v1316
          %v1318 = vrot.slane %v1311, 3
          %v1319 = vsel %vm370, %v1316, %v1318
          %1320 = vrot.lane.b32.xlu0 %v1317, 125
          %v1321 = vpop.permute.xlu0 %1320
          %1322 = vrot.lane.b32.xlu0 %v1319, 125
          %v1323 = vpop.permute.xlu0 %1322
          %v1326 = vadd.f32 %v1225, %v1321
          %v1327 = vadd.f32 %v1226, %v1323
          %s1328 = sld [smem:[#allocation7 + $0x98]]
          %v1329 = vstv %s1328
          %v1330 = vmul.f32 %v1329, %v277
          %v1331 = vmul.f32 %v1329, %v278
          %v1332 = vmul.f32 %v1329, %v279
          %v1336 = vrot.slane %v1330, 3
          %v1337 = vrot.slane %v1331, 3
          %v1338 = vsel %vm370, %v1336, %v1337
          %v1339 = vrot.slane %v1332, 3
          %v1340 = vsel %vm370, %v1337, %v1339
          %1341 = vrot.lane.b32.xlu0 %v1338, 125
          %v1342 = vpop.permute.xlu0 %1341
          %1343 = vrot.lane.b32.xlu0 %v1340, 125
          %v1344 = vpop.permute.xlu0 %1343
          %v1347 = vadd.f32 %v1246, %v1342
          %v1348 = vadd.f32 %v1247, %v1344
          %v1349 = vmul.f32 %v274, -4.0
          %v1350 = vmul.f32 %v275, -4.0
          %v1351 = vmul.f32 %v276, -4.0
          %v1352 = vmul.f32 %v277, -4.0
          %v1353 = vmul.f32 %v278, -4.0
          %v1354 = vmul.f32 %v279, -4.0
          %1361 = vrot.lane.b32.xlu0 %v1349, 127
          %v1362 = vpop.permute.xlu0 %1361
          %1363 = vrot.lane.b32.xlu0 %v1350, 127
          %v1364 = vpop.permute.xlu0 %1363
          %1365 = vrot.lane.b32.xlu0 %v1351, 127
          %v1366 = vpop.permute.xlu0 %1365
          %1367 = vrot.lane.b32.xlu0 %v1352, 127
          %v1368 = vpop.permute.xlu0 %1367
          %1369 = vrot.lane.b32.xlu0 %v1353, 127
          %v1370 = vpop.permute.xlu0 %1369
          %1371 = vrot.lane.b32.xlu0 %v1354, 127
          %v1372 = vpop.permute.xlu0 %1371
          %v1379 = vadd.f32 %v1301, %v1362
          %v1380 = vadd.f32 %v1302, %v1364
          %v1381 = vadd.f32 %v1303, %v1366
          %v1382 = vadd.f32 %v1304, %v1368
          %v1383 = vadd.f32 %v1305, %v1370
          %v1384 = vadd.f32 %v1306, %v1372
          %s1385 = sld [smem:[#allocation7 + $0x1f]]
          %v1386 = vstv %s1385
          %v1387 = vmul.f32 %v1386, %v274
          %v1388 = vmul.f32 %v1386, %v275
          %v1389 = vmul.f32 %v1386, %v276
          %v1393 = vrot.slane %v1387, 4
          %v1394 = vrot.slane %v1388, 4
          %v1395 = vsel %vm405, %v1393, %v1394
          %v1396 = vrot.slane %v1389, 4
          %v1397 = vsel %vm405, %v1394, %v1396
          %1398 = vrot.lane.b32.xlu0 %v1395, 125
          %v1399 = vpop.permute.xlu0 %1398
          %1400 = vrot.lane.b32.xlu0 %v1397, 125
          %v1401 = vpop.permute.xlu0 %1400
          %v1404 = vadd.f32 %v1326, %v1399
          %v1405 = vadd.f32 %v1327, %v1401
          %s1406 = sld [smem:[#allocation7 + $0x9f]]
          %v1407 = vstv %s1406
          %v1408 = vmul.f32 %v1407, %v277
          %v1409 = vmul.f32 %v1407, %v278
          %v1410 = vmul.f32 %v1407, %v279
          %v1414 = vrot.slane %v1408, 4
          %v1415 = vrot.slane %v1409, 4
          %v1416 = vsel %vm405, %v1414, %v1415
          %v1417 = vrot.slane %v1410, 4
          %v1418 = vsel %vm405, %v1415, %v1417
          %1419 = vrot.lane.b32.xlu0 %v1416, 125
          %v1420 = vpop.permute.xlu0 %1419
          %1421 = vrot.lane.b32.xlu0 %v1418, 125
          %v1422 = vpop.permute.xlu0 %1421
          %v1425 = vadd.f32 %v1347, %v1420
          %v1426 = vadd.f32 %v1348, %v1422
          %v1427 = vmul.f32 %v274, -2.0
          %v1428 = vmul.f32 %v275, -2.0
          %v1429 = vmul.f32 %v276, -2.0
          %v1430 = vmul.f32 %v277, -2.0
          %v1431 = vmul.f32 %v278, -2.0
          %v1432 = vmul.f32 %v279, -2.0
          %v1439 = vrot.slane %v1427, 2
          %v1440 = vrot.slane %v1428, 2
          %v1441 = vsel %vm335, %v1439, %v1440
          %v1442 = vrot.slane %v1429, 2
          %v1443 = vsel %vm335, %v1440, %v1442
          %v1444 = vrot.slane %v1430, 2
          %v1445 = vrot.slane %v1431, 2
          %v1446 = vsel %vm335, %v1444, %v1445
          %v1447 = vrot.slane %v1432, 2
          %v1448 = vsel %vm335, %v1445, %v1447
          %1449 = vrot.lane.b32.xlu0 %v1441, 127
          %v1450 = vpop.permute.xlu0 %1449
          %1451 = vrot.lane.b32.xlu0 %v1443, 127
          %v1452 = vpop.permute.xlu0 %1451
          %1453 = vrot.lane.b32.xlu0 %v1442, 127
          %v1454 = vpop.permute.xlu0 %1453
          %1455 = vrot.lane.b32.xlu0 %v1446, 127
          %v1456 = vpop.permute.xlu0 %1455
          %1457 = vrot.lane.b32.xlu0 %v1448, 127
          %v1458 = vpop.permute.xlu0 %1457
          %1459 = vrot.lane.b32.xlu0 %v1447, 127
          %v1460 = vpop.permute.xlu0 %1459
          %v1467 = vadd.f32 %v1266, %v1450
          %v1468 = vadd.f32 %v1267, %v1452
          %v1469 = vadd.f32 %v1268, %v1454
          %v1470 = vadd.f32 %v1269, %v1456
          %v1471 = vadd.f32 %v1270, %v1458
          %v1472 = vadd.f32 %v1271, %v1460
          %v1473 = vrot.slane %v274, 1
          %v1474 = vrot.slane %v275, 1
          %v1475 = vsel %vm300, %v1473, %v1474
          %v1476 = vrot.slane %v276, 1
          %v1477 = vsel %vm300, %v1474, %v1476
          %v1478 = vrot.slane %v277, 1
          %v1479 = vrot.slane %v278, 1
          %v1480 = vsel %vm300, %v1478, %v1479
          %v1481 = vrot.slane %v279, 1
          %v1482 = vsel %vm300, %v1479, %v1481
          %1483 = vrot.lane.b32.xlu0 %v1475, 127
          %v1484 = vpop.permute.xlu0 %1483
          %1485 = vrot.lane.b32.xlu0 %v1477, 127
          %v1486 = vpop.permute.xlu0 %1485
          %1487 = vrot.lane.b32.xlu0 %v1476, 127
          %v1488 = vpop.permute.xlu0 %1487
          %1489 = vrot.lane.b32.xlu0 %v1480, 127
          %v1490 = vpop.permute.xlu0 %1489
          %1491 = vrot.lane.b32.xlu0 %v1482, 127
          %v1492 = vpop.permute.xlu0 %1491
          %1493 = vrot.lane.b32.xlu0 %v1481, 127
          %v1494 = vpop.permute.xlu0 %1493
          %v1501 = vadd.f32 %v1379, %v1484
          %v1502 = vadd.f32 %v1380, %v1486
          %v1503 = vadd.f32 %v1381, %v1488
          %v1504 = vadd.f32 %v1382, %v1490
          %v1505 = vadd.f32 %v1383, %v1492
          %v1506 = vadd.f32 %v1384, %v1494
          %s1507 = sld [smem:[#allocation7 + $0x26]]
          %v1508 = vstv %s1507
          %v1509 = vmul.f32 %v1508, %v274
          %v1510 = vmul.f32 %v1508, %v275
          %v1511 = vmul.f32 %v1508, %v276
          %v1515 = vrot.slane %v1509, 5
          %v1516 = vrot.slane %v1510, 5
          %v1517 = vsel %vm440, %v1515, %v1516
          %v1518 = vrot.slane %v1511, 5
          %v1519 = vsel %vm440, %v1516, %v1518
          %1520 = vrot.lane.b32.xlu0 %v1517, 125
          %v1521 = vpop.permute.xlu0 %1520
          %1522 = vrot.lane.b32.xlu0 %v1519, 125
          %v1523 = vpop.permute.xlu0 %1522
          %v1526 = vadd.f32 %v1404, %v1521
          %v1527 = vadd.f32 %v1405, %v1523
          %s1528 = sld [smem:[#allocation7 + $0xa6]]
          %v1529 = vstv %s1528
          %v1530 = vmul.f32 %v1529, %v277
          %v1531 = vmul.f32 %v1529, %v278
          %v1532 = vmul.f32 %v1529, %v279
          %v1536 = vrot.slane %v1530, 5
          %v1537 = vrot.slane %v1531, 5
          %v1538 = vsel %vm440, %v1536, %v1537
          %v1539 = vrot.slane %v1532, 5
          %v1540 = vsel %vm440, %v1537, %v1539
          %1541 = vrot.lane.b32.xlu0 %v1538, 125
          %v1542 = vpop.permute.xlu0 %1541
          %1543 = vrot.lane.b32.xlu0 %v1540, 125
          %v1544 = vpop.permute.xlu0 %1543
          %v1547 = vadd.f32 %v1425, %v1542
          %v1548 = vadd.f32 %v1426, %v1544
          %s1549 = sld [smem:[#allocation7 + $0x2d]]
          %v1550 = vstv %s1549
          %v1551 = vmul.f32 %v1550, %v274
          %v1552 = vmul.f32 %v1550, %v275
          %v1553 = vmul.f32 %v1550, %v276
          %v1557 = vrot.slane %v1551, 6
          %v1558 = vrot.slane %v1552, 6
          %v1559 = vsel %vm475, %v1557, %v1558
          %v1560 = vrot.slane %v1553, 6
          %v1561 = vsel %vm475, %v1558, %v1560
          %1562 = vrot.lane.b32.xlu0 %v1559, 125
          %v1563 = vpop.permute.xlu0 %1562
          %1564 = vrot.lane.b32.xlu0 %v1561, 125
          %v1565 = vpop.permute.xlu0 %1564
          %v1568 = vadd.f32 %v1526, %v1563
          %v1569 = vadd.f32 %v1527, %v1565
          %s1570 = sld [smem:[#allocation7 + $0xad]]
          %v1571 = vstv %s1570
          %v1572 = vmul.f32 %v1571, %v277
          %v1573 = vmul.f32 %v1571, %v278
          %v1574 = vmul.f32 %v1571, %v279
          %v1578 = vrot.slane %v1572, 6
          %v1579 = vrot.slane %v1573, 6
          %v1580 = vsel %vm475, %v1578, %v1579
          %v1581 = vrot.slane %v1574, 6
          %v1582 = vsel %vm475, %v1579, %v1581
          %1583 = vrot.lane.b32.xlu0 %v1580, 125
          %v1584 = vpop.permute.xlu0 %1583
          %1585 = vrot.lane.b32.xlu0 %v1582, 125
          %v1586 = vpop.permute.xlu0 %1585
          %v1589 = vadd.f32 %v1547, %v1584
          %v1590 = vadd.f32 %v1548, %v1586
          %s1591 = sld [smem:[#allocation7 + $0x4]]
          %v1592 = vstv %s1591
          %v1593 = vmul.f32 %v1592, %v274
          %v1594 = vmul.f32 %v1592, %v275
          %1597 = vrot.lane.b32.xlu0 %v1593, 124
          %v1598 = vpop.permute.xlu0 %1597
          %1599 = vrot.lane.b32.xlu0 %v1594, 124
          %v1600 = vpop.permute.xlu0 %1599
          %v1603 = vadd.f32 %v1568, %v1598
          %v1604 = vadd.f32 %v1569, %v1600
          %s1605 = sld [smem:[#allocation7 + $0x84]]
          %v1606 = vstv %s1605
          %v1607 = vmul.f32 %v1606, %v277
          %v1608 = vmul.f32 %v1606, %v278
          %1611 = vrot.lane.b32.xlu0 %v1607, 124
          %v1612 = vpop.permute.xlu0 %1611
          %1613 = vrot.lane.b32.xlu0 %v1608, 124
          %v1614 = vpop.permute.xlu0 %1613
          %v1617 = vadd.f32 %v1589, %v1612
          %v1618 = vadd.f32 %v1590, %v1614
          %s1619 = sld [smem:[#allocation7 + $0xb]]
          %v1620 = vstv %s1619
          %v1621 = vmul.f32 %v1620, %v274
          %v1622 = vmul.f32 %v1620, %v275
          %v1623 = vmul.f32 %v1620, %v276
          %v1627 = vrot.slane %v1621, 1
          %v1628 = vrot.slane %v1622, 1
          %v1629 = vsel %vm300, %v1627, %v1628
          %v1630 = vrot.slane %v1623, 1
          %v1631 = vsel %vm300, %v1628, %v1630
          %1632 = vrot.lane.b32.xlu0 %v1629, 124
          %v1633 = vpop.permute.xlu0 %1632
          %1634 = vrot.lane.b32.xlu0 %v1631, 124
          %v1635 = vpop.permute.xlu0 %1634
          %v1638 = vadd.f32 %v1603, %v1633
          %v1639 = vadd.f32 %v1604, %v1635
          %s1640 = sld [smem:[#allocation7 + $0x8b]]
          %v1641 = vstv %s1640
          %v1642 = vmul.f32 %v1641, %v277
          %v1643 = vmul.f32 %v1641, %v278
          %v1644 = vmul.f32 %v1641, %v279
          %v1648 = vrot.slane %v1642, 1
          %v1649 = vrot.slane %v1643, 1
          %v1650 = vsel %vm300, %v1648, %v1649
          %v1651 = vrot.slane %v1644, 1
          %v1652 = vsel %vm300, %v1649, %v1651
          %1653 = vrot.lane.b32.xlu0 %v1650, 124
          %v1654 = vpop.permute.xlu0 %1653
          %1655 = vrot.lane.b32.xlu0 %v1652, 124
          %v1656 = vpop.permute.xlu0 %1655
          %v1659 = vadd.f32 %v1617, %v1654
          %v1660 = vadd.f32 %v1618, %v1656
          %s1661 = sld [smem:[#allocation7 + $0x12]]
          %v1662 = vstv %s1661
          %v1663 = vmul.f32 %v1662, %v274
          %v1664 = vmul.f32 %v1662, %v275
          %v1665 = vmul.f32 %v1662, %v276
          %v1669 = vrot.slane %v1663, 2
          %v1670 = vrot.slane %v1664, 2
          %v1671 = vsel %vm335, %v1669, %v1670
          %v1672 = vrot.slane %v1665, 2
          %v1673 = vsel %vm335, %v1670, %v1672
          %1674 = vrot.lane.b32.xlu0 %v1671, 124
          %v1675 = vpop.permute.xlu0 %1674
          %1676 = vrot.lane.b32.xlu0 %v1673, 124
          %v1677 = vpop.permute.xlu0 %1676
          %v1680 = vadd.f32 %v1638, %v1675
          %v1681 = vadd.f32 %v1639, %v1677
          %s1682 = sld [smem:[#allocation7 + $0x92]]
          %v1683 = vstv %s1682
          %v1684 = vmul.f32 %v1683, %v277
          %v1685 = vmul.f32 %v1683, %v278
          %v1686 = vmul.f32 %v1683, %v279
          %v1690 = vrot.slane %v1684, 2
          %v1691 = vrot.slane %v1685, 2
          %v1692 = vsel %vm335, %v1690, %v1691
          %v1693 = vrot.slane %v1686, 2
          %v1694 = vsel %vm335, %v1691, %v1693
          %1695 = vrot.lane.b32.xlu0 %v1692, 124
          %v1696 = vpop.permute.xlu0 %1695
          %1697 = vrot.lane.b32.xlu0 %v1694, 124
          %v1698 = vpop.permute.xlu0 %1697
          %v1701 = vadd.f32 %v1659, %v1696
          %v1702 = vadd.f32 %v1660, %v1698
          %1703 = vrot.lane.b32.xlu0 %v274, 126
          %v1704 = vpop.permute.xlu0 %1703
          %1705 = vrot.lane.b32.xlu0 %v275, 126
          %v1706 = vpop.permute.xlu0 %1705
          %1707 = vrot.lane.b32.xlu0 %v276, 126
          %v1708 = vpop.permute.xlu0 %1707
          %1709 = vrot.lane.b32.xlu0 %v277, 126
          %v1710 = vpop.permute.xlu0 %1709
          %1711 = vrot.lane.b32.xlu0 %v278, 126
          %v1712 = vpop.permute.xlu0 %1711
          %1713 = vrot.lane.b32.xlu0 %v279, 126
          %v1714 = vpop.permute.xlu0 %1713
          %v1721 = vsub.f32 %v1040, %v1704
          %v1722 = vsub.f32 %v1041, %v1706
          %v1723 = vsub.f32 %v1042, %v1708
          %v1724 = vsub.f32 %v1043, %v1710
          %v1725 = vsub.f32 %v1044, %v1712
          %v1726 = vsub.f32 %v1045, %v1714
          %v1727 = vadd.f32 %v1467, %v1704
          %v1728 = vadd.f32 %v1468, %v1706
          %v1729 = vadd.f32 %v1469, %v1708
          %v1730 = vadd.f32 %v1470, %v1710
          %v1731 = vadd.f32 %v1471, %v1712
          %v1732 = vadd.f32 %v1472, %v1714
          %s1733 = sld [smem:[#allocation7 + $0x19]]
          %v1734 = vstv %s1733
          %v1735 = vmul.f32 %v1734, %v274
          %v1736 = vmul.f32 %v1734, %v275
          %v1737 = vmul.f32 %v1734, %v276
          %v1741 = vrot.slane %v1735, 3
          %v1742 = vrot.slane %v1736, 3
          %v1743 = vsel %vm370, %v1741, %v1742
          %v1744 = vrot.slane %v1737, 3
          %v1745 = vsel %vm370, %v1742, %v1744
          %1746 = vrot.lane.b32.xlu0 %v1743, 124
          %v1747 = vpop.permute.xlu0 %1746
          %1748 = vrot.lane.b32.xlu0 %v1745, 124
          %v1749 = vpop.permute.xlu0 %1748
          %v1752 = vadd.f32 %v1680, %v1747
          %v1753 = vadd.f32 %v1681, %v1749
          %s1754 = sld [smem:[#allocation7 + $0x99]]
          %v1755 = vstv %s1754
          %v1756 = vmul.f32 %v1755, %v277
          %v1757 = vmul.f32 %v1755, %v278
          %v1758 = vmul.f32 %v1755, %v279
          %v1762 = vrot.slane %v1756, 3
          %v1763 = vrot.slane %v1757, 3
          %v1764 = vsel %vm370, %v1762, %v1763
          %v1765 = vrot.slane %v1758, 3
          %v1766 = vsel %vm370, %v1763, %v1765
          %1767 = vrot.lane.b32.xlu0 %v1764, 124
          %v1768 = vpop.permute.xlu0 %1767
          %1769 = vrot.lane.b32.xlu0 %v1766, 124
          %v1770 = vpop.permute.xlu0 %1769
          %v1773 = vadd.f32 %v1701, %v1768
          %v1774 = vadd.f32 %v1702, %v1770
          %v1775 = vrot.slane %v1427, 1
          %v1776 = vrot.slane %v1428, 1
          %v1777 = vsel %vm300, %v1775, %v1776
          %v1778 = vrot.slane %v1429, 1
          %v1779 = vsel %vm300, %v1776, %v1778
          %v1780 = vrot.slane %v1430, 1
          %v1781 = vrot.slane %v1431, 1
          %v1782 = vsel %vm300, %v1780, %v1781
          %v1783 = vrot.slane %v1432, 1
          %v1784 = vsel %vm300, %v1781, %v1783
          %1785 = vrot.lane.b32.xlu0 %v1777, 126
          %v1786 = vpop.permute.xlu0 %1785
          %1787 = vrot.lane.b32.xlu0 %v1779, 126
          %v1788 = vpop.permute.xlu0 %1787
          %1789 = vrot.lane.b32.xlu0 %v1778, 126
          %v1790 = vpop.permute.xlu0 %1789
          %1791 = vrot.lane.b32.xlu0 %v1782, 126
          %v1792 = vpop.permute.xlu0 %1791
          %1793 = vrot.lane.b32.xlu0 %v1784, 126
          %v1794 = vpop.permute.xlu0 %1793
          %1795 = vrot.lane.b32.xlu0 %v1783, 126
          %v1796 = vpop.permute.xlu0 %1795
          %v1803 = vadd.f32 %v1721, %v1786
          %v1804 = vadd.f32 %v1722, %v1788
          %v1805 = vadd.f32 %v1723, %v1790
          %v1806 = vadd.f32 %v1724, %v1792
          %v1807 = vadd.f32 %v1725, %v1794
          %v1808 = vadd.f32 %v1726, %v1796
          %v1809 = vadd.f32 %v1501, %v1704
          %v1810 = vadd.f32 %v1502, %v1706
          %v1811 = vadd.f32 %v1503, %v1708
          %v1812 = vadd.f32 %v1504, %v1710
          %v1813 = vadd.f32 %v1505, %v1712
          %v1814 = vadd.f32 %v1506, %v1714
          %s1815 = sld [smem:[#allocation7 + $0x20]]
          %v1816 = vstv %s1815
          %v1817 = vmul.f32 %v1816, %v274
          %v1818 = vmul.f32 %v1816, %v275
          %v1819 = vmul.f32 %v1816, %v276
          %v1823 = vrot.slane %v1817, 4
          %v1824 = vrot.slane %v1818, 4
          %v1825 = vsel %vm405, %v1823, %v1824
          %v1826 = vrot.slane %v1819, 4
          %v1827 = vsel %vm405, %v1824, %v1826
          %1828 = vrot.lane.b32.xlu0 %v1825, 124
          %v1829 = vpop.permute.xlu0 %1828
          %1830 = vrot.lane.b32.xlu0 %v1827, 124
          %v1831 = vpop.permute.xlu0 %1830
          %v1834 = vadd.f32 %v1752, %v1829
          %v1835 = vadd.f32 %v1753, %v1831
          %s1836 = sld [smem:[#allocation7 + $0xa0]]
          %v1837 = vstv %s1836
          %v1838 = vmul.f32 %v1837, %v277
          %v1839 = vmul.f32 %v1837, %v278
          %v1840 = vmul.f32 %v1837, %v279
          %v1844 = vrot.slane %v1838, 4
          %v1845 = vrot.slane %v1839, 4
          %v1846 = vsel %vm405, %v1844, %v1845
          %v1847 = vrot.slane %v1840, 4
          %v1848 = vsel %vm405, %v1845, %v1847
          %1849 = vrot.lane.b32.xlu0 %v1846, 124
          %v1850 = vpop.permute.xlu0 %1849
          %1851 = vrot.lane.b32.xlu0 %v1848, 124
          %v1852 = vpop.permute.xlu0 %1851
          %v1855 = vadd.f32 %v1773, %v1850
          %v1856 = vadd.f32 %v1774, %v1852
          %1857 = vrot.lane.b32.xlu0 %v1026, 126
          %v1858 = vpop.permute.xlu0 %1857
          %1859 = vrot.lane.b32.xlu0 %v1028, 126
          %v1860 = vpop.permute.xlu0 %1859
          %1861 = vrot.lane.b32.xlu0 %v1027, 126
          %v1862 = vpop.permute.xlu0 %1861
          %1863 = vrot.lane.b32.xlu0 %v1031, 126
          %v1864 = vpop.permute.xlu0 %1863
          %1865 = vrot.lane.b32.xlu0 %v1033, 126
          %v1866 = vpop.permute.xlu0 %1865
          %1867 = vrot.lane.b32.xlu0 %v1032, 126
          %v1868 = vpop.permute.xlu0 %1867
          %v1875 = vsub.f32 %v1803, %v1858
          %v1876 = vsub.f32 %v1804, %v1860
          %v1877 = vsub.f32 %v1805, %v1862
          %v1878 = vsub.f32 %v1806, %v1864
          %v1879 = vsub.f32 %v1807, %v1866
          %v1880 = vsub.f32 %v1808, %v1868
          %v1881 = vsub.f32 %v1727, %v1858
          %v1882 = vsub.f32 %v1728, %v1860
          %v1883 = vsub.f32 %v1729, %v1862
          %v1884 = vsub.f32 %v1730, %v1864
          %v1885 = vsub.f32 %v1731, %v1866
          %v1886 = vsub.f32 %v1732, %v1868
          %s1887 = sld [smem:[#allocation7 + $0x27]]
          %v1888 = vstv %s1887
          %v1889 = vmul.f32 %v1888, %v274
          %v1890 = vmul.f32 %v1888, %v275
          %v1891 = vmul.f32 %v1888, %v276
          %v1895 = vrot.slane %v1889, 5
          %v1896 = vrot.slane %v1890, 5
          %v1897 = vsel %vm440, %v1895, %v1896
          %v1898 = vrot.slane %v1891, 5
          %v1899 = vsel %vm440, %v1896, %v1898
          %1900 = vrot.lane.b32.xlu0 %v1897, 124
          %v1901 = vpop.permute.xlu0 %1900
          %1902 = vrot.lane.b32.xlu0 %v1899, 124
          %v1903 = vpop.permute.xlu0 %1902
          %v1906 = vadd.f32 %v1834, %v1901
          %v1907 = vadd.f32 %v1835, %v1903
          %s1908 = sld [smem:[#allocation7 + $0xa7]]
          %v1909 = vstv %s1908
          %v1910 = vmul.f32 %v1909, %v277
          %v1911 = vmul.f32 %v1909, %v278
          %v1912 = vmul.f32 %v1909, %v279
          %v1916 = vrot.slane %v1910, 5
          %v1917 = vrot.slane %v1911, 5
          %v1918 = vsel %vm440, %v1916, %v1917
          %v1919 = vrot.slane %v1912, 5
          %v1920 = vsel %vm440, %v1917, %v1919
          %1921 = vrot.lane.b32.xlu0 %v1918, 124
          %v1922 = vpop.permute.xlu0 %1921
          %1923 = vrot.lane.b32.xlu0 %v1920, 124
          %v1924 = vpop.permute.xlu0 %1923
          %v1927 = vadd.f32 %v1855, %v1922
          %v1928 = vadd.f32 %v1856, %v1924
          %s1929 = sld [smem:[#allocation7 + $0x2e]]
          %v1930 = vstv %s1929
          %v1931 = vmul.f32 %v1930, %v274
          %v1932 = vmul.f32 %v1930, %v275
          %v1933 = vmul.f32 %v1930, %v276
          %v1937 = vrot.slane %v1931, 6
          %v1938 = vrot.slane %v1932, 6
          %v1939 = vsel %vm475, %v1937, %v1938
          %v1940 = vrot.slane %v1933, 6
          %v1941 = vsel %vm475, %v1938, %v1940
          %1942 = vrot.lane.b32.xlu0 %v1939, 124
          %v1943 = vpop.permute.xlu0 %1942
          %1944 = vrot.lane.b32.xlu0 %v1941, 124
          %v1945 = vpop.permute.xlu0 %1944
          %v1948 = vadd.f32 %v1906, %v1943
          %v1949 = vadd.f32 %v1907, %v1945
          %s1950 = sld [smem:[#allocation7 + $0xae]]
          %v1951 = vstv %s1950
          %v1952 = vmul.f32 %v1951, %v277
          %v1953 = vmul.f32 %v1951, %v278
          %v1954 = vmul.f32 %v1951, %v279
          %v1958 = vrot.slane %v1952, 6
          %v1959 = vrot.slane %v1953, 6
          %v1960 = vsel %vm475, %v1958, %v1959
          %v1961 = vrot.slane %v1954, 6
          %v1962 = vsel %vm475, %v1959, %v1961
          %1963 = vrot.lane.b32.xlu0 %v1960, 124
          %v1964 = vpop.permute.xlu0 %1963
          %1965 = vrot.lane.b32.xlu0 %v1962, 124
          %v1966 = vpop.permute.xlu0 %1965
          %v1969 = vadd.f32 %v1927, %v1964
          %v1970 = vadd.f32 %v1928, %v1966
          %s1971 = sld [smem:[#allocation7 + $0x5]]
          %v1972 = vstv %s1971
          %v1973 = vmul.f32 %v1972, %v274
          %v1974 = vmul.f32 %v1972, %v275
          %1977 = vrot.lane.b32.xlu0 %v1973, 123
          %v1978 = vpop.permute.xlu0 %1977
          %1979 = vrot.lane.b32.xlu0 %v1974, 123
          %v1980 = vpop.permute.xlu0 %1979
          %v1983 = vadd.f32 %v1948, %v1978
          %v1984 = vadd.f32 %v1949, %v1980
          %s1985 = sld [smem:[#allocation7 + $0x85]]
          %v1986 = vstv %s1985
          %v1987 = vmul.f32 %v1986, %v277
          %v1988 = vmul.f32 %v1986, %v278
          %1991 = vrot.lane.b32.xlu0 %v1987, 123
          %v1992 = vpop.permute.xlu0 %1991
          %1993 = vrot.lane.b32.xlu0 %v1988, 123
          %v1994 = vpop.permute.xlu0 %1993
          %v1997 = vadd.f32 %v1969, %v1992
          %v1998 = vadd.f32 %v1970, %v1994
          %s1999 = sld [smem:[#allocation7 + $0xc]]
          %v2000 = vstv %s1999
          %v2001 = vmul.f32 %v2000, %v274
          %v2002 = vmul.f32 %v2000, %v275
          %v2003 = vmul.f32 %v2000, %v276
          %v2007 = vrot.slane %v2001, 1
          %v2008 = vrot.slane %v2002, 1
          %v2009 = vsel %vm300, %v2007, %v2008
          %v2010 = vrot.slane %v2003, 1
          %v2011 = vsel %vm300, %v2008, %v2010
          %2012 = vrot.lane.b32.xlu0 %v2009, 123
          %v2013 = vpop.permute.xlu0 %2012
          %2014 = vrot.lane.b32.xlu0 %v2011, 123
          %v2015 = vpop.permute.xlu0 %2014
          %v2018 = vadd.f32 %v1983, %v2013
          %v2019 = vadd.f32 %v1984, %v2015
          %s2020 = sld [smem:[#allocation7 + $0x8c]]
          %v2021 = vstv %s2020
          %v2022 = vmul.f32 %v2021, %v277
          %v2023 = vmul.f32 %v2021, %v278
          %v2024 = vmul.f32 %v2021, %v279
          %v2028 = vrot.slane %v2022, 1
          %v2029 = vrot.slane %v2023, 1
          %v2030 = vsel %vm300, %v2028, %v2029
          %v2031 = vrot.slane %v2024, 1
          %v2032 = vsel %vm300, %v2029, %v2031
          %2033 = vrot.lane.b32.xlu0 %v2030, 123
          %v2034 = vpop.permute.xlu0 %2033
          %2035 = vrot.lane.b32.xlu0 %v2032, 123
          %v2036 = vpop.permute.xlu0 %2035
          %v2039 = vadd.f32 %v1997, %v2034
          %v2040 = vadd.f32 %v1998, %v2036
          %s2041 = sld [smem:[#allocation7 + $0x13]]
          %v2042 = vstv %s2041
          %v2043 = vmul.f32 %v2042, %v274
          %v2044 = vmul.f32 %v2042, %v275
          %v2045 = vmul.f32 %v2042, %v276
          %v2049 = vrot.slane %v2043, 2
          %v2050 = vrot.slane %v2044, 2
          %v2051 = vsel %vm335, %v2049, %v2050
          %v2052 = vrot.slane %v2045, 2
          %v2053 = vsel %vm335, %v2050, %v2052
          %2054 = vrot.lane.b32.xlu0 %v2051, 123
          %v2055 = vpop.permute.xlu0 %2054
          %2056 = vrot.lane.b32.xlu0 %v2053, 123
          %v2057 = vpop.permute.xlu0 %2056
          %v2060 = vadd.f32 %v2018, %v2055
          %v2061 = vadd.f32 %v2019, %v2057
          %s2062 = sld [smem:[#allocation7 + $0x93]]
          %v2063 = vstv %s2062
          %v2064 = vmul.f32 %v2063, %v277
          %v2065 = vmul.f32 %v2063, %v278
          %v2066 = vmul.f32 %v2063, %v279
          %v2070 = vrot.slane %v2064, 2
          %v2071 = vrot.slane %v2065, 2
          %v2072 = vsel %vm335, %v2070, %v2071
          %v2073 = vrot.slane %v2066, 2
          %v2074 = vsel %vm335, %v2071, %v2073
          %2075 = vrot.lane.b32.xlu0 %v2072, 123
          %v2076 = vpop.permute.xlu0 %2075
          %2077 = vrot.lane.b32.xlu0 %v2074, 123
          %v2078 = vpop.permute.xlu0 %2077
          %v2081 = vadd.f32 %v2039, %v2076
          %v2082 = vadd.f32 %v2040, %v2078
          %s2083 = sld [smem:[#allocation7 + $0x1a]]
          %v2084 = vstv %s2083
          %v2085 = vmul.f32 %v2084, %v274
          %v2086 = vmul.f32 %v2084, %v275
          %v2087 = vmul.f32 %v2084, %v276
          %v2091 = vrot.slane %v2085, 3
          %v2092 = vrot.slane %v2086, 3
          %v2093 = vsel %vm370, %v2091, %v2092
          %v2094 = vrot.slane %v2087, 3
          %v2095 = vsel %vm370, %v2092, %v2094
          %2096 = vrot.lane.b32.xlu0 %v2093, 123
          %v2097 = vpop.permute.xlu0 %2096
          %2098 = vrot.lane.b32.xlu0 %v2095, 123
          %v2099 = vpop.permute.xlu0 %2098
          %v2102 = vadd.f32 %v2060, %v2097
          %v2103 = vadd.f32 %v2061, %v2099
          %s2104 = sld [smem:[#allocation7 + $0x9a]]
          %v2105 = vstv %s2104
          %v2106 = vmul.f32 %v2105, %v277
          %v2107 = vmul.f32 %v2105, %v278
          %v2108 = vmul.f32 %v2105, %v279
          %v2112 = vrot.slane %v2106, 3
          %v2113 = vrot.slane %v2107, 3
          %v2114 = vsel %vm370, %v2112, %v2113
          %v2115 = vrot.slane %v2108, 3
          %v2116 = vsel %vm370, %v2113, %v2115
          %2117 = vrot.lane.b32.xlu0 %v2114, 123
          %v2118 = vpop.permute.xlu0 %2117
          %2119 = vrot.lane.b32.xlu0 %v2116, 123
          %v2120 = vpop.permute.xlu0 %2119
          %v2123 = vadd.f32 %v2081, %v2118
          %v2124 = vadd.f32 %v2082, %v2120
          %s2125 = sld [smem:[#allocation7 + $0x21]]
          %v2126 = vstv %s2125
          %v2127 = vmul.f32 %v2126, %v274
          %v2128 = vmul.f32 %v2126, %v275
          %v2129 = vmul.f32 %v2126, %v276
          %v2133 = vrot.slane %v2127, 4
          %v2134 = vrot.slane %v2128, 4
          %v2135 = vsel %vm405, %v2133, %v2134
          %v2136 = vrot.slane %v2129, 4
          %v2137 = vsel %vm405, %v2134, %v2136
          %2138 = vrot.lane.b32.xlu0 %v2135, 123
          %v2139 = vpop.permute.xlu0 %2138
          %2140 = vrot.lane.b32.xlu0 %v2137, 123
          %v2141 = vpop.permute.xlu0 %2140
          %v2144 = vadd.f32 %v2102, %v2139
          %v2145 = vadd.f32 %v2103, %v2141
          %s2146 = sld [smem:[#allocation7 + $0xa1]]
          %v2147 = vstv %s2146
          %v2148 = vmul.f32 %v2147, %v277
          %v2149 = vmul.f32 %v2147, %v278
          %v2150 = vmul.f32 %v2147, %v279
          %v2154 = vrot.slane %v2148, 4
          %v2155 = vrot.slane %v2149, 4
          %v2156 = vsel %vm405, %v2154, %v2155
          %v2157 = vrot.slane %v2150, 4
          %v2158 = vsel %vm405, %v2155, %v2157
          %2159 = vrot.lane.b32.xlu0 %v2156, 123
          %v2160 = vpop.permute.xlu0 %2159
          %2161 = vrot.lane.b32.xlu0 %v2158, 123
          %v2162 = vpop.permute.xlu0 %2161
          %v2165 = vadd.f32 %v2123, %v2160
          %v2166 = vadd.f32 %v2124, %v2162
          %s2167 = sld [smem:[#allocation7 + $0x28]]
          %v2168 = vstv %s2167
          %v2169 = vmul.f32 %v2168, %v274
          %v2170 = vmul.f32 %v2168, %v275
          %v2171 = vmul.f32 %v2168, %v276
          %v2175 = vrot.slane %v2169, 5
          %v2176 = vrot.slane %v2170, 5
          %v2177 = vsel %vm440, %v2175, %v2176
          %v2178 = vrot.slane %v2171, 5
          %v2179 = vsel %vm440, %v2176, %v2178
          %2180 = vrot.lane.b32.xlu0 %v2177, 123
          %v2181 = vpop.permute.xlu0 %2180
          %2182 = vrot.lane.b32.xlu0 %v2179, 123
          %v2183 = vpop.permute.xlu0 %2182
          %v2186 = vadd.f32 %v2144, %v2181
          %v2187 = vadd.f32 %v2145, %v2183
          %s2188 = sld [smem:[#allocation7 + $0xa8]]
          %v2189 = vstv %s2188
          %v2190 = vmul.f32 %v2189, %v277
          %v2191 = vmul.f32 %v2189, %v278
          %v2192 = vmul.f32 %v2189, %v279
          %v2196 = vrot.slane %v2190, 5
          %v2197 = vrot.slane %v2191, 5
          %v2198 = vsel %vm440, %v2196, %v2197
          %v2199 = vrot.slane %v2192, 5
          %v2200 = vsel %vm440, %v2197, %v2199
          %2201 = vrot.lane.b32.xlu0 %v2198, 123
          %v2202 = vpop.permute.xlu0 %2201
          %2203 = vrot.lane.b32.xlu0 %v2200, 123
          %v2204 = vpop.permute.xlu0 %2203
          %v2207 = vadd.f32 %v2165, %v2202
          %v2208 = vadd.f32 %v2166, %v2204
          %s2209 = sld [smem:[#allocation7 + $0x2f]]
          %v2210 = vstv %s2209
          %v2211 = vmul.f32 %v2210, %v274
          %v2212 = vmul.f32 %v2210, %v275
          %v2213 = vmul.f32 %v2210, %v276
          %v2217 = vrot.slane %v2211, 6
          %v2218 = vrot.slane %v2212, 6
          %v2219 = vsel %vm475, %v2217, %v2218
          %v2220 = vrot.slane %v2213, 6
          %v2221 = vsel %vm475, %v2218, %v2220
          %2222 = vrot.lane.b32.xlu0 %v2219, 123
          %v2223 = vpop.permute.xlu0 %2222
          %2224 = vrot.lane.b32.xlu0 %v2221, 123
          %v2225 = vpop.permute.xlu0 %2224
          %v2228 = vadd.f32 %v2186, %v2223
          %v2229 = vadd.f32 %v2187, %v2225
          %s2230 = sld [smem:[#allocation7 + $0xaf]]
          %v2231 = vstv %s2230
          %v2232 = vmul.f32 %v2231, %v277
          %v2233 = vmul.f32 %v2231, %v278
          %v2234 = vmul.f32 %v2231, %v279
          %v2238 = vrot.slane %v2232, 6
          %v2239 = vrot.slane %v2233, 6
          %v2240 = vsel %vm475, %v2238, %v2239
          %v2241 = vrot.slane %v2234, 6
          %v2242 = vsel %vm475, %v2239, %v2241
          %2243 = vrot.lane.b32.xlu0 %v2240, 123
          %v2244 = vpop.permute.xlu0 %2243
          %2245 = vrot.lane.b32.xlu0 %v2242, 123
          %v2246 = vpop.permute.xlu0 %2245
          %v2249 = vadd.f32 %v2207, %v2244
          %v2250 = vadd.f32 %v2208, %v2246
          %s2251 = sld [smem:[#allocation7 + $0x6]]
          %v2252 = vstv %s2251
          %v2253 = vmul.f32 %v2252, %v274
          %v2254 = vmul.f32 %v2252, %v275
          %2257 = vrot.lane.b32.xlu0 %v2253, 122
          %v2258 = vpop.permute.xlu0 %2257
          %2259 = vrot.lane.b32.xlu0 %v2254, 122
          %v2260 = vpop.permute.xlu0 %2259
          %v2263 = vadd.f32 %v2228, %v2258
          %v2264 = vadd.f32 %v2229, %v2260
          %s2265 = sld [smem:[#allocation7 + $0x86]]
          %v2266 = vstv %s2265
          %v2267 = vmul.f32 %v2266, %v277
          %v2268 = vmul.f32 %v2266, %v278
          %2271 = vrot.lane.b32.xlu0 %v2267, 122
          %v2272 = vpop.permute.xlu0 %2271
          %2273 = vrot.lane.b32.xlu0 %v2268, 122
          %v2274 = vpop.permute.xlu0 %2273
          %v2277 = vadd.f32 %v2249, %v2272
          %v2278 = vadd.f32 %v2250, %v2274
          %s2279 = sld [smem:[#allocation7 + $0xd]]
          %v2280 = vstv %s2279
          %v2281 = vmul.f32 %v2280, %v274
          %v2282 = vmul.f32 %v2280, %v275
          %v2283 = vmul.f32 %v2280, %v276
          %v2287 = vrot.slane %v2281, 1
          %v2288 = vrot.slane %v2282, 1
          %v2289 = vsel %vm300, %v2287, %v2288
          %v2290 = vrot.slane %v2283, 1
          %v2291 = vsel %vm300, %v2288, %v2290
          %2292 = vrot.lane.b32.xlu0 %v2289, 122
          %v2293 = vpop.permute.xlu0 %2292
          %2294 = vrot.lane.b32.xlu0 %v2291, 122
          %v2295 = vpop.permute.xlu0 %2294
          %v2298 = vadd.f32 %v2263, %v2293
          %v2299 = vadd.f32 %v2264, %v2295
          %s2300 = sld [smem:[#allocation7 + $0x8d]]
          %v2301 = vstv %s2300
          %v2302 = vmul.f32 %v2301, %v277
          %v2303 = vmul.f32 %v2301, %v278
          %v2304 = vmul.f32 %v2301, %v279
          %v2308 = vrot.slane %v2302, 1
          %v2309 = vrot.slane %v2303, 1
          %v2310 = vsel %vm300, %v2308, %v2309
          %v2311 = vrot.slane %v2304, 1
          %v2312 = vsel %vm300, %v2309, %v2311
          %2313 = vrot.lane.b32.xlu0 %v2310, 122
          %v2314 = vpop.permute.xlu0 %2313
          %2315 = vrot.lane.b32.xlu0 %v2312, 122
          %v2316 = vpop.permute.xlu0 %2315
          %v2319 = vadd.f32 %v2277, %v2314
          %v2320 = vadd.f32 %v2278, %v2316
          %s2321 = sld [smem:[#allocation7 + $0x14]]
          %v2322 = vstv %s2321
          %v2323 = vmul.f32 %v2322, %v274
          %v2324 = vmul.f32 %v2322, %v275
          %v2325 = vmul.f32 %v2322, %v276
          %v2329 = vrot.slane %v2323, 2
          %v2330 = vrot.slane %v2324, 2
          %v2331 = vsel %vm335, %v2329, %v2330
          %v2332 = vrot.slane %v2325, 2
          %v2333 = vsel %vm335, %v2330, %v2332
          %2334 = vrot.lane.b32.xlu0 %v2331, 122
          %v2335 = vpop.permute.xlu0 %2334
          %2336 = vrot.lane.b32.xlu0 %v2333, 122
          %v2337 = vpop.permute.xlu0 %2336
          %v2340 = vadd.f32 %v2298, %v2335
          %v2341 = vadd.f32 %v2299, %v2337
          %s2342 = sld [smem:[#allocation7 + $0x94]]
          %v2343 = vstv %s2342
          %v2344 = vmul.f32 %v2343, %v277
          %v2345 = vmul.f32 %v2343, %v278
          %v2346 = vmul.f32 %v2343, %v279
          %v2350 = vrot.slane %v2344, 2
          %v2351 = vrot.slane %v2345, 2
          %v2352 = vsel %vm335, %v2350, %v2351
          %v2353 = vrot.slane %v2346, 2
          %v2354 = vsel %vm335, %v2351, %v2353
          %2355 = vrot.lane.b32.xlu0 %v2352, 122
          %v2356 = vpop.permute.xlu0 %2355
          %2357 = vrot.lane.b32.xlu0 %v2354, 122
          %v2358 = vpop.permute.xlu0 %2357
          %v2361 = vadd.f32 %v2319, %v2356
          %v2362 = vadd.f32 %v2320, %v2358
          %s2363 = sld [smem:[#allocation7 + $0x1b]]
          %v2364 = vstv %s2363
          %v2365 = vmul.f32 %v2364, %v274
          %v2366 = vmul.f32 %v2364, %v275
          %v2367 = vmul.f32 %v2364, %v276
          %v2371 = vrot.slane %v2365, 3
          %v2372 = vrot.slane %v2366, 3
          %v2373 = vsel %vm370, %v2371, %v2372
          %v2374 = vrot.slane %v2367, 3
          %v2375 = vsel %vm370, %v2372, %v2374
          %2376 = vrot.lane.b32.xlu0 %v2373, 122
          %v2377 = vpop.permute.xlu0 %2376
          %2378 = vrot.lane.b32.xlu0 %v2375, 122
          %v2379 = vpop.permute.xlu0 %2378
          %v2382 = vadd.f32 %v2340, %v2377
          %v2383 = vadd.f32 %v2341, %v2379
          %s2384 = sld [smem:[#allocation7 + $0x9b]]
          %v2385 = vstv %s2384
          %v2386 = vmul.f32 %v2385, %v277
          %v2387 = vmul.f32 %v2385, %v278
          %v2388 = vmul.f32 %v2385, %v279
          %v2392 = vrot.slane %v2386, 3
          %v2393 = vrot.slane %v2387, 3
          %v2394 = vsel %vm370, %v2392, %v2393
          %v2395 = vrot.slane %v2388, 3
          %v2396 = vsel %vm370, %v2393, %v2395
          %2397 = vrot.lane.b32.xlu0 %v2394, 122
          %v2398 = vpop.permute.xlu0 %2397
          %2399 = vrot.lane.b32.xlu0 %v2396, 122
          %v2400 = vpop.permute.xlu0 %2399
          %v2403 = vadd.f32 %v2361, %v2398
          %v2404 = vadd.f32 %v2362, %v2400
          %s2405 = sld [smem:[#allocation7 + $0x22]]
          %v2406 = vstv %s2405
          %v2407 = vmul.f32 %v2406, %v274
          %v2408 = vmul.f32 %v2406, %v275
          %v2409 = vmul.f32 %v2406, %v276
          %v2413 = vrot.slane %v2407, 4
          %v2414 = vrot.slane %v2408, 4
          %v2415 = vsel %vm405, %v2413, %v2414
          %v2416 = vrot.slane %v2409, 4
          %v2417 = vsel %vm405, %v2414, %v2416
          %2418 = vrot.lane.b32.xlu0 %v2415, 122
          %v2419 = vpop.permute.xlu0 %2418
          %2420 = vrot.lane.b32.xlu0 %v2417, 122
          %v2421 = vpop.permute.xlu0 %2420
          %v2424 = vadd.f32 %v2382, %v2419
          %v2425 = vadd.f32 %v2383, %v2421
          %s2426 = sld [smem:[#allocation7 + $0xa2]]
          %v2427 = vstv %s2426
          %v2428 = vmul.f32 %v2427, %v277
          %v2429 = vmul.f32 %v2427, %v278
          %v2430 = vmul.f32 %v2427, %v279
          %v2434 = vrot.slane %v2428, 4
          %v2435 = vrot.slane %v2429, 4
          %v2436 = vsel %vm405, %v2434, %v2435
          %v2437 = vrot.slane %v2430, 4
          %v2438 = vsel %vm405, %v2435, %v2437
          %2439 = vrot.lane.b32.xlu0 %v2436, 122
          %v2440 = vpop.permute.xlu0 %2439
          %2441 = vrot.lane.b32.xlu0 %v2438, 122
          %v2442 = vpop.permute.xlu0 %2441
          %v2445 = vadd.f32 %v2403, %v2440
          %v2446 = vadd.f32 %v2404, %v2442
          %s2447 = sld [smem:[#allocation7 + $0x29]]
          %v2448 = vstv %s2447
          %v2449 = vmul.f32 %v2448, %v274
          %v2450 = vmul.f32 %v2448, %v275
          %v2451 = vmul.f32 %v2448, %v276
          %v2455 = vrot.slane %v2449, 5
          %v2456 = vrot.slane %v2450, 5
          %v2457 = vsel %vm440, %v2455, %v2456
          %v2458 = vrot.slane %v2451, 5
          %v2459 = vsel %vm440, %v2456, %v2458
          %2460 = vrot.lane.b32.xlu0 %v2457, 122
          %v2461 = vpop.permute.xlu0 %2460
          %2462 = vrot.lane.b32.xlu0 %v2459, 122
          %v2463 = vpop.permute.xlu0 %2462
          %v2466 = vadd.f32 %v2424, %v2461
          %v2467 = vadd.f32 %v2425, %v2463
          %s2468 = sld [smem:[#allocation7 + $0xa9]]
          %v2469 = vstv %s2468
          %v2470 = vmul.f32 %v2469, %v277
          %v2471 = vmul.f32 %v2469, %v278
          %v2472 = vmul.f32 %v2469, %v279
          %v2476 = vrot.slane %v2470, 5
          %v2477 = vrot.slane %v2471, 5
          %v2478 = vsel %vm440, %v2476, %v2477
          %v2479 = vrot.slane %v2472, 5
          %v2480 = vsel %vm440, %v2477, %v2479
          %2481 = vrot.lane.b32.xlu0 %v2478, 122
          %v2482 = vpop.permute.xlu0 %2481
          %2483 = vrot.lane.b32.xlu0 %v2480, 122
          %v2484 = vpop.permute.xlu0 %2483
          %v2487 = vadd.f32 %v2445, %v2482
          %v2488 = vadd.f32 %v2446, %v2484
          %s2489 = sld [smem:[#allocation7 + $0x30]]
          %v2490 = vstv %s2489
          %v2491 = vmul.f32 %v2490, %v274
          %v2492 = vmul.f32 %v2490, %v275
          %v2493 = vmul.f32 %v2490, %v276
          %v2497 = vrot.slane %v2491, 6
          %v2498 = vrot.slane %v2492, 6
          %v2499 = vsel %vm475, %v2497, %v2498
          %v2500 = vrot.slane %v2493, 6
          %v2501 = vsel %vm475, %v2498, %v2500
          %2502 = vrot.lane.b32.xlu0 %v2499, 122
          %v2503 = vpop.permute.xlu0 %2502
          %2504 = vrot.lane.b32.xlu0 %v2501, 122
          %v2505 = vpop.permute.xlu0 %2504
          %v2508 = vadd.f32 %v2466, %v2503
          %v2509 = vadd.f32 %v2467, %v2505
          %s2510 = sld [smem:[#allocation7 + $0xb0]]
          %v2511 = vstv %s2510
          %v2512 = vmul.f32 %v2511, %v277
          %v2513 = vmul.f32 %v2511, %v278
          %v2514 = vmul.f32 %v2511, %v279
          %v2518 = vrot.slane %v2512, 6
          %v2519 = vrot.slane %v2513, 6
          %v2520 = vsel %vm475, %v2518, %v2519
          %v2521 = vrot.slane %v2514, 6
          %v2522 = vsel %vm475, %v2519, %v2521
          %2523 = vrot.lane.b32.xlu0 %v2520, 122
          %v2524 = vpop.permute.xlu0 %2523
          %2525 = vrot.lane.b32.xlu0 %v2522, 122
          %v2526 = vpop.permute.xlu0 %2525
          %v2529 = vadd.f32 %v2487, %v2524
          %v2530 = vadd.f32 %v2488, %v2526
          %v2531 = vand.u32 2147483647, %v1875
          %v2532 = vand.u32 2147483647, %v1876
          %v2533 = vand.u32 2147483647, %v1877
          %v2534 = vand.u32 2147483647, %v1878
          %v2535 = vand.u32 2147483647, %v1879
          %v2536 = vand.u32 2147483647, %v1880
          %v2537 = vand.u32 2147483647, %v1881
          %v2538 = vand.u32 2147483647, %v1882
          %v2539 = vand.u32 2147483647, %v1883
          %v2540 = vand.u32 2147483647, %v1884
          %v2541 = vand.u32 2147483647, %v1885
          %v2542 = vand.u32 2147483647, %v1886
          %v2543 = vadd.f32 %v2531, %v2537
          %v2544 = vadd.f32 %v2532, %v2538
          %v2545 = vadd.f32 %v2533, %v2539
          %v2546 = vadd.f32 %v2534, %v2540
          %v2547 = vadd.f32 %v2535, %v2541
          %v2548 = vadd.f32 %v2536, %v2542
          %v2549 = vand.u32 2147483647, %v1809
          %v2550 = vand.u32 2147483647, %v1810
          %v2551 = vand.u32 2147483647, %v1811
          %v2552 = vand.u32 2147483647, %v1812
          %v2553 = vand.u32 2147483647, %v1813
          %v2554 = vand.u32 2147483647, %v1814
          %v2555 = vmul.f32 %v2549, 2.0
          %v2556 = vmul.f32 %v2550, 2.0
          %v2557 = vmul.f32 %v2551, 2.0
          %v2558 = vmul.f32 %v2552, 2.0
          %v2559 = vmul.f32 %v2553, 2.0
          %v2560 = vmul.f32 %v2554, 2.0
          %v2567 = vrot.slane %v2555, 1
          %v2568 = vrot.slane %v2556, 1
          %v2569 = vsel %vm300, %v2567, %v2568
          %v2570 = vrot.slane %v2557, 1
          %v2571 = vsel %vm300, %v2568, %v2570
          %v2572 = vrot.slane %v2558, 1
          %v2573 = vrot.slane %v2559, 1
          %v2574 = vsel %vm300, %v2572, %v2573
          %v2575 = vrot.slane %v2560, 1
          %v2576 = vsel %vm300, %v2573, %v2575
          %v2583 = vadd.f32 %v2543, %v2569
          %v2584 = vadd.f32 %v2544, %v2571
          %v2585 = vadd.f32 %v2545, %v2570
          %v2586 = vadd.f32 %v2546, %v2574
          %v2587 = vadd.f32 %v2547, %v2576
          %v2588 = vadd.f32 %v2548, %v2575
          %s2589 = sld [smem:[#allocation8]]
          %v2590 = vstv %s2589
          %v2591 = vadd.f32 %v2508, %v2590
          %v2592 = vadd.f32 %v2509, %v2590
          %v2596 = vrot.slane %v2583, 2
          %v2597 = vrot.slane %v2584, 2
          %v2598 = vsel %vm335, %v2596, %v2597
          %v2599 = vrot.slane %v2585, 2
          %v2600 = vsel %vm335, %v2597, %v2599
          %2601 = vrot.lane.b32.xlu0 %v2598, 126
          %v2602 = vpop.permute.xlu0 %2601
          %2603 = vrot.lane.b32.xlu0 %v2600, 126
          %v2604 = vpop.permute.xlu0 %2603
          %v2607 = vadd.f32 %v2591, %v2602
          %v2608 = vadd.f32 %v2592, %v2604
          %vm2609 = vcmp.ge.f32.partialorder %v2607, 0.0
          %vm2610 = vcmp.ge.f32.partialorder %v2608, 0.0
          %v2611 = vmul.f32 %v2607, 0.01
          %v2612 = vmul.f32 %v2608, 0.01
          %v2613 = vsel %vm2609, %v2607, %v2611
          %v2614 = vsel %vm2610, %v2608, %v2612
          %v2615 = vadd.f32 %v2613, %v241
          %v2616 = vadd.f32 %v2614, %v242
          %vm2617 = vcmask 130048
          %2618 = vst.msk [vmem:[%s234] sm:$0xff] %vm2617, %v2615
          %2619 = vst.msk [vmem:[%s234 + $0x8] sm:$0xff] %vm2617, %v2616
          %s2620 = sld [smem:[#allocation8 + $0x1]]
          %v2621 = vstv %s2620
          %v2622 = vadd.f32 %v2529, %v2621
          %v2623 = vadd.f32 %v2530, %v2621
          %v2627 = vrot.slane %v2586, 2
          %v2628 = vrot.slane %v2587, 2
          %v2629 = vsel %vm335, %v2627, %v2628
          %v2630 = vrot.slane %v2588, 2
          %v2631 = vsel %vm335, %v2628, %v2630
          %2632 = vrot.lane.b32.xlu0 %v2629, 126
          %v2633 = vpop.permute.xlu0 %2632
          %2634 = vrot.lane.b32.xlu0 %v2631, 126
          %v2635 = vpop.permute.xlu0 %2634
          %v2638 = vadd.f32 %v2622, %v2633
          %v2639 = vadd.f32 %v2623, %v2635
          %vm2640 = vcmp.ge.f32.partialorder %v2638, 0.0
          %vm2641 = vcmp.ge.f32.partialorder %v2639, 0.0
          %v2642 = vmul.f32 %v2638, 0.01
          %v2643 = vmul.f32 %v2639, 0.01
          %v2644 = vsel %vm2640, %v2638, %v2642
          %v2645 = vsel %vm2641, %v2639, %v2643
          %v2646 = vadd.f32 %v2644, %v243
          %v2647 = vadd.f32 %v2645, %v244
          %s2648 = scalar_lea.vmem %s234, 16 [#allocation10]
          %2649 = vst.msk [vmem:[%s2648] sm:$0xff] %vm2617, %v2646
          %2650 = vst.msk [vmem:[%s2648 + $0x8] sm:$0xff] %vm2617, %v2647
        $region48: #{tpu_custom_call.1} parent=31 // pred_fallthru
          _
        %p2651 = scmp.ne.s32.totalorder %s27, 0
        // Predicated region
        $region49: #{tpu_custom_call.1} parent=31 // pred_check
          %p2652 = pneg %p2651
        $region50: #{tpu_custom_call.1} parent=31 // pred_check_branch
          %2654 = sbr.rel (%p2652) target = $region52
        $region51: #{tpu_custom_call.1} parent=31 // pred_region
          %v2655 = vld [vmem:[%s203] sm:$0xff]
          %v2656 = vld [vmem:[%s203 + $0x8] sm:$0xff]
          %v2657 = vld [vmem:[%s203 + $0x10] sm:$0xff]
          %v2658 = vld [vmem:[%s203 + $0x18] sm:$0xff]
          %v2659 = vmul.f32 %v2655, 8.0
          %v2660 = vmul.f32 %v2656, 8.0
          %v2661 = vmul.f32 %v2657, 8.0
          %v2662 = vmul.f32 %v2658, 8.0
          %vm2663 = vcmp.ge.f32.partialorder %v2659, 0.0
          %vm2664 = vcmp.ge.f32.partialorder %v2660, 0.0
          %vm2665 = vcmp.ge.f32.partialorder %v2661, 0.0
          %vm2666 = vcmp.ge.f32.partialorder %v2662, 0.0
          %v2667 = vmul.f32 %v2659, 0.01
          %v2668 = vmul.f32 %v2660, 0.01
          %v2669 = vmul.f32 %v2661, 0.01
          %v2670 = vmul.f32 %v2662, 0.01
          %v2671 = vsel %vm2663, %v2659, %v2667
          %v2672 = vsel %vm2664, %v2660, %v2668
          %v2673 = vsel %vm2665, %v2661, %v2669
          %v2674 = vsel %vm2666, %v2662, %v2670
          %v2675 = vadd.f32 %v2671, %v2655
          %v2676 = vadd.f32 %v2672, %v2656
          %v2677 = vadd.f32 %v2673, %v2657
          %v2678 = vadd.f32 %v2674, %v2658
          %vm2679 = vcmask 130048
          %2680 = vst.msk [vmem:[%s234] sm:$0xff] %vm2679, %v2675
          %2681 = vst.msk [vmem:[%s234 + $0x8] sm:$0xff] %vm2679, %v2676
          %2682 = vst.msk [vmem:[%s234 + $0x10] sm:$0xff] %vm2679, %v2677
          %2683 = vst.msk [vmem:[%s234 + $0x18] sm:$0xff] %vm2679, %v2678
        $region52: #{tpu_custom_call.1} parent=31 // pred_fallthru
          _
        %s2684 = sand.u32 %s114, 1
        %s2685 = scalar_lea.sflag [#allocation5], %s2684
        %s2686 = sand.u32 %s114, 1
        %s2687 = smul.addr %s2686, 32
        %s2688 = scalar_lea.vmem [#allocation10], %s2687
        // Predicated region
        $region53: #{tpu_custom_call.1} parent=31 // pred_check
          %p2689 = pneg %p124
        $region54: #{tpu_custom_call.1} parent=31 // pred_check_branch
          %2691 = sbr.rel (%p2689) target = $region56
        $region55: #{tpu_custom_call.1} parent=31 // pred_region
          %s2692 = smul.u32 2, %s27
          %s2694 = ssub.s32 512, 512
          %2695 = vsyncadd %s2685, %s2694
          %s2696 = smul.addr %s2692, 2
          %s2697 = smul.addr %s26, 16
          %s2698 = sadd.s32 %s2696, %s2697
          %s2699 = smul.addr %s2698, 128
          %s2700 = scalar_lea.hbm %s3, %s2699
          %s2701 = sshll.u32 %s2688, 4
          %s2702 = int_to_ptr.vmem [resolvable:$true] %s2701
          %2707 = dma.vmem_to_hbm [thread:$0]  %s2702, 512, %s2700, %s2685, 128, 128, 8
        $region56: #{tpu_custom_call.1} parent=31 // pred_fallthru
          _
      $region32: #{tpu_custom_call.1} parent=5 // pred_fallthru
        _
      %p2708 = scmp.le.s32.totalorder 2, %s17
      // Predicated region
      $region57: #{tpu_custom_call.1} parent=5 // pred_check
        %p2709 = pneg %p2708
      $region58: #{tpu_custom_call.1} parent=5 // pred_check_branch
        %2711 = sbr.rel (%p2709) target = $region60
      $region59: #{tpu_custom_call.1} parent=5 // pred_region
        %s2712 = ssub.s32 %s17, 2
        // Predicated region
        $region61: #{tpu_custom_call.1} parent=59 // pred_check
          %p2713 = pneg %p130
        $region62: #{tpu_custom_call.1} parent=59 // pred_check_branch
          %2715 = sbr.rel (%p2713) target = $region64
        $region63: #{tpu_custom_call.1} parent=59 // pred_region
          %s2716 = sand.u32 %s115, 1
          %s2717 = scalar_lea.sflag [#allocation5], %s2716
          %s2718 = sand.u32 %s115, 1
          %s2719 = smul.addr %s2718, 32
          %s2720 = scalar_lea.vmem [#allocation10], %s2719
          %2721 = dma.done %s2717, 512
        $region64: #{tpu_custom_call.1} parent=59 // pred_fallthru
          _
      $region60: #{tpu_custom_call.1} parent=5 // pred_fallthru
        _
    $region6: #{tpu_custom_call.1} parent=1 // loop_footer
      %s21 = sadd.s32 1, %s17
    $region7: #{tpu_custom_call.1} parent=1 // loop_footer_branch
      %16 = sbr.rel target = $region3
    $region8: #{tpu_custom_call.1} parent=1 // loop_exit
      _
    %2722 = vsyncpa [#allocation4], 1
    %s2723 = scalar_lea.sflag [#allocation4], 1
    %2724 = vsyncpa %s2723, 1
    %2725 = vsyncpa [#allocation5], 1
    %s2726 = scalar_lea.sflag [#allocation5], 1
    %2727 = vsyncpa %s2726, 1
    %2728 = vsyncpa [#allocation6], 1
    %s2729 = scalar_lea.sflag [#allocation6], 1
    %2730 = vsyncpa %s2729, 1
    %2731 = vsyncpa [#allocation9], 1

</llo_original>
